<compile_context>
chip_gen: v5e
topology: v5e:2x2
jax: 0.10.0
libtpu: 0.0.40
codegen_flags: <defaults>
</compile_context>

<pallas_src>
import jax
import jax.numpy as jnp
from jax.experimental import pallas as pl
from jax.experimental.pallas import tpu as pltpu

BN_EPS = 1e-5
NEG_BIG = -1e30   # stand-in for -inf in the masked max pool
OUTP = 128        # lane-dense padded width of the scalar head output


def _round_up(v, m):
    return ((v + m - 1) // m) * m


# ----------------------------------------------------------------------------
# Fused kernel: CGConv (edge-blocked) + scatter-add + BN(eval) + residual
#               + mean/add/max pooling + MLP head
# ----------------------------------------------------------------------------
def fused_cgcnn_kernel(dst_row_ref, dst_col_ref, src_col_ref, e_ref,
                       brow_ref, bcol_ref, x_ref,
                       wd_ref, ws_ref, we_ref, bfs_ref,
                       bn_scale_ref, bn_shift_ref,
                       w1_ref, b1_ref, w2_ref, b2_ref, w3_ref, b3_ref,
                       out_ref,
                       acc_ref, xwd_ref, xws_ref):
    k = pl.program_id(0)
    n_pad, f_pad = acc_ref.shape          # padded node count, padded feature dim
    te = e_ref.shape[0]                   # edges in this block
    n_graphs = out_ref.shape[0]

    @pl.when(k == 0)
    def _init():
        acc_ref[...] = jnp.zeros_like(acc_ref)
        # Precompute x @ W_dst and x @ W_src once; the per-edge gather+matmul
        # then becomes one-hot @ (x @ W), so no (E, 2F+Fe) z stream ever exists.
        x_bf = x_ref[...].astype(jnp.bfloat16)
        xwd_ref[...] = jnp.dot(x_bf, wd_ref[...],
                               preferred_element_type=jnp.float32).astype(jnp.bfloat16)
        xws_ref[...] = jnp.dot(x_bf, ws_ref[...],
                               preferred_element_type=jnp.float32).astype(jnp.bfloat16)

    # ---- per-block one-hot gather / scatter masks (VPU work, hidden under MXU)
    edge_iota = jax.lax.broadcasted_iota(jnp.int32, (te, n_pad), 1)
    gath_dst = (edge_iota == dst_col_ref[...]).astype(jnp.bfloat16)   # (TE, Np)
    gath_src = (edge_iota == src_col_ref[...]).astype(jnp.bfloat16)   # (TE, Np)
    node_iota = jax.lax.broadcasted_iota(jnp.int32, (n_pad, te), 0)
    scat = (node_iota == dst_row_ref[...]).astype(jnp.bfloat16)       # (Np, TE)

    # ---- CGConv messages: fused [filter | soft] pre-activations, f32 accum ----
    pre = (jnp.dot(gath_dst, xwd_ref[...], preferred_element_type=jnp.float32)
           + jnp.dot(gath_src, xws_ref[...], preferred_element_type=jnp.float32)
           + jnp.dot(e_ref[...], we_ref[...], preferred_element_type=jnp.float32)
           + bfs_ref[...])                                            # (TE, 2Fp)
    pre_f = pre[:, :f_pad]
    pre_s = pre[:, f_pad:]
    gate = 0.5 * (jnp.tanh(0.5 * pre_f) + 1.0)        # sigmoid via tanh: 1 EUP op
    soft = jnp.maximum(pre_s, 0.0) + jnp.log1p(jnp.exp(-jnp.abs(pre_s)))
    msg = (gate * soft).astype(jnp.bfloat16)                          # (TE, Fp)

    # ---- scatter-add messages to target nodes (bf16 MXU, f32 accumulate) ------
    acc_ref[...] += jnp.dot(scat, msg, preferred_element_type=jnp.float32)

    # ---- epilogue: BN(eval) + residual + pooling + MLP head (runs once, f32) --
    @pl.when(k == pl.num_programs(0) - 1)
    def _finalize():
        h = x_ref[...] + acc_ref[...] * bn_scale_ref[...] + bn_shift_ref[...]

        # mean / add pool via a (G, Np) one-hot matmul; exact f32 divide.
        g_iota = jax.lax.broadcasted_iota(jnp.int32, (n_graphs, n_pad), 0)
        pool = (g_iota == brow_ref[...]).astype(jnp.float32)          # (G, Np)
        sum_pool = jnp.dot(pool, h, preferred_element_type=jnp.float32)
        counts = jnp.sum(pool, axis=1, keepdims=True)
        mean_pool = sum_pool / jnp.maximum(counts, 1.0)

        # max pool: per-graph masked reduce assembled into ONE (G, Fp) value
        # (no per-row masked stores).  Padded node rows carry h = bn_shift but
        # their batch id is G, so they never match any graph.  An empty graph
        # would yield NEG_BIG rows, matching the reference behaviour.
        # TODO(synk): switch to a fori_loop-carried reduce if G grows beyond ~8.
        bcol = bcol_ref[...]
        max_pool = jnp.concatenate(
            [jnp.max(jnp.where(bcol == g, h, NEG_BIG), axis=0, keepdims=True)
             for g in range(n_graphs)], axis=0)                       # (G, Fp)

        pooled = jnp.concatenate([mean_pool, sum_pool, max_pool], axis=1)  # (G,3Fp)

        # MLP head (tiny; exact f32).  Dropout is identity in eval mode.
        h1 = jnp.maximum(
            jnp.dot(pooled, w1_ref[...], preferred_element_type=jnp.float32)
            + b1_ref[...], 0.0)
        h2 = jnp.maximum(
            jnp.dot(h1, w2_ref[...], preferred_element_type=jnp.float32)
            + b2_ref[...], 0.0)
        out_ref[...] = (jnp.dot(h2, w3_ref[...], preferred_element_type=jnp.float32)
                        + b3_ref[...])


# ----------------------------------------------------------------------------
# One-time parameter packing (hoisted out of the per-forward path)
# ----------------------------------------------------------------------------
def pack_params(params, n_node_features, n_edge_features):
    """Fold / pad the weights once per parameter set.  Layout (in, out):
    y = x @ W + b (transpose of torch's (out, in))."""
    F, Fe = n_node_features, n_edge_features
    Fp = _round_up(F, 128)
    Fep = _round_up(Fe, 128)

    wf, ws = params["wf"], params["ws"]                 # (2F+Fe, F) each

    def fuse_rows(rows_f, rows_s, n_rows, n_rows_pad):
        w = jnp.zeros((n_rows_pad, 2 * Fp), jnp.float32)
        w = w.at[:n_rows, :F].set(rows_f).at[:n_rows, Fp:Fp + F].set(rows_s)
        return w.astype(jnp.bfloat16)                    # bf16 MXU operands

    w_dst = fuse_rows(wf[:F], ws[:F], F, Fp)             # multiplies x[dst]
    w_src = fuse_rows(wf[F:2 * F], ws[F:2 * F], F, Fp)   # multiplies x[src]
    w_edge = fuse_rows(wf[2 * F:], ws[2 * F:], Fe, Fep)  # multiplies edge_attr

    b_fs = jnp.zeros((1, 2 * Fp), jnp.float32)
    b_fs = (b_fs.at[0, :F].set(params["bf"].reshape(-1))
                 .at[0, Fp:Fp + F].set(params["bs"].reshape(-1)))

    scale = (params["bn_gamma"] / jnp.sqrt(params["bn_var"] + BN_EPS)).reshape(1, F)
    shift = (params["bn_beta"].reshape(1, F)
             - params["bn_mean"].reshape(1, F) * scale)
    bn_scale = jnp.zeros((1, Fp), jnp.float32).at[:, :F].set(scale)
    bn_shift = jnp.zeros((1, Fp), jnp.float32).at[:, :F].set(shift)

    w1 = jnp.zeros((3 * Fp, 32), jnp.float32)
    w1 = (w1.at[:F, :].set(params["w1_mean"])
            .at[Fp:Fp + F, :].set(params["w1_sum"])
            .at[2 * Fp:2 * Fp + F, :].set(params["w1_max"]))
    w3 = jnp.zeros((16, OUTP), jnp.float32).at[:, :1].set(params["w3"])
    b3 = jnp.zeros((1, OUTP), jnp.float32).at[:, :1].set(params["b3"].reshape(1, 1))

    return dict(F=F, Fe=Fe, Fp=Fp, Fep=Fep,
                w_dst=w_dst, w_src=w_src, w_edge=w_edge, b_fs=b_fs,
                bn_scale=bn_scale, bn_shift=bn_shift,
                w1=w1, b1=params["b1"].reshape(1, 32).astype(jnp.float32),
                w2=params["w2"].astype(jnp.float32),
                b2=params["b2"].reshape(1, 16).astype(jnp.float32),
                w3=w3, b3=b3)


# ----------------------------------------------------------------------------
# Forward wrapper
# ----------------------------------------------------------------------------
def cgcnn_forward(packed, x, edge_index, edge_attr, batch_index, num_graphs,
                  *, edge_block=512):
    assert edge_block % 128 == 0
    N, F = x.shape
    E, Fe = edge_attr.shape
    G = int(num_graphs)
    assert F == packed["F"] and Fe == packed["Fe"]
    Fp, Fep = packed["Fp"], packed["Fep"]

    Np = _round_up(N, 16)            # 16 keeps bf16 scratch sublane-tile aligned
    Ep = _round_up(E, edge_block)
    num_blocks = Ep // edge_block
    TE = edge_block

    src = edge_index[0].astype(jnp.int32)
    dst = edge_index[1].astype(jnp.int32)
    # Padded edges point at node Np (matches nothing); padded nodes get graph id
    # G (matches no graph) -> they never contribute to scatter or pooling.
    dst_pad = jnp.pad(dst, (0, Ep - E), constant_values=Np)
    src_pad = jnp.pad(src, (0, Ep - E), constant_values=Np)
    dst_row = dst_pad[None, :]                        # (1, Ep)  scatter one-hot
    dst_col = dst_pad[:, None]                        # (Ep, 1)  dst gather one-hot
    src_col = src_pad[:, None]                        # (Ep, 1)  src gather one-hot
    bvec = jnp.pad(batch_index.astype(jnp.int32), (0, Np - N), constant_values=G)
    batch_row = bvec[None, :]
    batch_col = bvec[:, None]

    # Only edge_attr is streamed per edge (bf16, halves DMA bytes); x[dst]/x[src]
    # are gathered in-kernel, so no padded (E, 2F+Fe) z array ever touches HBM.
    e_blk = jnp.zeros((Ep, Fep), jnp.bfloat16).at[:E, :Fe].set(
        edge_attr.astype(jnp.bfloat16))
    x_p = jnp.pad(x.astype(jnp.float32), ((0, Np - N), (0, Fp - F)))

    # ---- explicit VMEM budget (v7x only has 64 MiB physical) -----------------
    invariant_vmem = (x_p.size * 4
                      + (packed["w_dst"].size + packed["w_src"].size
                         + packed["w_edge"].size) * 2
                      + (packed["b_fs"].size + packed["bn_scale"].size
                         + packed["bn_shift"].size + packed["w1"].size
                         + packed["b1"].size + packed["w2"].size
                         + packed["b2"].size + packed["w3"].size
                         + packed["b3"].size) * 4
                      + (batch_row.size + batch_col.size) * 4)
    streamed_vmem = TE * Fep * 2 + 3 * TE * 4         # edge block + index blocks
    scratch_vmem = Np * Fp * 4 + 2 * Np * 2 * Fp * 2  # acc + xwd + xws
    # Every pipelined input is double-buffered (incl. grid-invariant blocks;
    # pipeline_mode=pl.Buffered(1) could single-buffer those if VMEM got tight).
    vmem_needed = 2 * (invariant_vmem + streamed_vmem) + scratch_vmem + G * OUTP * 4
    assert vmem_needed < 48 * 1024 * 1024, "edge_block / graph too big for v7x VMEM"
    vmem_limit = int(min(max(2 * vmem_needed, 32 * 1024 * 1024), 48 * 1024 * 1024))
    # On v5e/v6e (128 MiB VMEM) vmem_limit and edge_block can be raised further.

    cost = pl.CostEstimate(
        flops=int(2 * 2 * Np * Fp * 2 * Fp                 # xwd / xws precompute
                  + 2 * 2 * Ep * Np * 2 * Fp               # two gather matmuls
                  + 2 * Ep * Fep * 2 * Fp                  # edge-feature matmul
                  + 2 * Np * Ep * Fp                       # scatter-add matmul
                  + 2 * G * Np * Fp + 2 * G * 3 * Fp * 32
                  + 2 * G * 32 * 16 + 2 * G * 16 * OUTP),
        transcendentals=int(3 * Ep * Fp),
        bytes_accessed=int(e_blk.size * 2 + 3 * Ep * 4 + invariant_vmem
                           + G * OUTP * 4))

    out_pad = pl.pallas_call(
        fused_cgcnn_kernel,
        out_shape=jax.ShapeDtypeStruct((G, OUTP), jnp.float32),
        grid_spec=pltpu.PrefetchScalarGridSpec(
            num_scalar_prefetch=0,
            grid=(num_blocks,),
            in_specs=[
                pl.BlockSpec((1, TE), lambda k: (0, k)),          # dst (row)
                pl.BlockSpec((TE, 1), lambda k: (k, 0)),          # dst (col)
                pl.BlockSpec((TE, 1), lambda k: (k, 0)),          # src (col)
                pl.BlockSpec((TE, Fep), lambda k: (k, 0)),        # edge_attr block
                pl.BlockSpec((1, Np), lambda k: (0, 0)),          # batch (row)
                pl.BlockSpec((Np, 1), lambda k: (0, 0)),          # batch (col)
                pl.BlockSpec((Np, Fp), lambda k: (0, 0)),         # x
                pl.BlockSpec((Fp, 2 * Fp), lambda k: (0, 0)),     # W_dst  [f|s]
                pl.BlockSpec((Fp, 2 * Fp), lambda k: (0, 0)),     # W_src  [f|s]
                pl.BlockSpec((Fep, 2 * Fp), lambda k: (0, 0)),    # W_edge [f|s]
                pl.BlockSpec((1, 2 * Fp), lambda k: (0, 0)),      # b      [f|s]
                pl.BlockSpec((1, Fp), lambda k: (0, 0)),          # bn scale
                pl.BlockSpec((1, Fp), lambda k: (0, 0)),          # bn shift
                pl.BlockSpec((3 * Fp, 32), lambda k: (0, 0)),     # W1
                pl.BlockSpec((1, 32), lambda k: (0, 0)),          # b1
                pl.BlockSpec((32, 16), lambda k: (0, 0)),         # W2
                pl.BlockSpec((1, 16), lambda k: (0, 0)),          # b2
                pl.BlockSpec((16, OUTP), lambda k: (0, 0)),       # W3 (lane-padded)
                pl.BlockSpec((1, OUTP), lambda k: (0, 0)),        # b3
            ],
            out_specs=pl.BlockSpec((G, OUTP), lambda k: (0, 0)),
            scratch_shapes=[pltpu.VMEM((Np, Fp), jnp.float32),        # aggr acc
                            pltpu.VMEM((Np, 2 * Fp), jnp.bfloat16),   # x @ W_dst
                            pltpu.VMEM((Np, 2 * Fp), jnp.bfloat16)],  # x @ W_src
        ),
        compiler_params=pltpu.CompilerParams(
            dimension_semantics=("arbitrary",),        # edge axis is a reduction
            vmem_limit_bytes=vmem_limit),
        cost_estimate=cost,
    )(dst_row, dst_col, src_col, e_blk, batch_row, batch_col, x_p,
      packed["w_dst"], packed["w_src"], packed["w_edge"], packed["b_fs"],
      packed["bn_scale"], packed["bn_shift"],
      packed["w1"], packed["b1"], packed["w2"], packed["b2"],
      packed["w3"], packed["b3"])

    return out_pad[:, :1]


# ----------------------------------------------------------------------------
# Pure-JAX f32 reference (same math) for a correctness check
# ----------------------------------------------------------------------------
def cgcnn_reference(params, x, edge_index, edge_attr, batch_index, num_graphs):
    N, F = x.shape
    G = num_graphs
    src, dst = edge_index[0], edge_index[1]
    z = jnp.concatenate([x[dst], x[src], edge_attr], axis=1)
    msg = jax.nn.sigmoid(z @ params["wf"] + params["bf"]) * \
          jax.nn.softplus(z @ params["ws"] + params["bs"])
    aggr = jax.ops.segment_sum(msg, dst, num_segments=N)
    normed = (aggr - params["bn_mean"]) / jnp.sqrt(params["bn_var"] + BN_EPS) \
             * params["bn_gamma"] + params["bn_beta"]
    h = x + normed
    pool = (batch_index[None, :] == jnp.arange(G)[:, None]).astype(jnp.float32)
    sum_pool = pool @ h
    mean_pool = sum_pool / jnp.maximum(pool.sum(axis=1, keepdims=True), 1.0)
    max_pool = jnp.max(jnp.where(pool[:, :, None] > 0.5, h[None], NEG_BIG), axis=1)
    h1 = jax.nn.relu(mean_pool @ params["w1_mean"] + sum_pool @ params["w1_sum"]
                     + max_pool @ params["w1_max"] + params["b1"])
    h2 = jax.nn.relu(h1 @ params["w2"] + params["b2"])
    return h2 @ params["w3"] + params["b3"]


def init_params(key, n_node_features, n_edge_features):
    F, Fe = n_node_features, n_edge_features
    zdim = 2 * F + Fe
    ks = jax.random.split(key, 10)
    s = 0.1
    return {
        "wf": s * jax.random.normal(ks[0], (zdim, F), jnp.float32),
        "bf": s * jax.random.normal(ks[1], (1, F), jnp.float32),
        "ws": s * jax.random.normal(ks[2], (zdim, F), jnp.float32),
        "bs": s * jax.random.normal(ks[3], (1, F), jnp.float32),
        "bn_gamma": jnp.ones((1, F), jnp.float32),
        "bn_beta": jnp.zeros((1, F), jnp.float32),
        "bn_mean": jnp.zeros((1, F), jnp.float32),
        "bn_var": jnp.ones((1, F), jnp.float32),
        # Linear(3F, 32) stored as three (F, 32) blocks for [mean | add | max]
        "w1_mean": s * jax.random.normal(ks[4], (F, 32), jnp.float32),
        "w1_sum": s * jax.random.normal(ks[5], (F, 32), jnp.float32),
        "w1_max": s * jax.random.normal(ks[6], (F, 32), jnp.float32),
        "b1": jnp.zeros((1, 32), jnp.float32),
        "w2": s * jax.random.normal(ks[7], (32, 16), jnp.float32),
        "b2": jnp.zeros((1, 16), jnp.float32),
        "w3": s * jax.random.normal(ks[8], (16, 1), jnp.float32),
        "b3": jnp.zeros((1, 1), jnp.float32),
    }


if __name__ == "__main__":
    # small synthetic graph batch (E > edge_block so the edge grid iterates)
    F, Fe = 16, 8            # n_node_features, n_edge_features
    N, E, G = 24, 1200, 3    # nodes, edges, graphs in the batch

    key = jax.random.PRNGKey(0)
    k_x, k_e, k_ei, k_p = jax.random.split(key, 4)

    x = jax.random.normal(k_x, (N, F), jnp.float32)
    edge_attr = jax.random.normal(k_e, (E, Fe), jnp.float32)
    edge_index = jax.random.randint(k_ei, (2, E), 0, N, jnp.int32)
    batch_index = jnp.repeat(jnp.arange(G, dtype=jnp.int32), N // G)

    params = init_params(k_p, F, Fe)
    packed = pack_params(params, F, Fe)   # weight padding/fusion done ONCE

    out = cgcnn_forward(packed, x, edge_index, edge_attr, batch_index, G)
    out = jax.block_until_ready(out)

    ref = cgcnn_reference(params, x, edge_index, edge_attr, batch_index, G)
    assert out.shape == (G, 1)
    # tolerance accounts for bf16 MXU operands in the edge loop (epilogue is f32)
    assert jnp.allclose(out, ref, atol=5e-2, rtol=2e-2), (out, ref)

    print("KERNEL_OK")
</pallas_src>

<mosaic_0001>
module attributes {stable_mosaic.version = 11 : i64} {
  func.func @fused_cgcnn_kernel(%arg0: i32, %arg1: memref<1x512xi32, #tpu.memory_space<vmem>>, %arg2: memref<512x1xi32, #tpu.memory_space<vmem>>, %arg3: memref<512x1xi32, #tpu.memory_space<vmem>>, %arg4: memref<512x128xbf16, #tpu.memory_space<vmem>>, %arg5: memref<1x32xi32, #tpu.memory_space<vmem>>, %arg6: memref<32x1xi32, #tpu.memory_space<vmem>>, %arg7: memref<32x128xf32, #tpu.memory_space<vmem>>, %arg8: memref<128x256xbf16, #tpu.memory_space<vmem>>, %arg9: memref<128x256xbf16, #tpu.memory_space<vmem>>, %arg10: memref<128x256xbf16, #tpu.memory_space<vmem>>, %arg11: memref<1x256xf32, #tpu.memory_space<vmem>>, %arg12: memref<1x128xf32, #tpu.memory_space<vmem>>, %arg13: memref<1x128xf32, #tpu.memory_space<vmem>>, %arg14: memref<384x32xf32, #tpu.memory_space<vmem>>, %arg15: memref<1x32xf32, #tpu.memory_space<vmem>>, %arg16: memref<32x16xf32, #tpu.memory_space<vmem>>, %arg17: memref<1x16xf32, #tpu.memory_space<vmem>>, %arg18: memref<16x128xf32, #tpu.memory_space<vmem>>, %arg19: memref<1x128xf32, #tpu.memory_space<vmem>>, %arg20: memref<3x128xf32, #tpu.memory_space<vmem>>, %arg21: memref<32x128xf32, #tpu.memory_space<vmem>>, %arg22: memref<32x256xbf16, #tpu.memory_space<vmem>>, %arg23: memref<32x256xbf16, #tpu.memory_space<vmem>>) attributes {dimension_semantics = [#tpu.dimension_semantics<arbitrary>], iteration_bounds = array<i64: 3>, scalar_prefetch = 0 : i64, scratch_operands = 3 : i64, tpu.core_type = #tpu.core_type<tc>, window_params = [{transform_indices = @transform_0, window_bounds = array<i64: 1, 512>}, {transform_indices = @transform_1, window_bounds = array<i64: 512, 1>}, {transform_indices = @transform_2, window_bounds = array<i64: 512, 1>}, {transform_indices = @transform_3, window_bounds = array<i64: 512, 128>}, {pipeline_mode = #tpu.pipeline_mode<synchronous>, transform_indices = @transform_4, window_bounds = array<i64: 1, 32>}, {pipeline_mode = #tpu.pipeline_mode<synchronous>, transform_indices = @transform_5, window_bounds = array<i64: 32, 1>}, {pipeline_mode = #tpu.pipeline_mode<synchronous>, transform_indices = @transform_6, window_bounds = array<i64: 32, 128>}, {pipeline_mode = #tpu.pipeline_mode<synchronous>, transform_indices = @transform_7, window_bounds = array<i64: 128, 256>}, {pipeline_mode = #tpu.pipeline_mode<synchronous>, transform_indices = @transform_8, window_bounds = array<i64: 128, 256>}, {pipeline_mode = #tpu.pipeline_mode<synchronous>, transform_indices = @transform_9, window_bounds = array<i64: 128, 256>}, {pipeline_mode = #tpu.pipeline_mode<synchronous>, transform_indices = @transform_10, window_bounds = array<i64: 1, 256>}, {pipeline_mode = #tpu.pipeline_mode<synchronous>, transform_indices = @transform_11, window_bounds = array<i64: 1, 128>}, {pipeline_mode = #tpu.pipeline_mode<synchronous>, transform_indices = @transform_12, window_bounds = array<i64: 1, 128>}, {pipeline_mode = #tpu.pipeline_mode<synchronous>, transform_indices = @transform_13, window_bounds = array<i64: 384, 32>}, {pipeline_mode = #tpu.pipeline_mode<synchronous>, transform_indices = @transform_14, window_bounds = array<i64: 1, 32>}, {pipeline_mode = #tpu.pipeline_mode<synchronous>, transform_indices = @transform_15, window_bounds = array<i64: 32, 16>}, {pipeline_mode = #tpu.pipeline_mode<synchronous>, transform_indices = @transform_16, window_bounds = array<i64: 1, 16>}, {pipeline_mode = #tpu.pipeline_mode<synchronous>, transform_indices = @transform_17, window_bounds = array<i64: 16, 128>}, {pipeline_mode = #tpu.pipeline_mode<synchronous>, transform_indices = @transform_18, window_bounds = array<i64: 1, 128>}, {pipeline_mode = #tpu.pipeline_mode<synchronous>, transform_indices = @transform_19, window_bounds = array<i64: 3, 128>}]} {
    %c0_i32 = arith.constant 0 : i32
    %0 = arith.cmpi eq, %arg0, %c0_i32 : i32
    %1 = arith.extui %0 : i1 to i32
    %c0_i32_0 = arith.constant 0 : i32
    %2 = arith.cmpi ne, %1, %c0_i32_0 : i32
    scf.if %2 {
      %cst_29 = arith.constant 0.000000e+00 : f32
      %61 = vector.broadcast %cst_29 : f32 to vector<32x128xf32>
      %c0_30 = arith.constant 0 : index
      %c0_31 = arith.constant 0 : index
      %62 = vector.load %arg21[%c0_30, %c0_31] : memref<32x128xf32, #tpu.memory_space<vmem>>, vector<32x128xf32>
      tpu.vector_store %arg21[%c0_30, %c0_31], %61 {strides = array<i32>} : memref<32x128xf32, #tpu.memory_space<vmem>>, vector<32x128xf32>,
      %c0_32 = arith.constant 0 : index
      %c0_33 = arith.constant 0 : index
      %63 = vector.load %arg7[%c0_32, %c0_33] : memref<32x128xf32, #tpu.memory_space<vmem>>, vector<32x128xf32>
      %64 = arith.truncf %63 : vector<32x128xf32> to vector<32x128xbf16>
      %c0_34 = arith.constant 0 : index
      %c0_35 = arith.constant 0 : index
      %65 = vector.load %arg8[%c0_34, %c0_35] : memref<128x256xbf16, #tpu.memory_space<vmem>>, vector<128x256xbf16>
      %cst_36 = arith.constant dense<0.000000e+00> : vector<32x256xf32>
      %66 = tpu.matmul %64, %65, %cst_36 {dimension_numbers = #tpu.dot_dimension_numbers<[1], [0], [0], [1], [0, 0, 1, 1], [], []>} : vector<32x128xbf16>, vector<128x256xbf16>, vector<32x256xf32> -> vector<32x256xf32>
      %67 = arith.truncf %66 : vector<32x256xf32> to vector<32x256xbf16>
      %c0_37 = arith.constant 0 : index
      %c0_38 = arith.constant 0 : index
      %68 = vector.load %arg22[%c0_37, %c0_38] : memref<32x256xbf16, #tpu.memory_space<vmem>>, vector<32x256xbf16>
      tpu.vector_store %arg22[%c0_37, %c0_38], %67 {strides = array<i32>} : memref<32x256xbf16, #tpu.memory_space<vmem>>, vector<32x256xbf16>,
      %c0_39 = arith.constant 0 : index
      %c0_40 = arith.constant 0 : index
      %69 = vector.load %arg9[%c0_39, %c0_40] : memref<128x256xbf16, #tpu.memory_space<vmem>>, vector<128x256xbf16>
      %cst_41 = arith.constant dense<0.000000e+00> : vector<32x256xf32>
      %70 = tpu.matmul %64, %69, %cst_41 {dimension_numbers = #tpu.dot_dimension_numbers<[1], [0], [0], [1], [0, 0, 1, 1], [], []>} : vector<32x128xbf16>, vector<128x256xbf16>, vector<32x256xf32> -> vector<32x256xf32>
      %71 = arith.truncf %70 : vector<32x256xf32> to vector<32x256xbf16>
      %c0_42 = arith.constant 0 : index
      %c0_43 = arith.constant 0 : index
      %72 = vector.load %arg23[%c0_42, %c0_43] : memref<32x256xbf16, #tpu.memory_space<vmem>>, vector<32x256xbf16>
      tpu.vector_store %arg23[%c0_42, %c0_43], %71 {strides = array<i32>} : memref<32x256xbf16, #tpu.memory_space<vmem>>, vector<32x256xbf16>,
    } else {
    }
    %3 = tpu.iota {dimensions = array<i32: 1>} : vector<512x32xi32>
    %c0 = arith.constant 0 : index
    %c0_1 = arith.constant 0 : index
    %4 = vector.load %arg2[%c0, %c0_1] : memref<512x1xi32, #tpu.memory_space<vmem>>, vector<512x1xi32>
    %5 = vector.broadcast %4 : vector<512x1xi32> to vector<512x32xi32>
    %6 = arith.cmpi eq, %3, %5 : vector<512x32xi32>
    %7 = arith.extui %6 : vector<512x32xi1> to vector<512x32xi32>
    %8 = arith.sitofp %7 : vector<512x32xi32> to vector<512x32xf32>
    %9 = arith.truncf %8 : vector<512x32xf32> to vector<512x32xbf16>
    %c0_2 = arith.constant 0 : index
    %c0_3 = arith.constant 0 : index
    %10 = vector.load %arg3[%c0_2, %c0_3] : memref<512x1xi32, #tpu.memory_space<vmem>>, vector<512x1xi32>
    %11 = vector.broadcast %10 : vector<512x1xi32> to vector<512x32xi32>
    %12 = arith.cmpi eq, %3, %11 : vector<512x32xi32>
    %13 = arith.extui %12 : vector<512x32xi1> to vector<512x32xi32>
    %14 = arith.sitofp %13 : vector<512x32xi32> to vector<512x32xf32>
    %15 = arith.truncf %14 : vector<512x32xf32> to vector<512x32xbf16>
    %16 = tpu.iota {dimensions = array<i32: 0>} : vector<32x512xi32>
    %c0_4 = arith.constant 0 : index
    %c0_5 = arith.constant 0 : index
    %17 = vector.load %arg1[%c0_4, %c0_5] : memref<1x512xi32, #tpu.memory_space<vmem>>, vector<1x512xi32>
    %18 = vector.broadcast %17 : vector<1x512xi32> to vector<32x512xi32>
    %19 = arith.cmpi eq, %16, %18 : vector<32x512xi32>
    %20 = arith.extui %19 : vector<32x512xi1> to vector<32x512xi32>
    %21 = arith.sitofp %20 : vector<32x512xi32> to vector<32x512xf32>
    %22 = arith.truncf %21 : vector<32x512xf32> to vector<32x512xbf16>
    %c0_6 = arith.constant 0 : index
    %c0_7 = arith.constant 0 : index
    %23 = vector.load %arg22[%c0_6, %c0_7] : memref<32x256xbf16, #tpu.memory_space<vmem>>, vector<32x256xbf16>
    %cst = arith.constant dense<0.000000e+00> : vector<512x256xf32>
    %24 = tpu.matmul %9, %23, %cst {dimension_numbers = #tpu.dot_dimension_numbers<[1], [0], [0], [1], [0, 0, 1, 1], [], []>} : vector<512x32xbf16>, vector<32x256xbf16>, vector<512x256xf32> -> vector<512x256xf32>
    %c0_8 = arith.constant 0 : index
    %c0_9 = arith.constant 0 : index
    %25 = vector.load %arg23[%c0_8, %c0_9] : memref<32x256xbf16, #tpu.memory_space<vmem>>, vector<32x256xbf16>
    %cst_10 = arith.constant dense<0.000000e+00> : vector<512x256xf32>
    %26 = tpu.matmul %15, %25, %cst_10 {dimension_numbers = #tpu.dot_dimension_numbers<[1], [0], [0], [1], [0, 0, 1, 1], [], []>} : vector<512x32xbf16>, vector<32x256xbf16>, vector<512x256xf32> -> vector<512x256xf32>
    %27 = arith.addf %24, %26 : vector<512x256xf32>
    %c0_11 = arith.constant 0 : index
    %c0_12 = arith.constant 0 : index
    %28 = vector.load %arg4[%c0_11, %c0_12] : memref<512x128xbf16, #tpu.memory_space<vmem>>, vector<512x128xbf16>
    %c0_13 = arith.constant 0 : index
    %c0_14 = arith.constant 0 : index
    %29 = vector.load %arg10[%c0_13, %c0_14] : memref<128x256xbf16, #tpu.memory_space<vmem>>, vector<128x256xbf16>
    %cst_15 = arith.constant dense<0.000000e+00> : vector<512x256xf32>
    %30 = tpu.matmul %28, %29, %cst_15 {dimension_numbers = #tpu.dot_dimension_numbers<[1], [0], [0], [1], [0, 0, 1, 1], [], []>} : vector<512x128xbf16>, vector<128x256xbf16>, vector<512x256xf32> -> vector<512x256xf32>
    %31 = arith.addf %27, %30 : vector<512x256xf32>
    %c0_16 = arith.constant 0 : index
    %c0_17 = arith.constant 0 : index
    %32 = vector.load %arg11[%c0_16, %c0_17] : memref<1x256xf32, #tpu.memory_space<vmem>>, vector<1x256xf32>
    %33 = vector.broadcast %32 : vector<1x256xf32> to vector<512x256xf32>
    %34 = arith.addf %31, %33 : vector<512x256xf32>
    %35 = vector.extract_strided_slice %34 {offsets = [0, 0], sizes = [512, 128], strides = [1, 1]} : vector<512x256xf32> to vector<512x128xf32>
    %36 = vector.extract_strided_slice %34 {offsets = [0, 128], sizes = [512, 128], strides = [1, 1]} : vector<512x256xf32> to vector<512x128xf32>
    %cst_18 = arith.constant 5.000000e-01 : f32
    %37 = vector.broadcast %cst_18 : f32 to vector<512x128xf32>
    %38 = arith.mulf %37, %35 : vector<512x128xf32>
    %39 = math.tanh %38 : vector<512x128xf32>
    %cst_19 = arith.constant 1.000000e+00 : f32
    %40 = vector.broadcast %cst_19 : f32 to vector<512x128xf32>
    %41 = arith.addf %39, %40 : vector<512x128xf32>
    %cst_20 = arith.constant 5.000000e-01 : f32
    %42 = vector.broadcast %cst_20 : f32 to vector<512x128xf32>
    %43 = arith.mulf %42, %41 : vector<512x128xf32>
    %cst_21 = arith.constant 0.000000e+00 : f32
    %44 = vector.broadcast %cst_21 : f32 to vector<512x128xf32>
    %45 = arith.maximumf %36, %44 : vector<512x128xf32>
    %46 = math.absf %36 : vector<512x128xf32>
    %cst_22 = arith.constant 0.000000e+00 : f32
    %47 = vector.broadcast %cst_22 : f32 to vector<512x128xf32>
    %48 = arith.subf %47, %46 : vector<512x128xf32>
    %49 = math.exp %48 : vector<512x128xf32>
    %50 = math.log1p %49 : vector<512x128xf32>
    %51 = arith.addf %45, %50 : vector<512x128xf32>
    %52 = arith.mulf %43, %51 : vector<512x128xf32>
    %53 = arith.truncf %52 : vector<512x128xf32> to vector<512x128xbf16>
    %c0_23 = arith.constant 0 : index
    %c0_24 = arith.constant 0 : index
    %54 = vector.load %arg21[%c0_23, %c0_24] : memref<32x128xf32, #tpu.memory_space<vmem>>, vector<32x128xf32>
    %cst_25 = arith.constant dense<0.000000e+00> : vector<32x128xf32>
    %55 = tpu.matmul %22, %53, %cst_25 {dimension_numbers = #tpu.dot_dimension_numbers<[1], [0], [0], [1], [0, 0, 1, 1], [], []>} : vector<32x512xbf16>, vector<512x128xbf16>, vector<32x128xf32> -> vector<32x128xf32>
    %56 = arith.addf %54, %55 : vector<32x128xf32>
    %c0_26 = arith.constant 0 : index
    %c0_27 = arith.constant 0 : index
    %57 = vector.load %arg21[%c0_26, %c0_27] : memref<32x128xf32, #tpu.memory_space<vmem>>, vector<32x128xf32>
    tpu.vector_store %arg21[%c0_26, %c0_27], %56 {strides = array<i32>} : memref<32x128xf32, #tpu.memory_space<vmem>>, vector<32x128xf32>,
    %c2_i32 = arith.constant 2 : i32
    %58 = arith.cmpi eq, %arg0, %c2_i32 : i32
    %59 = arith.extui %58 : i1 to i32
    %c0_i32_28 = arith.constant 0 : i32
    %60 = arith.cmpi ne, %59, %c0_i32_28 : i32
    scf.if %60 {
      %c0_29 = arith.constant 0 : index
      %c0_30 = arith.constant 0 : index
      %61 = vector.load %arg7[%c0_29, %c0_30] : memref<32x128xf32, #tpu.memory_space<vmem>>, vector<32x128xf32>
      %c0_31 = arith.constant 0 : index
      %c0_32 = arith.constant 0 : index
      %62 = vector.load %arg21[%c0_31, %c0_32] : memref<32x128xf32, #tpu.memory_space<vmem>>, vector<32x128xf32>
      %c0_33 = arith.constant 0 : index
      %c0_34 = arith.constant 0 : index
      %63 = vector.load %arg12[%c0_33, %c0_34] : memref<1x128xf32, #tpu.memory_space<vmem>>, vector<1x128xf32>
      %64 = vector.broadcast %63 : vector<1x128xf32> to vector<32x128xf32>
      %65 = arith.mulf %62, %64 : vector<32x128xf32>
      %66 = arith.addf %61, %65 : vector<32x128xf32>
      %c0_35 = arith.constant 0 : index
      %c0_36 = arith.constant 0 : index
      %67 = vector.load %arg13[%c0_35, %c0_36] : memref<1x128xf32, #tpu.memory_space<vmem>>, vector<1x128xf32>
      %68 = vector.broadcast %67 : vector<1x128xf32> to vector<32x128xf32>
      %69 = arith.addf %66, %68 : vector<32x128xf32>
      %70 = tpu.iota {dimensions = array<i32: 0>} : vector<3x32xi32>
      %c0_37 = arith.constant 0 : index
      %c0_38 = arith.constant 0 : index
      %71 = vector.load %arg5[%c0_37, %c0_38] : memref<1x32xi32, #tpu.memory_space<vmem>>, vector<1x32xi32>
      %72 = vector.broadcast %71 : vector<1x32xi32> to vector<3x32xi32>
      %73 = arith.cmpi eq, %70, %72 : vector<3x32xi32>
      %74 = arith.extui %73 : vector<3x32xi1> to vector<3x32xi32>
      %75 = arith.sitofp %74 : vector<3x32xi32> to vector<3x32xf32>
      %cst_39 = arith.constant dense<0.000000e+00> : vector<3x128xf32>
      %76 = tpu.matmul %75, %69, %cst_39 {dimension_numbers = #tpu.dot_dimension_numbers<[1], [0], [0], [1], [0, 0, 1, 1], [], []>} : vector<3x32xf32>, vector<32x128xf32>, vector<3x128xf32> -> vector<3x128xf32>
      %cst_40 = arith.constant dense<0.000000e+00> : vector<3xf32>
      %77 = vector.multi_reduction <add>, %75, %cst_40 [1] : vector<3x32xf32> to vector<3xf32>
      %78 = vector.shape_cast %77 : vector<3xf32> to vector<3x1xf32>
      %cst_41 = arith.constant 1.000000e+00 : f32
      %79 = vector.broadcast %cst_41 : f32 to vector<3x1xf32>
      %80 = arith.maximumf %78, %79 : vector<3x1xf32>
      %81 = vector.broadcast %80 : vector<3x1xf32> to vector<3x128xf32>
      %82 = arith.divf %76, %81 : vector<3x128xf32>
      %c0_42 = arith.constant 0 : index
      %c0_43 = arith.constant 0 : index
      %83 = vector.load %arg6[%c0_42, %c0_43] : memref<32x1xi32, #tpu.memory_space<vmem>>, vector<32x1xi32>
      %c0_i32_44 = arith.constant 0 : i32
      %84 = vector.broadcast %c0_i32_44 : i32 to vector<32x1xi32>
      %85 = arith.cmpi eq, %83, %84 : vector<32x1xi32>
      %cst_45 = arith.constant -1.000000e+30 : f32
      %86 = vector.shape_cast %85 : vector<32x1xi1> to vector<32x1xi1>
      %87 = vector.broadcast %86 : vector<32x1xi1> to vector<32x128xi1>
      %88 = vector.broadcast %cst_45 : f32 to vector<32x128xf32>
      %89 = arith.select %87, %69, %88 : vector<32x128xi1>, vector<32x128xf32>
      %cst_46 = arith.constant dense<0xFF800000> : vector<128xf32>
      %90 = vector.multi_reduction <maximumf>, %89, %cst_46 [0] : vector<32x128xf32> to vector<128xf32>
      %91 = vector.shape_cast %90 : vector<128xf32> to vector<1x128xf32>
      %c1_i32 = arith.constant 1 : i32
      %92 = vector.broadcast %c1_i32 : i32 to vector<32x1xi32>
      %93 = arith.cmpi eq, %83, %92 : vector<32x1xi32>
      %cst_47 = arith.constant -1.000000e+30 : f32
      %94 = vector.shape_cast %93 : vector<32x1xi1> to vector<32x1xi1>
      %95 = vector.broadcast %94 : vector<32x1xi1> to vector<32x128xi1>
      %96 = vector.broadcast %cst_47 : f32 to vector<32x128xf32>
      %97 = arith.select %95, %69, %96 : vector<32x128xi1>, vector<32x128xf32>
      %cst_48 = arith.constant dense<0xFF800000> : vector<128xf32>
      %98 = vector.multi_reduction <maximumf>, %97, %cst_48 [0] : vector<32x128xf32> to vector<128xf32>
      %99 = vector.shape_cast %98 : vector<128xf32> to vector<1x128xf32>
      %c2_i32_49 = arith.constant 2 : i32
      %100 = vector.broadcast %c2_i32_49 : i32 to vector<32x1xi32>
      %101 = arith.cmpi eq, %83, %100 : vector<32x1xi32>
      %cst_50 = arith.constant -1.000000e+30 : f32
      %102 = vector.shape_cast %101 : vector<32x1xi1> to vector<32x1xi1>
      %103 = vector.broadcast %102 : vector<32x1xi1> to vector<32x128xi1>
      %104 = vector.broadcast %cst_50 : f32 to vector<32x128xf32>
      %105 = arith.select %103, %69, %104 : vector<32x128xi1>, vector<32x128xf32>
      %cst_51 = arith.constant dense<0xFF800000> : vector<128xf32>
      %106 = vector.multi_reduction <maximumf>, %105, %cst_51 [0] : vector<32x128xf32> to vector<128xf32>
      %107 = vector.shape_cast %106 : vector<128xf32> to vector<1x128xf32>
      %108 = tpu.concatenate %91, %99, %107 in 0 : vector<1x128xf32>, vector<1x128xf32>, vector<1x128xf32> -> vector<3x128xf32>
      %109 = tpu.concatenate %82, %76, %108 in 1 : vector<3x128xf32>, vector<3x128xf32>, vector<3x128xf32> -> vector<3x384xf32>
      %c0_52 = arith.constant 0 : index
      %c0_53 = arith.constant 0 : index
      %110 = vector.load %arg14[%c0_52, %c0_53] : memref<384x32xf32, #tpu.memory_space<vmem>>, vector<384x32xf32>
      %cst_54 = arith.constant dense<0.000000e+00> : vector<3x32xf32>
      %111 = tpu.matmul %109, %110, %cst_54 {dimension_numbers = #tpu.dot_dimension_numbers<[1], [0], [0], [1], [0, 0, 1, 1], [], []>} : vector<3x384xf32>, vector<384x32xf32>, vector<3x32xf32> -> vector<3x32xf32>
      %c0_55 = arith.constant 0 : index
      %c0_56 = arith.constant 0 : index
      %112 = vector.load %arg15[%c0_55, %c0_56] : memref<1x32xf32, #tpu.memory_space<vmem>>, vector<1x32xf32>
      %113 = vector.broadcast %112 : vector<1x32xf32> to vector<3x32xf32>
      %114 = arith.addf %111, %113 : vector<3x32xf32>
      %cst_57 = arith.constant 0.000000e+00 : f32
      %115 = vector.broadcast %cst_57 : f32 to vector<3x32xf32>
      %116 = arith.maximumf %114, %115 : vector<3x32xf32>
      %c0_58 = arith.constant 0 : index
      %c0_59 = arith.constant 0 : index
      %117 = vector.load %arg16[%c0_58, %c0_59] : memref<32x16xf32, #tpu.memory_space<vmem>>, vector<32x16xf32>
      %cst_60 = arith.constant dense<0.000000e+00> : vector<3x16xf32>
      %118 = tpu.matmul %116, %117, %cst_60 {dimension_numbers = #tpu.dot_dimension_numbers<[1], [0], [0], [1], [0, 0, 1, 1], [], []>} : vector<3x32xf32>, vector<32x16xf32>, vector<3x16xf32> -> vector<3x16xf32>
      %c0_61 = arith.constant 0 : index
      %c0_62 = arith.constant 0 : index
      %119 = vector.load %arg17[%c0_61, %c0_62] : memref<1x16xf32, #tpu.memory_space<vmem>>, vector<1x16xf32>
      %120 = vector.broadcast %119 : vector<1x16xf32> to vector<3x16xf32>
      %121 = arith.addf %118, %120 : vector<3x16xf32>
      %cst_63 = arith.constant 0.000000e+00 : f32
      %122 = vector.broadcast %cst_63 : f32 to vector<3x16xf32>
      %123 = arith.maximumf %121, %122 : vector<3x16xf32>
      %c0_64 = arith.constant 0 : index
      %c0_65 = arith.constant 0 : index
      %124 = vector.load %arg18[%c0_64, %c0_65] : memref<16x128xf32, #tpu.memory_space<vmem>>, vector<16x128xf32>
      %cst_66 = arith.constant dense<0.000000e+00> : vector<3x128xf32>
      %125 = tpu.matmul %123, %124, %cst_66 {dimension_numbers = #tpu.dot_dimension_numbers<[1], [0], [0], [1], [0, 0, 1, 1], [], []>} : vector<3x16xf32>, vector<16x128xf32>, vector<3x128xf32> -> vector<3x128xf32>
      %c0_67 = arith.constant 0 : index
      %c0_68 = arith.constant 0 : index
      %126 = vector.load %arg19[%c0_67, %c0_68] : memref<1x128xf32, #tpu.memory_space<vmem>>, vector<1x128xf32>
      %127 = vector.broadcast %126 : vector<1x128xf32> to vector<3x128xf32>
      %128 = arith.addf %125, %127 : vector<3x128xf32>
      %c0_69 = arith.constant 0 : index
      %c0_70 = arith.constant 0 : index
      %129 = vector.load %arg20[%c0_69, %c0_70] : memref<3x128xf32, #tpu.memory_space<vmem>>, vector<3x128xf32>
      tpu.vector_store %arg20[%c0_69, %c0_70], %128 {strides = array<i32>} : memref<3x128xf32, #tpu.memory_space<vmem>>, vector<3x128xf32>,
    } else {
    }
    return
  }
  func.func @transform_0(%arg0: i32) -> (i32, i32) {
    %c0_i32 = arith.constant 0 : i32
    %c0_i32_0 = arith.constant 0 : i32
    return %c0_i32, %arg0 : i32, i32
  }
  func.func @transform_1(%arg0: i32) -> (i32, i32) {
    %c0_i32 = arith.constant 0 : i32
    %c0_i32_0 = arith.constant 0 : i32
    return %arg0, %c0_i32 : i32, i32
  }
  func.func @transform_2(%arg0: i32) -> (i32, i32) {
    %c0_i32 = arith.constant 0 : i32
    %c0_i32_0 = arith.constant 0 : i32
    return %arg0, %c0_i32 : i32, i32
  }
  func.func @transform_3(%arg0: i32) -> (i32, i32) {
    %c0_i32 = arith.constant 0 : i32
    %c0_i32_0 = arith.constant 0 : i32
    return %arg0, %c0_i32 : i32, i32
  }
  func.func @transform_4(%arg0: i32) -> (i32, i32) {
    %c0_i32 = arith.constant 0 : i32
    %c0_i32_0 = arith.constant 0 : i32
    %c0_i32_1 = arith.constant 0 : i32
    return %c0_i32, %c0_i32_0 : i32, i32
  }
  func.func @transform_5(%arg0: i32) -> (i32, i32) {
    %c0_i32 = arith.constant 0 : i32
    %c0_i32_0 = arith.constant 0 : i32
    %c0_i32_1 = arith.constant 0 : i32
    return %c0_i32, %c0_i32_0 : i32, i32
  }
  func.func @transform_6(%arg0: i32) -> (i32, i32) {
    %c0_i32 = arith.constant 0 : i32
    %c0_i32_0 = arith.constant 0 : i32
    %c0_i32_1 = arith.constant 0 : i32
    return %c0_i32, %c0_i32_0 : i32, i32
  }
  func.func @transform_7(%arg0: i32) -> (i32, i32) {
    %c0_i32 = arith.constant 0 : i32
    %c0_i32_0 = arith.constant 0 : i32
    %c0_i32_1 = arith.constant 0 : i32
    return %c0_i32, %c0_i32_0 : i32, i32
  }
  func.func @transform_8(%arg0: i32) -> (i32, i32) {
    %c0_i32 = arith.constant 0 : i32
    %c0_i32_0 = arith.constant 0 : i32
    %c0_i32_1 = arith.constant 0 : i32
    return %c0_i32, %c0_i32_0 : i32, i32
  }
  func.func @transform_9(%arg0: i32) -> (i32, i32) {
    %c0_i32 = arith.constant 0 : i32
    %c0_i32_0 = arith.constant 0 : i32
    %c0_i32_1 = arith.constant 0 : i32
    return %c0_i32, %c0_i32_0 : i32, i32
  }
  func.func @transform_10(%arg0: i32) -> (i32, i32) {
    %c0_i32 = arith.constant 0 : i32
    %c0_i32_0 = arith.constant 0 : i32
    %c0_i32_1 = arith.constant 0 : i32
    return %c0_i32, %c0_i32_0 : i32, i32
  }
  func.func @transform_11(%arg0: i32) -> (i32, i32) {
    %c0_i32 = arith.constant 0 : i32
    %c0_i32_0 = arith.constant 0 : i32
    %c0_i32_1 = arith.constant 0 : i32
    return %c0_i32, %c0_i32_0 : i32, i32
  }
  func.func @transform_12(%arg0: i32) -> (i32, i32) {
    %c0_i32 = arith.constant 0 : i32
    %c0_i32_0 = arith.constant 0 : i32
    %c0_i32_1 = arith.constant 0 : i32
    return %c0_i32, %c0_i32_0 : i32, i32
  }
  func.func @transform_13(%arg0: i32) -> (i32, i32) {
    %c0_i32 = arith.constant 0 : i32
    %c0_i32_0 = arith.constant 0 : i32
    %c0_i32_1 = arith.constant 0 : i32
    return %c0_i32, %c0_i32_0 : i32, i32
  }
  func.func @transform_14(%arg0: i32) -> (i32, i32) {
    %c0_i32 = arith.constant 0 : i32
    %c0_i32_0 = arith.constant 0 : i32
    %c0_i32_1 = arith.constant 0 : i32
    return %c0_i32, %c0_i32_0 : i32, i32
  }
  func.func @transform_15(%arg0: i32) -> (i32, i32) {
    %c0_i32 = arith.constant 0 : i32
    %c0_i32_0 = arith.constant 0 : i32
    %c0_i32_1 = arith.constant 0 : i32
    return %c0_i32, %c0_i32_0 : i32, i32
  }
  func.func @transform_16(%arg0: i32) -> (i32, i32) {
    %c0_i32 = arith.constant 0 : i32
    %c0_i32_0 = arith.constant 0 : i32
    %c0_i32_1 = arith.constant 0 : i32
    return %c0_i32, %c0_i32_0 : i32, i32
  }
  func.func @transform_17(%arg0: i32) -> (i32, i32) {
    %c0_i32 = arith.constant 0 : i32
    %c0_i32_0 = arith.constant 0 : i32
    %c0_i32_1 = arith.constant 0 : i32
    return %c0_i32, %c0_i32_0 : i32, i32
  }
  func.func @transform_18(%arg0: i32) -> (i32, i32) {
    %c0_i32 = arith.constant 0 : i32
    %c0_i32_0 = arith.constant 0 : i32
    %c0_i32_1 = arith.constant 0 : i32
    return %c0_i32, %c0_i32_0 : i32, i32
  }
  func.func @transform_19(%arg0: i32) -> (i32, i32) {
    %c0_i32 = arith.constant 0 : i32
    %c0_i32_0 = arith.constant 0 : i32
    %c0_i32_1 = arith.constant 0 : i32
    return %c0_i32, %c0_i32_0 : i32, i32
  }
}

</mosaic_0001>

<llo_original>
// kernel: tpu_custom_call.1
$region0: #{tpu_custom_call.1}
  #allocation0 [shape = 'u32[]', space=smem, size = 0x4, offset = 0x4, fixed_abs, tag = 'smem constant byte address 0x4 - core index']
  #allocation1 [shape = 'u32[72,128]{1,0:T(1,128)}', space=vmem, size = 0x9000, scoped, tag = 'internal scratch']
  #allocation2 [shape = 'f32[32,128]{1,0:T(8,128)}', space=vmem, size = 0x4000, scoped, tag = 'scratch operand']
  #allocation3 [shape = 'bf16[32,256]{1,0:T(8,128)(2,1)}', space=vmem, size = 0x4000, scoped, tag = 'scratch operand']
  #allocation4 [shape = 'bf16[32,256]{1,0:T(8,128)(2,1)}', space=vmem, size = 0x4000, scoped, tag = 'scratch operand']
  %s0 = inlined_call_operand.vmem [shape: s32[1,1536], index: 0, kind: input, shape index: {}]
  %s1 = inlined_call_operand.vmem [shape: s32[1536,1], index: 1, kind: input, shape index: {}]
  %s2 = inlined_call_operand.vmem [shape: s32[1536,1], index: 2, kind: input, shape index: {}]
  %s3 = inlined_call_operand.vmem [shape: bf16[1536,128], index: 3, kind: input, shape index: {}]
  %s4 = inlined_call_operand.vmem [shape: s32[1,32], index: 4, kind: input, shape index: {}]
  %s5 = inlined_call_operand.vmem [shape: s32[32,1], index: 5, kind: input, shape index: {}]
  %s6 = inlined_call_operand.vmem [shape: f32[32,128], index: 6, kind: input, shape index: {}]
  %s7 = inlined_call_operand.vmem [shape: bf16[128,256], index: 7, kind: input, shape index: {}]
  %s8 = inlined_call_operand.vmem [shape: bf16[128,256], index: 8, kind: input, shape index: {}]
  %s9 = inlined_call_operand.vmem [shape: bf16[128,256], index: 9, kind: input, shape index: {}]
  %s10 = inlined_call_operand.vmem [shape: f32[1,256], index: 10, kind: input, shape index: {}]
  %s11 = inlined_call_operand.vmem [shape: f32[1,128], index: 11, kind: input, shape index: {}]
  %s12 = inlined_call_operand.vmem [shape: f32[1,128], index: 12, kind: input, shape index: {}]
  %s13 = inlined_call_operand.vmem [shape: f32[384,32], index: 13, kind: input, shape index: {}]
  %s14 = inlined_call_operand.vmem [shape: f32[1,32], index: 14, kind: input, shape index: {}]
  %s15 = inlined_call_operand.vmem [shape: f32[32,16], index: 15, kind: input, shape index: {}]
  %s16 = inlined_call_operand.vmem [shape: f32[1,16], index: 16, kind: input, shape index: {}]
  %s17 = inlined_call_operand.vmem [shape: f32[16,128], index: 17, kind: input, shape index: {}]
  %s18 = inlined_call_operand.vmem [shape: f32[1,128], index: 18, kind: input, shape index: {}]
  %s19 = inlined_call_operand.hbm [shape: f32[3,128], index: 19, kind: output, shape index: {}]
  %s20 = sld [smem:[#allocation0]]
  $region117: #{tpu_custom_call.1} parent=0
    _
  %s22 = ssub.s32 1, %s20
  %s23 = scalar_select 0, %s22, %s20
  $region1: #{tpu_custom_call.1} parent=0
    #allocation5 [shape = 'u8[2048]{0}', space=vmem, size = 0x800, scoped, tag = 'output window, operand 0, single buffered']
    #allocation6 [shape = 's32[2]{0}', space=sflag, size = 0x8, scoped, tag = 'scoped memory for tpu_custom_call.1']
    %24 = vsyncpa [#allocation6], 0
    loop: start=0, step=1, limit=5
    $region2: #{tpu_custom_call.1} parent=1 // loop_pre_header
      _
    $region3: #{tpu_custom_call.1} parent=1 // loop_header
      %s26 = sphi 0, %s30
      %p27 = scmp.ge.s32.totalorder %s26, 5
      %s36 = sphi 0, %s38
      %s39 = sphi 0, %s36
      %s40 = sphi 0, %s39
      %s56 = sphi 0, %s40
      %s62 = sphi 0, %s64
      %s65 = sphi 0, %s62
      %s66 = sphi 0, %s65
      %s82 = sphi 0, %s66
      %s88 = sphi 0, %s90
      %s91 = sphi 0, %s88
      %s92 = sphi 0, %s91
      %s108 = sphi 0, %s92
      %s114 = sphi 0, %s116
      %s117 = sphi 0, %s114
      %s118 = sphi 0, %s117
      %s134 = sphi 0, %s118
      %s138 = sphi 0, %s138
      %s140 = sphi 0, %s138
      %s141 = sphi 0, %s140
      %s155 = sphi 0, %s141
      %s159 = sphi 0, %s159
      %s161 = sphi 0, %s159
      %s162 = sphi 0, %s161
      %s176 = sphi 0, %s162
      %s180 = sphi 0, %s180
      %s182 = sphi 0, %s180
      %s183 = sphi 0, %s182
      %s197 = sphi 0, %s183
      %s201 = sphi 0, %s201
      %s203 = sphi 0, %s201
      %s204 = sphi 0, %s203
      %s218 = sphi 0, %s204
      %s222 = sphi 0, %s222
      %s224 = sphi 0, %s222
      %s225 = sphi 0, %s224
      %s239 = sphi 0, %s225
      %s243 = sphi 0, %s243
      %s245 = sphi 0, %s243
      %s246 = sphi 0, %s245
      %s260 = sphi 0, %s246
      %s264 = sphi 0, %s264
      %s266 = sphi 0, %s264
      %s267 = sphi 0, %s266
      %s281 = sphi 0, %s267
      %s285 = sphi 0, %s285
      %s287 = sphi 0, %s285
      %s288 = sphi 0, %s287
      %s302 = sphi 0, %s288
      %s306 = sphi 0, %s306
      %s308 = sphi 0, %s306
      %s309 = sphi 0, %s308
      %s323 = sphi 0, %s309
      %s327 = sphi 0, %s327
      %s329 = sphi 0, %s327
      %s330 = sphi 0, %s329
      %s344 = sphi 0, %s330
      %s348 = sphi 0, %s348
      %s350 = sphi 0, %s348
      %s351 = sphi 0, %s350
      %s365 = sphi 0, %s351
      %s369 = sphi 0, %s369
      %s371 = sphi 0, %s369
      %s372 = sphi 0, %s371
      %s386 = sphi 0, %s372
      %s390 = sphi 0, %s390
      %s392 = sphi 0, %s390
      %s393 = sphi 0, %s392
      %s407 = sphi 0, %s393
      %s411 = sphi 0, %s411
      %s413 = sphi 0, %s411
      %s414 = sphi 0, %s413
      %s428 = sphi 0, %s414
      %s432 = sphi 0, %s432
      %s434 = sphi 0, %s432
      %s435 = sphi 0, %s434
      %s449 = sphi 0, %s435
      %s453 = sphi 0, %s453
      %s455 = sphi 0, %s453
      %s456 = sphi 0, %s455
      %s470 = sphi 0, %s456
    $region4: #{tpu_custom_call.1} parent=1 // loop_header_branch
      %29 = sbr.rel (%p27) target = $region8
    $region5: #{tpu_custom_call.1} parent=1 // loop_body
      %s31 = ssub.s32 %s26, 1
      %s32 = ssub.s32 %s26, 2
      %s33 = sadd.s32 %s26, 1
      %s34 = ssub.s32 %s26, %s33
      %p35 = scmp.eq.s32.totalorder %s34, 0
      %s37 = sadd.s32 %s36, 1
      %s38 = scalar_select %p35, %s36, %s37
      %p41 = pneg %p35
      %p42 = scmp.eq.s32.totalorder %s26, 2
      %p43 = por %p41, %p42
      %p44 = scmp.ne.s32.totalorder %s36, %s39
      %p45 = scmp.eq.s32.totalorder %s26, 0
      %p46 = por %p44, %p45
      %p47 = scmp.ne.s32.totalorder %s36, %s39
      %p48 = scmp.eq.s32.totalorder %s31, 2
      %p49 = por %p47, %p48
      %p50 = scmp.ne.s32.totalorder %s39, %s40
      %p51 = scmp.eq.s32.totalorder %s31, 0
      %p52 = por %p50, %p51
      %p53 = scmp.ne.s32.totalorder %s39, %s40
      %p54 = scmp.eq.s32.totalorder %s32, 2
      %p55 = por %p53, %p54
      %p57 = scmp.ne.s32.totalorder %s40, %s56
      %p58 = scmp.eq.s32.totalorder %s32, 0
      %p59 = por %p57, %p58
      %s60 = ssub.s32 %s26, %s33
      %p61 = scmp.eq.s32.totalorder %s60, 0
      %s63 = sadd.s32 %s62, 1
      %s64 = scalar_select %p61, %s62, %s63
      %p67 = pneg %p61
      %p68 = scmp.eq.s32.totalorder %s26, 2
      %p69 = por %p67, %p68
      %p70 = scmp.ne.s32.totalorder %s62, %s65
      %p71 = scmp.eq.s32.totalorder %s26, 0
      %p72 = por %p70, %p71
      %p73 = scmp.ne.s32.totalorder %s62, %s65
      %p74 = scmp.eq.s32.totalorder %s31, 2
      %p75 = por %p73, %p74
      %p76 = scmp.ne.s32.totalorder %s65, %s66
      %p77 = scmp.eq.s32.totalorder %s31, 0
      %p78 = por %p76, %p77
      %p79 = scmp.ne.s32.totalorder %s65, %s66
      %p80 = scmp.eq.s32.totalorder %s32, 2
      %p81 = por %p79, %p80
      %p83 = scmp.ne.s32.totalorder %s66, %s82
      %p84 = scmp.eq.s32.totalorder %s32, 0
      %p85 = por %p83, %p84
      %s86 = ssub.s32 %s26, %s33
      %p87 = scmp.eq.s32.totalorder %s86, 0
      %s89 = sadd.s32 %s88, 1
      %s90 = scalar_select %p87, %s88, %s89
      %p93 = pneg %p87
      %p94 = scmp.eq.s32.totalorder %s26, 2
      %p95 = por %p93, %p94
      %p96 = scmp.ne.s32.totalorder %s88, %s91
      %p97 = scmp.eq.s32.totalorder %s26, 0
      %p98 = por %p96, %p97
      %p99 = scmp.ne.s32.totalorder %s88, %s91
      %p100 = scmp.eq.s32.totalorder %s31, 2
      %p101 = por %p99, %p100
      %p102 = scmp.ne.s32.totalorder %s91, %s92
      %p103 = scmp.eq.s32.totalorder %s31, 0
      %p104 = por %p102, %p103
      %p105 = scmp.ne.s32.totalorder %s91, %s92
      %p106 = scmp.eq.s32.totalorder %s32, 2
      %p107 = por %p105, %p106
      %p109 = scmp.ne.s32.totalorder %s92, %s108
      %p110 = scmp.eq.s32.totalorder %s32, 0
      %p111 = por %p109, %p110
      %s112 = ssub.s32 %s26, %s33
      %p113 = scmp.eq.s32.totalorder %s112, 0
      %s115 = sadd.s32 %s114, 1
      %s116 = scalar_select %p113, %s114, %s115
      %p119 = pneg %p113
      %p120 = scmp.eq.s32.totalorder %s26, 2
      %p121 = por %p119, %p120
      %p122 = scmp.ne.s32.totalorder %s114, %s117
      %p123 = scmp.eq.s32.totalorder %s26, 0
      %p124 = por %p122, %p123
      %p125 = scmp.ne.s32.totalorder %s114, %s117
      %p126 = scmp.eq.s32.totalorder %s31, 2
      %p127 = por %p125, %p126
      %p128 = scmp.ne.s32.totalorder %s117, %s118
      %p129 = scmp.eq.s32.totalorder %s31, 0
      %p130 = por %p128, %p129
      %p131 = scmp.ne.s32.totalorder %s117, %s118
      %p132 = scmp.eq.s32.totalorder %s32, 2
      %p133 = por %p131, %p132
      %p135 = scmp.ne.s32.totalorder %s118, %s134
      %p136 = scmp.eq.s32.totalorder %s32, 0
      %p137 = por %p135, %p136
      %s139 = sadd.s32 %s138, 1
      %p142 = scmp.eq.s32.totalorder %s26, 2
      %p143 = scmp.ne.s32.totalorder %s138, %s140
      %p144 = scmp.eq.s32.totalorder %s26, 0
      %p145 = por %p143, %p144
      %p146 = scmp.ne.s32.totalorder %s138, %s140
      %p147 = scmp.eq.s32.totalorder %s31, 2
      %p148 = por %p146, %p147
      %p149 = scmp.ne.s32.totalorder %s140, %s141
      %p150 = scmp.eq.s32.totalorder %s31, 0
      %p151 = por %p149, %p150
      %p152 = scmp.ne.s32.totalorder %s140, %s141
      %p153 = scmp.eq.s32.totalorder %s32, 2
      %p154 = por %p152, %p153
      %p156 = scmp.ne.s32.totalorder %s141, %s155
      %p157 = scmp.eq.s32.totalorder %s32, 0
      %p158 = por %p156, %p157
      %s160 = sadd.s32 %s159, 1
      %p163 = scmp.eq.s32.totalorder %s26, 2
      %p164 = scmp.ne.s32.totalorder %s159, %s161
      %p165 = scmp.eq.s32.totalorder %s26, 0
      %p166 = por %p164, %p165
      %p167 = scmp.ne.s32.totalorder %s159, %s161
      %p168 = scmp.eq.s32.totalorder %s31, 2
      %p169 = por %p167, %p168
      %p170 = scmp.ne.s32.totalorder %s161, %s162
      %p171 = scmp.eq.s32.totalorder %s31, 0
      %p172 = por %p170, %p171
      %p173 = scmp.ne.s32.totalorder %s161, %s162
      %p174 = scmp.eq.s32.totalorder %s32, 2
      %p175 = por %p173, %p174
      %p177 = scmp.ne.s32.totalorder %s162, %s176
      %p178 = scmp.eq.s32.totalorder %s32, 0
      %p179 = por %p177, %p178
      %s181 = sadd.s32 %s180, 1
      %p184 = scmp.eq.s32.totalorder %s26, 2
      %p185 = scmp.ne.s32.totalorder %s180, %s182
      %p186 = scmp.eq.s32.totalorder %s26, 0
      %p187 = por %p185, %p186
      %p188 = scmp.ne.s32.totalorder %s180, %s182
      %p189 = scmp.eq.s32.totalorder %s31, 2
      %p190 = por %p188, %p189
      %p191 = scmp.ne.s32.totalorder %s182, %s183
      %p192 = scmp.eq.s32.totalorder %s31, 0
      %p193 = por %p191, %p192
      %p194 = scmp.ne.s32.totalorder %s182, %s183
      %p195 = scmp.eq.s32.totalorder %s32, 2
      %p196 = por %p194, %p195
      %p198 = scmp.ne.s32.totalorder %s183, %s197
      %p199 = scmp.eq.s32.totalorder %s32, 0
      %p200 = por %p198, %p199
      %s202 = sadd.s32 %s201, 1
      %p205 = scmp.eq.s32.totalorder %s26, 2
      %p206 = scmp.ne.s32.totalorder %s201, %s203
      %p207 = scmp.eq.s32.totalorder %s26, 0
      %p208 = por %p206, %p207
      %p209 = scmp.ne.s32.totalorder %s201, %s203
      %p210 = scmp.eq.s32.totalorder %s31, 2
      %p211 = por %p209, %p210
      %p212 = scmp.ne.s32.totalorder %s203, %s204
      %p213 = scmp.eq.s32.totalorder %s31, 0
      %p214 = por %p212, %p213
      %p215 = scmp.ne.s32.totalorder %s203, %s204
      %p216 = scmp.eq.s32.totalorder %s32, 2
      %p217 = por %p215, %p216
      %p219 = scmp.ne.s32.totalorder %s204, %s218
      %p220 = scmp.eq.s32.totalorder %s32, 0
      %p221 = por %p219, %p220
      %s223 = sadd.s32 %s222, 1
      %p226 = scmp.eq.s32.totalorder %s26, 2
      %p227 = scmp.ne.s32.totalorder %s222, %s224
      %p228 = scmp.eq.s32.totalorder %s26, 0
      %p229 = por %p227, %p228
      %p230 = scmp.ne.s32.totalorder %s222, %s224
      %p231 = scmp.eq.s32.totalorder %s31, 2
      %p232 = por %p230, %p231
      %p233 = scmp.ne.s32.totalorder %s224, %s225
      %p234 = scmp.eq.s32.totalorder %s31, 0
      %p235 = por %p233, %p234
      %p236 = scmp.ne.s32.totalorder %s224, %s225
      %p237 = scmp.eq.s32.totalorder %s32, 2
      %p238 = por %p236, %p237
      %p240 = scmp.ne.s32.totalorder %s225, %s239
      %p241 = scmp.eq.s32.totalorder %s32, 0
      %p242 = por %p240, %p241
      %s244 = sadd.s32 %s243, 1
      %p247 = scmp.eq.s32.totalorder %s26, 2
      %p248 = scmp.ne.s32.totalorder %s243, %s245
      %p249 = scmp.eq.s32.totalorder %s26, 0
      %p250 = por %p248, %p249
      %p251 = scmp.ne.s32.totalorder %s243, %s245
      %p252 = scmp.eq.s32.totalorder %s31, 2
      %p253 = por %p251, %p252
      %p254 = scmp.ne.s32.totalorder %s245, %s246
      %p255 = scmp.eq.s32.totalorder %s31, 0
      %p256 = por %p254, %p255
      %p257 = scmp.ne.s32.totalorder %s245, %s246
      %p258 = scmp.eq.s32.totalorder %s32, 2
      %p259 = por %p257, %p258
      %p261 = scmp.ne.s32.totalorder %s246, %s260
      %p262 = scmp.eq.s32.totalorder %s32, 0
      %p263 = por %p261, %p262
      %s265 = sadd.s32 %s264, 1
      %p268 = scmp.eq.s32.totalorder %s26, 2
      %p269 = scmp.ne.s32.totalorder %s264, %s266
      %p270 = scmp.eq.s32.totalorder %s26, 0
      %p271 = por %p269, %p270
      %p272 = scmp.ne.s32.totalorder %s264, %s266
      %p273 = scmp.eq.s32.totalorder %s31, 2
      %p274 = por %p272, %p273
      %p275 = scmp.ne.s32.totalorder %s266, %s267
      %p276 = scmp.eq.s32.totalorder %s31, 0
      %p277 = por %p275, %p276
      %p278 = scmp.ne.s32.totalorder %s266, %s267
      %p279 = scmp.eq.s32.totalorder %s32, 2
      %p280 = por %p278, %p279
      %p282 = scmp.ne.s32.totalorder %s267, %s281
      %p283 = scmp.eq.s32.totalorder %s32, 0
      %p284 = por %p282, %p283
      %s286 = sadd.s32 %s285, 1
      %p289 = scmp.eq.s32.totalorder %s26, 2
      %p290 = scmp.ne.s32.totalorder %s285, %s287
      %p291 = scmp.eq.s32.totalorder %s26, 0
      %p292 = por %p290, %p291
      %p293 = scmp.ne.s32.totalorder %s285, %s287
      %p294 = scmp.eq.s32.totalorder %s31, 2
      %p295 = por %p293, %p294
      %p296 = scmp.ne.s32.totalorder %s287, %s288
      %p297 = scmp.eq.s32.totalorder %s31, 0
      %p298 = por %p296, %p297
      %p299 = scmp.ne.s32.totalorder %s287, %s288
      %p300 = scmp.eq.s32.totalorder %s32, 2
      %p301 = por %p299, %p300
      %p303 = scmp.ne.s32.totalorder %s288, %s302
      %p304 = scmp.eq.s32.totalorder %s32, 0
      %p305 = por %p303, %p304
      %s307 = sadd.s32 %s306, 1
      %p310 = scmp.eq.s32.totalorder %s26, 2
      %p311 = scmp.ne.s32.totalorder %s306, %s308
      %p312 = scmp.eq.s32.totalorder %s26, 0
      %p313 = por %p311, %p312
      %p314 = scmp.ne.s32.totalorder %s306, %s308
      %p315 = scmp.eq.s32.totalorder %s31, 2
      %p316 = por %p314, %p315
      %p317 = scmp.ne.s32.totalorder %s308, %s309
      %p318 = scmp.eq.s32.totalorder %s31, 0
      %p319 = por %p317, %p318
      %p320 = scmp.ne.s32.totalorder %s308, %s309
      %p321 = scmp.eq.s32.totalorder %s32, 2
      %p322 = por %p320, %p321
      %p324 = scmp.ne.s32.totalorder %s309, %s323
      %p325 = scmp.eq.s32.totalorder %s32, 0
      %p326 = por %p324, %p325
      %s328 = sadd.s32 %s327, 1
      %p331 = scmp.eq.s32.totalorder %s26, 2
      %p332 = scmp.ne.s32.totalorder %s327, %s329
      %p333 = scmp.eq.s32.totalorder %s26, 0
      %p334 = por %p332, %p333
      %p335 = scmp.ne.s32.totalorder %s327, %s329
      %p336 = scmp.eq.s32.totalorder %s31, 2
      %p337 = por %p335, %p336
      %p338 = scmp.ne.s32.totalorder %s329, %s330
      %p339 = scmp.eq.s32.totalorder %s31, 0
      %p340 = por %p338, %p339
      %p341 = scmp.ne.s32.totalorder %s329, %s330
      %p342 = scmp.eq.s32.totalorder %s32, 2
      %p343 = por %p341, %p342
      %p345 = scmp.ne.s32.totalorder %s330, %s344
      %p346 = scmp.eq.s32.totalorder %s32, 0
      %p347 = por %p345, %p346
      %s349 = sadd.s32 %s348, 1
      %p352 = scmp.eq.s32.totalorder %s26, 2
      %p353 = scmp.ne.s32.totalorder %s348, %s350
      %p354 = scmp.eq.s32.totalorder %s26, 0
      %p355 = por %p353, %p354
      %p356 = scmp.ne.s32.totalorder %s348, %s350
      %p357 = scmp.eq.s32.totalorder %s31, 2
      %p358 = por %p356, %p357
      %p359 = scmp.ne.s32.totalorder %s350, %s351
      %p360 = scmp.eq.s32.totalorder %s31, 0
      %p361 = por %p359, %p360
      %p362 = scmp.ne.s32.totalorder %s350, %s351
      %p363 = scmp.eq.s32.totalorder %s32, 2
      %p364 = por %p362, %p363
      %p366 = scmp.ne.s32.totalorder %s351, %s365
      %p367 = scmp.eq.s32.totalorder %s32, 0
      %p368 = por %p366, %p367
      %s370 = sadd.s32 %s369, 1
      %p373 = scmp.eq.s32.totalorder %s26, 2
      %p374 = scmp.ne.s32.totalorder %s369, %s371
      %p375 = scmp.eq.s32.totalorder %s26, 0
      %p376 = por %p374, %p375
      %p377 = scmp.ne.s32.totalorder %s369, %s371
      %p378 = scmp.eq.s32.totalorder %s31, 2
      %p379 = por %p377, %p378
      %p380 = scmp.ne.s32.totalorder %s371, %s372
      %p381 = scmp.eq.s32.totalorder %s31, 0
      %p382 = por %p380, %p381
      %p383 = scmp.ne.s32.totalorder %s371, %s372
      %p384 = scmp.eq.s32.totalorder %s32, 2
      %p385 = por %p383, %p384
      %p387 = scmp.ne.s32.totalorder %s372, %s386
      %p388 = scmp.eq.s32.totalorder %s32, 0
      %p389 = por %p387, %p388
      %s391 = sadd.s32 %s390, 1
      %p394 = scmp.eq.s32.totalorder %s26, 2
      %p395 = scmp.ne.s32.totalorder %s390, %s392
      %p396 = scmp.eq.s32.totalorder %s26, 0
      %p397 = por %p395, %p396
      %p398 = scmp.ne.s32.totalorder %s390, %s392
      %p399 = scmp.eq.s32.totalorder %s31, 2
      %p400 = por %p398, %p399
      %p401 = scmp.ne.s32.totalorder %s392, %s393
      %p402 = scmp.eq.s32.totalorder %s31, 0
      %p403 = por %p401, %p402
      %p404 = scmp.ne.s32.totalorder %s392, %s393
      %p405 = scmp.eq.s32.totalorder %s32, 2
      %p406 = por %p404, %p405
      %p408 = scmp.ne.s32.totalorder %s393, %s407
      %p409 = scmp.eq.s32.totalorder %s32, 0
      %p410 = por %p408, %p409
      %s412 = sadd.s32 %s411, 1
      %p415 = scmp.eq.s32.totalorder %s26, 2
      %p416 = scmp.ne.s32.totalorder %s411, %s413
      %p417 = scmp.eq.s32.totalorder %s26, 0
      %p418 = por %p416, %p417
      %p419 = scmp.ne.s32.totalorder %s411, %s413
      %p420 = scmp.eq.s32.totalorder %s31, 2
      %p421 = por %p419, %p420
      %p422 = scmp.ne.s32.totalorder %s413, %s414
      %p423 = scmp.eq.s32.totalorder %s31, 0
      %p424 = por %p422, %p423
      %p425 = scmp.ne.s32.totalorder %s413, %s414
      %p426 = scmp.eq.s32.totalorder %s32, 2
      %p427 = por %p425, %p426
      %p429 = scmp.ne.s32.totalorder %s414, %s428
      %p430 = scmp.eq.s32.totalorder %s32, 0
      %p431 = por %p429, %p430
      %s433 = sadd.s32 %s432, 1
      %p436 = scmp.eq.s32.totalorder %s26, 2
      %p437 = scmp.ne.s32.totalorder %s432, %s434
      %p438 = scmp.eq.s32.totalorder %s26, 0
      %p439 = por %p437, %p438
      %p440 = scmp.ne.s32.totalorder %s432, %s434
      %p441 = scmp.eq.s32.totalorder %s31, 2
      %p442 = por %p440, %p441
      %p443 = scmp.ne.s32.totalorder %s434, %s435
      %p444 = scmp.eq.s32.totalorder %s31, 0
      %p445 = por %p443, %p444
      %p446 = scmp.ne.s32.totalorder %s434, %s435
      %p447 = scmp.eq.s32.totalorder %s32, 2
      %p448 = por %p446, %p447
      %p450 = scmp.ne.s32.totalorder %s435, %s449
      %p451 = scmp.eq.s32.totalorder %s32, 0
      %p452 = por %p450, %p451
      %s454 = sadd.s32 %s453, 1
      %p457 = scmp.eq.s32.totalorder %s26, 2
      %p458 = scmp.ne.s32.totalorder %s453, %s455
      %p459 = scmp.eq.s32.totalorder %s26, 0
      %p460 = por %p458, %p459
      %p461 = scmp.ne.s32.totalorder %s453, %s455
      %p462 = scmp.eq.s32.totalorder %s31, 2
      %p463 = por %p461, %p462
      %p464 = scmp.ne.s32.totalorder %s455, %s456
      %p465 = scmp.eq.s32.totalorder %s31, 0
      %p466 = por %p464, %p465
      %p467 = scmp.ne.s32.totalorder %s455, %s456
      %p468 = scmp.eq.s32.totalorder %s32, 2
      %p469 = por %p467, %p468
      %p471 = scmp.ne.s32.totalorder %s456, %s470
      %p472 = scmp.eq.s32.totalorder %s32, 0
      %p473 = por %p471, %p472
      %p474 = scmp.le.s32.totalorder 1, %s26
      %p475 = scmp.lt.s32.totalorder %s26, 4
      %p476 = pnand %p474, %p475
      %p477 = pneg %p476
      // Predicated region
      $region9: #{tpu_custom_call.1} parent=5 // pred_check
        _
      $region10: #{tpu_custom_call.1} parent=5 // pred_check_branch
        %479 = sbr.rel (%p476) target = $region12
      $region11: #{tpu_custom_call.1} parent=5 // pred_region
        %s480 = ssub.s32 %s26, 1
        // Predicated region
        $region13: #{tpu_custom_call.1} parent=11 // pred_check
          %p481 = pneg %p151
        $region14: #{tpu_custom_call.1} parent=11 // pred_check_branch
          %483 = sbr.rel (%p481) target = $region16
        $region15: #{tpu_custom_call.1} parent=11 // pred_region
          _
        $region16: #{tpu_custom_call.1} parent=11 // pred_fallthru
          _
        // Predicated region
        $region17: #{tpu_custom_call.1} parent=11 // pred_check
          %p484 = pneg %p172
        $region18: #{tpu_custom_call.1} parent=11 // pred_check_branch
          %486 = sbr.rel (%p484) target = $region20
        $region19: #{tpu_custom_call.1} parent=11 // pred_region
          _
        $region20: #{tpu_custom_call.1} parent=11 // pred_fallthru
          _
        // Predicated region
        $region21: #{tpu_custom_call.1} parent=11 // pred_check
          %p487 = pneg %p193
        $region22: #{tpu_custom_call.1} parent=11 // pred_check_branch
          %489 = sbr.rel (%p487) target = $region24
        $region23: #{tpu_custom_call.1} parent=11 // pred_region
          _
        $region24: #{tpu_custom_call.1} parent=11 // pred_fallthru
          _
        // Predicated region
        $region25: #{tpu_custom_call.1} parent=11 // pred_check
          %p490 = pneg %p214
        $region26: #{tpu_custom_call.1} parent=11 // pred_check_branch
          %492 = sbr.rel (%p490) target = $region28
        $region27: #{tpu_custom_call.1} parent=11 // pred_region
          _
        $region28: #{tpu_custom_call.1} parent=11 // pred_fallthru
          _
        // Predicated region
        $region29: #{tpu_custom_call.1} parent=11 // pred_check
          %p493 = pneg %p235
        $region30: #{tpu_custom_call.1} parent=11 // pred_check_branch
          %495 = sbr.rel (%p493) target = $region32
        $region31: #{tpu_custom_call.1} parent=11 // pred_region
          _
        $region32: #{tpu_custom_call.1} parent=11 // pred_fallthru
          _
        // Predicated region
        $region33: #{tpu_custom_call.1} parent=11 // pred_check
          %p496 = pneg %p256
        $region34: #{tpu_custom_call.1} parent=11 // pred_check_branch
          %498 = sbr.rel (%p496) target = $region36
        $region35: #{tpu_custom_call.1} parent=11 // pred_region
          _
        $region36: #{tpu_custom_call.1} parent=11 // pred_fallthru
          _
        // Predicated region
        $region37: #{tpu_custom_call.1} parent=11 // pred_check
          %p499 = pneg %p277
        $region38: #{tpu_custom_call.1} parent=11 // pred_check_branch
          %501 = sbr.rel (%p499) target = $region40
        $region39: #{tpu_custom_call.1} parent=11 // pred_region
          _
        $region40: #{tpu_custom_call.1} parent=11 // pred_fallthru
          _
        // Predicated region
        $region41: #{tpu_custom_call.1} parent=11 // pred_check
          %p502 = pneg %p298
        $region42: #{tpu_custom_call.1} parent=11 // pred_check_branch
          %504 = sbr.rel (%p502) target = $region44
        $region43: #{tpu_custom_call.1} parent=11 // pred_region
          _
        $region44: #{tpu_custom_call.1} parent=11 // pred_fallthru
          _
        // Predicated region
        $region45: #{tpu_custom_call.1} parent=11 // pred_check
          %p505 = pneg %p319
        $region46: #{tpu_custom_call.1} parent=11 // pred_check_branch
          %507 = sbr.rel (%p505) target = $region48
        $region47: #{tpu_custom_call.1} parent=11 // pred_region
          _
        $region48: #{tpu_custom_call.1} parent=11 // pred_fallthru
          _
        // Predicated region
        $region49: #{tpu_custom_call.1} parent=11 // pred_check
          %p508 = pneg %p340
        $region50: #{tpu_custom_call.1} parent=11 // pred_check_branch
          %510 = sbr.rel (%p508) target = $region52
        $region51: #{tpu_custom_call.1} parent=11 // pred_region
          _
        $region52: #{tpu_custom_call.1} parent=11 // pred_fallthru
          _
        // Predicated region
        $region53: #{tpu_custom_call.1} parent=11 // pred_check
          %p511 = pneg %p361
        $region54: #{tpu_custom_call.1} parent=11 // pred_check_branch
          %513 = sbr.rel (%p511) target = $region56
        $region55: #{tpu_custom_call.1} parent=11 // pred_region
          _
        $region56: #{tpu_custom_call.1} parent=11 // pred_fallthru
          _
        // Predicated region
        $region57: #{tpu_custom_call.1} parent=11 // pred_check
          %p514 = pneg %p382
        $region58: #{tpu_custom_call.1} parent=11 // pred_check_branch
          %516 = sbr.rel (%p514) target = $region60
        $region59: #{tpu_custom_call.1} parent=11 // pred_region
          _
        $region60: #{tpu_custom_call.1} parent=11 // pred_fallthru
          _
        // Predicated region
        $region61: #{tpu_custom_call.1} parent=11 // pred_check
          %p517 = pneg %p403
        $region62: #{tpu_custom_call.1} parent=11 // pred_check_branch
          %519 = sbr.rel (%p517) target = $region64
        $region63: #{tpu_custom_call.1} parent=11 // pred_region
          _
        $region64: #{tpu_custom_call.1} parent=11 // pred_fallthru
          _
        // Predicated region
        $region65: #{tpu_custom_call.1} parent=11 // pred_check
          %p520 = pneg %p424
        $region66: #{tpu_custom_call.1} parent=11 // pred_check_branch
          %522 = sbr.rel (%p520) target = $region68
        $region67: #{tpu_custom_call.1} parent=11 // pred_region
          _
        $region68: #{tpu_custom_call.1} parent=11 // pred_fallthru
          _
        // Predicated region
        $region69: #{tpu_custom_call.1} parent=11 // pred_check
          %p523 = pneg %p445
        $region70: #{tpu_custom_call.1} parent=11 // pred_check_branch
          %525 = sbr.rel (%p523) target = $region72
        $region71: #{tpu_custom_call.1} parent=11 // pred_region
          _
        $region72: #{tpu_custom_call.1} parent=11 // pred_fallthru
          _
      $region12: #{tpu_custom_call.1} parent=5 // pred_fallthru
        _
      %p526 = scmp.lt.s32.totalorder %s26, 3
      // Predicated region
      $region73: #{tpu_custom_call.1} parent=5 // pred_check
        %p527 = pneg %p526
      $region74: #{tpu_custom_call.1} parent=5 // pred_check_branch
        %529 = sbr.rel (%p527) target = $region76
      $region75: #{tpu_custom_call.1} parent=5 // pred_region
        // Predicated region
        $region77: #{tpu_custom_call.1} parent=75 // pred_check
          %p530 = pneg %p46
        $region78: #{tpu_custom_call.1} parent=75 // pred_check_branch
          %532 = sbr.rel (%p530) target = $region80
        $region79: #{tpu_custom_call.1} parent=75 // pred_region
          %s533 = smul.u32 4, %s26
          %p534 = scmp.lt.s32.totalorder %s533, 11
          %s535 = scalar_select %p534, %s533, 11
          %s536 = scalar_lea.vmem %s0, %s535
          %s537 = smul.u32 4, %s26
        $region80: #{tpu_custom_call.1} parent=75 // pred_fallthru
          _
        // Predicated region
        $region81: #{tpu_custom_call.1} parent=75 // pred_check
          %p538 = pneg %p72
        $region82: #{tpu_custom_call.1} parent=75 // pred_check_branch
          %540 = sbr.rel (%p538) target = $region84
        $region83: #{tpu_custom_call.1} parent=75 // pred_region
          %s541 = smul.u32 64, %s26
          %p542 = scmp.lt.s32.totalorder %s541, 191
          %s543 = scalar_select %p542, %s541, 191
          %s544 = smul.addr %s543, 8
          %s545 = scalar_lea.vmem %s1, %s544
          %s546 = smul.u32 64, %s26
        $region84: #{tpu_custom_call.1} parent=75 // pred_fallthru
          _
        // Predicated region
        $region85: #{tpu_custom_call.1} parent=75 // pred_check
          %p547 = pneg %p98
        $region86: #{tpu_custom_call.1} parent=75 // pred_check_branch
          %549 = sbr.rel (%p547) target = $region88
        $region87: #{tpu_custom_call.1} parent=75 // pred_region
          %s550 = smul.u32 64, %s26
          %p551 = scmp.lt.s32.totalorder %s550, 191
          %s552 = scalar_select %p551, %s550, 191
          %s553 = smul.addr %s552, 8
          %s554 = scalar_lea.vmem %s2, %s553
          %s555 = smul.u32 64, %s26
        $region88: #{tpu_custom_call.1} parent=75 // pred_fallthru
          _
        // Predicated region
        $region89: #{tpu_custom_call.1} parent=75 // pred_check
          %p556 = pneg %p124
        $region90: #{tpu_custom_call.1} parent=75 // pred_check_branch
          %558 = sbr.rel (%p556) target = $region92
        $region91: #{tpu_custom_call.1} parent=75 // pred_region
          %s559 = smul.u32 64, %s26
          %p560 = scmp.lt.s32.totalorder %s559, 191
          %s561 = scalar_select %p560, %s559, 191
          %s562 = smul.addr %s561, 4
          %s563 = scalar_lea.vmem %s3, %s562
          %s564 = smul.u32 64, %s26
        $region92: #{tpu_custom_call.1} parent=75 // pred_fallthru
          _
      $region76: #{tpu_custom_call.1} parent=5 // pred_fallthru
        _
      %p565 = scmp.le.s32.totalorder 1, %s26
      %p566 = scmp.lt.s32.totalorder %s26, 4
      %p567 = pnand %p565, %p566
      %p568 = pneg %p567
      // Predicated region
      $region93: #{tpu_custom_call.1} parent=5 // pred_check
        _
      $region94: #{tpu_custom_call.1} parent=5 // pred_check_branch
        %570 = sbr.rel (%p567) target = $region96
      $region95: #{tpu_custom_call.1} parent=5 // pred_region
        %s571 = ssub.s32 %s26, 1
        %s572 = smul.u32 4, %s31
        %p573 = scmp.lt.s32.totalorder %s572, 11
        %s574 = scalar_select %p573, %s572, 11
        %s575 = scalar_lea.vmem %s0, %s574
        %p576 = pneg %p52
        %p577 = pneg %p49
        %s578 = smul.u32 64, %s31
        %p579 = scmp.lt.s32.totalorder %s578, 191
        %s580 = scalar_select %p579, %s578, 191
        %s581 = smul.addr %s580, 8
        %s582 = scalar_lea.vmem %s1, %s581
        %p583 = pneg %p78
        %p584 = pneg %p75
        %s585 = smul.u32 64, %s31
        %p586 = scmp.lt.s32.totalorder %s585, 191
        %s587 = scalar_select %p586, %s585, 191
        %s588 = smul.addr %s587, 8
        %s589 = scalar_lea.vmem %s2, %s588
        %p590 = pneg %p104
        %p591 = pneg %p101
        %s592 = smul.u32 64, %s31
        %p593 = scmp.lt.s32.totalorder %s592, 191
        %s594 = scalar_select %p593, %s592, 191
        %s595 = smul.addr %s594, 4
        %s596 = scalar_lea.vmem %s3, %s595
        %p597 = pneg %p130
        %p598 = pneg %p127
        %p599 = pneg %p151
        %p600 = pneg %p148
        %p601 = pneg %p172
        %p602 = pneg %p169
        %p603 = pneg %p193
        %p604 = pneg %p190
        %p605 = pneg %p214
        %p606 = pneg %p211
        %p607 = pneg %p235
        %p608 = pneg %p232
        %p609 = pneg %p256
        %p610 = pneg %p253
        %p611 = pneg %p277
        %p612 = pneg %p274
        %p613 = pneg %p298
        %p614 = pneg %p295
        %p615 = pneg %p319
        %p616 = pneg %p316
        %p617 = pneg %p340
        %p618 = pneg %p337
        %p619 = pneg %p361
        %p620 = pneg %p358
        %p621 = pneg %p382
        %p622 = pneg %p379
        %p623 = pneg %p403
        %p624 = pneg %p400
        %p625 = pneg %p424
        %p626 = pneg %p421
        %p627 = pneg %p445
        %p628 = pneg %p442
        %p629 = pneg %p466
        %p630 = pneg %p463
        %s631 = smul.u32 4, %s31
        %p632 = scmp.lt.s32.totalorder %s631, 11
        %s633 = scalar_select %p632, %s631, 11
        %s634 = scalar_lea.vmem %s0, %s633
        %s635 = smul.u32 4, %s31
        %s636 = smul.u32 64, %s31
        %p637 = scmp.lt.s32.totalorder %s636, 191
        %s638 = scalar_select %p637, %s636, 191
        %s639 = smul.addr %s638, 8
        %s640 = scalar_lea.vmem %s1, %s639
        %s641 = smul.u32 64, %s31
        %s642 = smul.u32 64, %s31
        %p643 = scmp.lt.s32.totalorder %s642, 191
        %s644 = scalar_select %p643, %s642, 191
        %s645 = smul.addr %s644, 8
        %s646 = scalar_lea.vmem %s2, %s645
        %s647 = smul.u32 64, %s31
        %s648 = smul.u32 64, %s31
        %p649 = scmp.lt.s32.totalorder %s648, 191
        %s650 = scalar_select %p649, %s648, 191
        %s651 = smul.addr %s650, 4
        %s652 = scalar_lea.vmem %s3, %s651
        %s653 = smul.u32 64, %s31
        %p655 = scmp.eq.s32.totalorder %s31, 0
        // Predicated region
        $region97: #{tpu_custom_call.1} parent=95 // pred_check
          %p656 = pneg %p655
        $region98: #{tpu_custom_call.1} parent=95 // pred_check_branch
          %658 = sbr.rel (%p656) target = $region100
        $region99: #{tpu_custom_call.1} parent=95 // pred_region
          %659 = vst [vmem:[#allocation2] sm:$0xff] 0.0
          %660 = vst [vmem:[#allocation2 + $0x8] sm:$0xff] 0.0
          %661 = vst [vmem:[#allocation2 + $0x10] sm:$0xff] 0.0
          %662 = vst [vmem:[#allocation2 + $0x18] sm:$0xff] 0.0
          %v663 = vld [vmem:[%s6] sm:$0xff]
          %v664 = vld [vmem:[%s6 + $0x8] sm:$0xff]
          %v665 = vld [vmem:[%s6 + $0x10] sm:$0xff]
          %v666 = vld [vmem:[%s6 + $0x18] sm:$0xff]
          %v667 = vpack.c.bf16 %v664, %v663
          %v668 = vpack.c.bf16 %v666, %v665
          %v669 = vld [vmem:[%s7] sm:$0xff]
          %v670 = vld [vmem:[%s7 + $0x8] sm:$0xff]
          %v671 = vld [vmem:[%s7 + $0x10] sm:$0xff]
          %v672 = vld [vmem:[%s7 + $0x18] sm:$0xff]
          %v673 = vld [vmem:[%s7 + $0x20] sm:$0xff]
          %v674 = vld [vmem:[%s7 + $0x28] sm:$0xff]
          %v675 = vld [vmem:[%s7 + $0x30] sm:$0xff]
          %v676 = vld [vmem:[%s7 + $0x38] sm:$0xff]
          %v677 = vld [vmem:[%s7 + $0x40] sm:$0xff]
          %v678 = vld [vmem:[%s7 + $0x48] sm:$0xff]
          %v679 = vld [vmem:[%s7 + $0x50] sm:$0xff]
          %v680 = vld [vmem:[%s7 + $0x58] sm:$0xff]
          %v681 = vld [vmem:[%s7 + $0x60] sm:$0xff]
          %v682 = vld [vmem:[%s7 + $0x68] sm:$0xff]
          %v683 = vld [vmem:[%s7 + $0x70] sm:$0xff]
          %v684 = vld [vmem:[%s7 + $0x78] sm:$0xff]
          %v701 = vunpack.c.l.b16 %v669
          %v702 = vunpack.c.h.b16 %v669
          %v703 = vunpack.c.l.b16 %v670
          %v704 = vunpack.c.h.b16 %v670
          %v705 = vunpack.c.l.b16 %v671
          %v706 = vunpack.c.h.b16 %v671
          %v707 = vunpack.c.l.b16 %v672
          %v708 = vunpack.c.h.b16 %v672
          %v709 = vunpack.c.l.b16 %v673
          %v710 = vunpack.c.h.b16 %v673
          %v711 = vunpack.c.l.b16 %v674
          %v712 = vunpack.c.h.b16 %v674
          %v713 = vunpack.c.l.b16 %v675
          %v714 = vunpack.c.h.b16 %v675
          %v715 = vunpack.c.l.b16 %v676
          %v716 = vunpack.c.h.b16 %v676
          %v717 = vunpack.c.l.b16 %v677
          %v718 = vunpack.c.h.b16 %v677
          %v719 = vunpack.c.l.b16 %v678
          %v720 = vunpack.c.h.b16 %v678
          %v721 = vunpack.c.l.b16 %v679
          %v722 = vunpack.c.h.b16 %v679
          %v723 = vunpack.c.l.b16 %v680
          %v724 = vunpack.c.h.b16 %v680
          %v725 = vunpack.c.l.b16 %v681
          %v726 = vunpack.c.h.b16 %v681
          %v727 = vunpack.c.l.b16 %v682
          %v728 = vunpack.c.h.b16 %v682
          %v729 = vunpack.c.l.b16 %v683
          %v730 = vunpack.c.h.b16 %v683
          %v731 = vunpack.c.l.b16 %v684
          %v732 = vunpack.c.h.b16 %v684
          %v733 = vpack.c.b16 %v703, %v701
          %v734 = vpack.c.b16 %v704, %v702
          %v735 = vpack.c.b16 %v707, %v705
          %v736 = vpack.c.b16 %v708, %v706
          %v737 = vpack.c.b16 %v711, %v709
          %v738 = vpack.c.b16 %v712, %v710
          %v739 = vpack.c.b16 %v715, %v713
          %v740 = vpack.c.b16 %v716, %v714
          %v741 = vpack.c.b16 %v719, %v717
          %v742 = vpack.c.b16 %v720, %v718
          %v743 = vpack.c.b16 %v723, %v721
          %v744 = vpack.c.b16 %v724, %v722
          %v745 = vpack.c.b16 %v727, %v725
          %v746 = vpack.c.b16 %v728, %v726
          %v747 = vpack.c.b16 %v731, %v729
          %v748 = vpack.c.b16 %v732, %v730
          %765 = vmatpush.bf16.msra.mxu0 %v747
          %766 = vmatpush.bf16.msra.mxu0 %v745
          %767 = vmatpush.bf16.msra.mxu0 %v743
          %768 = vmatpush.bf16.msra.mxu0 %v741
          %769 = vmatpush.bf16.msra.mxu0 %v739
          %770 = vmatpush.bf16.msra.mxu0 %v737
          %771 = vmatpush.bf16.msra.mxu0 %v735
          %772 = vmatpush.bf16.msra.mxu0 %v733
          %773 = vmatmul.bf16.gmra.mxu0 %v667
          %v774 = vpop.f32.mrf.mxu0
          %v775 = vadd.f32 0.0, %v774
          %v776 = vpop.f32.mrf.mxu0
          %v777 = vadd.f32 0.0, %v776
          %778 = vmatmul.bf16.gmra.mxu0 %v668
          %v779 = vpop.f32.mrf.mxu0
          %v780 = vadd.f32 0.0, %v779
          %v781 = vpop.f32.mrf.mxu0
          %v782 = vadd.f32 0.0, %v781
          %783 = vdwg.mxu0
          %784 = vmatpush.bf16.msra.mxu0 %v748
          %785 = vmatpush.bf16.msra.mxu0 %v746
          %786 = vmatpush.bf16.msra.mxu0 %v744
          %787 = vmatpush.bf16.msra.mxu0 %v742
          %788 = vmatpush.bf16.msra.mxu0 %v740
          %789 = vmatpush.bf16.msra.mxu0 %v738
          %790 = vmatpush.bf16.msra.mxu0 %v736
          %791 = vmatpush.bf16.msra.mxu0 %v734
          %792 = vmatmul.bf16.gmra.mxu0 %v667
          %v793 = vpop.f32.mrf.mxu0
          %v794 = vadd.f32 0.0, %v793
          %v795 = vpop.f32.mrf.mxu0
          %v796 = vadd.f32 0.0, %v795
          %797 = vmatmul.bf16.gmra.mxu0 %v668
          %v798 = vpop.f32.mrf.mxu0
          %v799 = vadd.f32 0.0, %v798
          %v800 = vpop.f32.mrf.mxu0
          %v801 = vadd.f32 0.0, %v800
          %802 = vdwg.mxu0
          %v803 = vpack.c.bf16 %v794, %v775
          %v804 = vpack.c.bf16 %v796, %v777
          %v805 = vpack.c.bf16 %v799, %v780
          %v806 = vpack.c.bf16 %v801, %v782
          %807 = vst [vmem:[#allocation3] sm:$0xff] %v803
          %808 = vst [vmem:[#allocation3 + $0x8] sm:$0xff] %v804
          %809 = vst [vmem:[#allocation3 + $0x10] sm:$0xff] %v805
          %810 = vst [vmem:[#allocation3 + $0x18] sm:$0xff] %v806
          %v811 = vld [vmem:[%s8] sm:$0xff]
          %v812 = vld [vmem:[%s8 + $0x8] sm:$0xff]
          %v813 = vld [vmem:[%s8 + $0x10] sm:$0xff]
          %v814 = vld [vmem:[%s8 + $0x18] sm:$0xff]
          %v815 = vld [vmem:[%s8 + $0x20] sm:$0xff]
          %v816 = vld [vmem:[%s8 + $0x28] sm:$0xff]
          %v817 = vld [vmem:[%s8 + $0x30] sm:$0xff]
          %v818 = vld [vmem:[%s8 + $0x38] sm:$0xff]
          %v819 = vld [vmem:[%s8 + $0x40] sm:$0xff]
          %v820 = vld [vmem:[%s8 + $0x48] sm:$0xff]
          %v821 = vld [vmem:[%s8 + $0x50] sm:$0xff]
          %v822 = vld [vmem:[%s8 + $0x58] sm:$0xff]
          %v823 = vld [vmem:[%s8 + $0x60] sm:$0xff]
          %v824 = vld [vmem:[%s8 + $0x68] sm:$0xff]
          %v825 = vld [vmem:[%s8 + $0x70] sm:$0xff]
          %v826 = vld [vmem:[%s8 + $0x78] sm:$0xff]
          %v843 = vunpack.c.l.b16 %v811
          %v844 = vunpack.c.h.b16 %v811
          %v845 = vunpack.c.l.b16 %v812
          %v846 = vunpack.c.h.b16 %v812
          %v847 = vunpack.c.l.b16 %v813
          %v848 = vunpack.c.h.b16 %v813
          %v849 = vunpack.c.l.b16 %v814
          %v850 = vunpack.c.h.b16 %v814
          %v851 = vunpack.c.l.b16 %v815
          %v852 = vunpack.c.h.b16 %v815
          %v853 = vunpack.c.l.b16 %v816
          %v854 = vunpack.c.h.b16 %v816
          %v855 = vunpack.c.l.b16 %v817
          %v856 = vunpack.c.h.b16 %v817
          %v857 = vunpack.c.l.b16 %v818
          %v858 = vunpack.c.h.b16 %v818
          %v859 = vunpack.c.l.b16 %v819
          %v860 = vunpack.c.h.b16 %v819
          %v861 = vunpack.c.l.b16 %v820
          %v862 = vunpack.c.h.b16 %v820
          %v863 = vunpack.c.l.b16 %v821
          %v864 = vunpack.c.h.b16 %v821
          %v865 = vunpack.c.l.b16 %v822
          %v866 = vunpack.c.h.b16 %v822
          %v867 = vunpack.c.l.b16 %v823
          %v868 = vunpack.c.h.b16 %v823
          %v869 = vunpack.c.l.b16 %v824
          %v870 = vunpack.c.h.b16 %v824
          %v871 = vunpack.c.l.b16 %v825
          %v872 = vunpack.c.h.b16 %v825
          %v873 = vunpack.c.l.b16 %v826
          %v874 = vunpack.c.h.b16 %v826
          %v875 = vpack.c.b16 %v845, %v843
          %v876 = vpack.c.b16 %v846, %v844
          %v877 = vpack.c.b16 %v849, %v847
          %v878 = vpack.c.b16 %v850, %v848
          %v879 = vpack.c.b16 %v853, %v851
          %v880 = vpack.c.b16 %v854, %v852
          %v881 = vpack.c.b16 %v857, %v855
          %v882 = vpack.c.b16 %v858, %v856
          %v883 = vpack.c.b16 %v861, %v859
          %v884 = vpack.c.b16 %v862, %v860
          %v885 = vpack.c.b16 %v865, %v863
          %v886 = vpack.c.b16 %v866, %v864
          %v887 = vpack.c.b16 %v869, %v867
          %v888 = vpack.c.b16 %v870, %v868
          %v889 = vpack.c.b16 %v873, %v871
          %v890 = vpack.c.b16 %v874, %v872
          %907 = vmatpush.bf16.msra.mxu0 %v889
          %908 = vmatpush.bf16.msra.mxu0 %v887
          %909 = vmatpush.bf16.msra.mxu0 %v885
          %910 = vmatpush.bf16.msra.mxu0 %v883
          %911 = vmatpush.bf16.msra.mxu0 %v881
          %912 = vmatpush.bf16.msra.mxu0 %v879
          %913 = vmatpush.bf16.msra.mxu0 %v877
          %914 = vmatpush.bf16.msra.mxu0 %v875
          %915 = vmatmul.bf16.gmra.mxu0 %v667
          %v916 = vpop.f32.mrf.mxu0
          %v917 = vadd.f32 0.0, %v916
          %v918 = vpop.f32.mrf.mxu0
          %v919 = vadd.f32 0.0, %v918
          %920 = vmatmul.bf16.gmra.mxu0 %v668
          %v921 = vpop.f32.mrf.mxu0
          %v922 = vadd.f32 0.0, %v921
          %v923 = vpop.f32.mrf.mxu0
          %v924 = vadd.f32 0.0, %v923
          %925 = vdwg.mxu0
          %926 = vmatpush.bf16.msra.mxu0 %v890
          %927 = vmatpush.bf16.msra.mxu0 %v888
          %928 = vmatpush.bf16.msra.mxu0 %v886
          %929 = vmatpush.bf16.msra.mxu0 %v884
          %930 = vmatpush.bf16.msra.mxu0 %v882
          %931 = vmatpush.bf16.msra.mxu0 %v880
          %932 = vmatpush.bf16.msra.mxu0 %v878
          %933 = vmatpush.bf16.msra.mxu0 %v876
          %934 = vmatmul.bf16.gmra.mxu0 %v667
          %v935 = vpop.f32.mrf.mxu0
          %v936 = vadd.f32 0.0, %v935
          %v937 = vpop.f32.mrf.mxu0
          %v938 = vadd.f32 0.0, %v937
          %939 = vmatmul.bf16.gmra.mxu0 %v668
          %v940 = vpop.f32.mrf.mxu0
          %v941 = vadd.f32 0.0, %v940
          %v942 = vpop.f32.mrf.mxu0
          %v943 = vadd.f32 0.0, %v942
          %944 = vdwg.mxu0
          %v945 = vpack.c.bf16 %v936, %v917
          %v946 = vpack.c.bf16 %v938, %v919
          %v947 = vpack.c.bf16 %v941, %v922
          %v948 = vpack.c.bf16 %v943, %v924
          %949 = vst [vmem:[#allocation4] sm:$0xff] %v945
          %950 = vst [vmem:[#allocation4 + $0x8] sm:$0xff] %v946
          %951 = vst [vmem:[#allocation4 + $0x10] sm:$0xff] %v947
          %952 = vst [vmem:[#allocation4 + $0x18] sm:$0xff] %v948
        $region100: #{tpu_custom_call.1} parent=95 // pred_fallthru
          _
        %v953 = vlaneseq
        %v954 = vand.u32 %v953, 127
        %v955 = vld [vmem:[%s640] sm:$0xff]
        %v956 = vld [vmem:[%s640 + $0x8] sm:$0xff]
        %v957 = vld [vmem:[%s640 + $0x10] sm:$0xff]
        %v958 = vld [vmem:[%s640 + $0x18] sm:$0xff]
        %v959 = vld [vmem:[%s640 + $0x20] sm:$0xff]
        %v960 = vld [vmem:[%s640 + $0x28] sm:$0xff]
        %v961 = vld [vmem:[%s640 + $0x30] sm:$0xff]
        %v962 = vld [vmem:[%s640 + $0x38] sm:$0xff]
        %v963 = vld [vmem:[%s640 + $0x40] sm:$0xff]
        %v964 = vld [vmem:[%s640 + $0x48] sm:$0xff]
        %v965 = vld [vmem:[%s640 + $0x50] sm:$0xff]
        %v966 = vld [vmem:[%s640 + $0x58] sm:$0xff]
        %v967 = vld [vmem:[%s640 + $0x60] sm:$0xff]
        %v968 = vld [vmem:[%s640 + $0x68] sm:$0xff]
        %v969 = vld [vmem:[%s640 + $0x70] sm:$0xff]
        %v970 = vld [vmem:[%s640 + $0x78] sm:$0xff]
        %v971 = vld [vmem:[%s640 + $0x80] sm:$0xff]
        %v972 = vld [vmem:[%s640 + $0x88] sm:$0xff]
        %v973 = vld [vmem:[%s640 + $0x90] sm:$0xff]
        %v974 = vld [vmem:[%s640 + $0x98] sm:$0xff]
        %v975 = vld [vmem:[%s640 + $0xa0] sm:$0xff]
        %v976 = vld [vmem:[%s640 + $0xa8] sm:$0xff]
        %v977 = vld [vmem:[%s640 + $0xb0] sm:$0xff]
        %v978 = vld [vmem:[%s640 + $0xb8] sm:$0xff]
        %v979 = vld [vmem:[%s640 + $0xc0] sm:$0xff]
        %v980 = vld [vmem:[%s640 + $0xc8] sm:$0xff]
        %v981 = vld [vmem:[%s640 + $0xd0] sm:$0xff]
        %v982 = vld [vmem:[%s640 + $0xd8] sm:$0xff]
        %v983 = vld [vmem:[%s640 + $0xe0] sm:$0xff]
        %v984 = vld [vmem:[%s640 + $0xe8] sm:$0xff]
        %v985 = vld [vmem:[%s640 + $0xf0] sm:$0xff]
        %v986 = vld [vmem:[%s640 + $0xf8] sm:$0xff]
        %v987 = vld [vmem:[%s640 + $0x100] sm:$0xff]
        %v988 = vld [vmem:[%s640 + $0x108] sm:$0xff]
        %v989 = vld [vmem:[%s640 + $0x110] sm:$0xff]
        %v990 = vld [vmem:[%s640 + $0x118] sm:$0xff]
        %v991 = vld [vmem:[%s640 + $0x120] sm:$0xff]
        %v992 = vld [vmem:[%s640 + $0x128] sm:$0xff]
        %v993 = vld [vmem:[%s640 + $0x130] sm:$0xff]
        %v994 = vld [vmem:[%s640 + $0x138] sm:$0xff]
        %v995 = vld [vmem:[%s640 + $0x140] sm:$0xff]
        %v996 = vld [vmem:[%s640 + $0x148] sm:$0xff]
        %v997 = vld [vmem:[%s640 + $0x150] sm:$0xff]
        %v998 = vld [vmem:[%s640 + $0x158] sm:$0xff]
        %v999 = vld [vmem:[%s640 + $0x160] sm:$0xff]
        %v1000 = vld [vmem:[%s640 + $0x168] sm:$0xff]
        %v1001 = vld [vmem:[%s640 + $0x170] sm:$0xff]
        %v1002 = vld [vmem:[%s640 + $0x178] sm:$0xff]
        %v1003 = vld [vmem:[%s640 + $0x180] sm:$0xff]
        %v1004 = vld [vmem:[%s640 + $0x188] sm:$0xff]
        %v1005 = vld [vmem:[%s640 + $0x190] sm:$0xff]
        %v1006 = vld [vmem:[%s640 + $0x198] sm:$0xff]
        %v1007 = vld [vmem:[%s640 + $0x1a0] sm:$0xff]
        %v1008 = vld [vmem:[%s640 + $0x1a8] sm:$0xff]
        %v1009 = vld [vmem:[%s640 + $0x1b0] sm:$0xff]
        %v1010 = vld [vmem:[%s640 + $0x1b8] sm:$0xff]
        %v1011 = vld [vmem:[%s640 + $0x1c0] sm:$0xff]
        %v1012 = vld [vmem:[%s640 + $0x1c8] sm:$0xff]
        %v1013 = vld [vmem:[%s640 + $0x1d0] sm:$0xff]
        %v1014 = vld [vmem:[%s640 + $0x1d8] sm:$0xff]
        %v1015 = vld [vmem:[%s640 + $0x1e0] sm:$0xff]
        %v1016 = vld [vmem:[%s640 + $0x1e8] sm:$0xff]
        %v1017 = vld [vmem:[%s640 + $0x1f0] sm:$0xff]
        %v1018 = vld [vmem:[%s640 + $0x1f8] sm:$0xff]
        %1019 = vset.pattern.permute.xlu0 0
        %1020 = vperm.xlu0 %1019, %v955
        %v1021 = vpop.permute.xlu0 %1020
        %1022 = vset.pattern.permute.xlu0 0
        %1023 = vperm.xlu0 %1022, %v956
        %v1024 = vpop.permute.xlu0 %1023
        %1025 = vset.pattern.permute.xlu0 0
        %1026 = vperm.xlu0 %1025, %v957
        %v1027 = vpop.permute.xlu0 %1026
        %1028 = vset.pattern.permute.xlu0 0
        %1029 = vperm.xlu0 %1028, %v958
        %v1030 = vpop.permute.xlu0 %1029
        %1031 = vset.pattern.permute.xlu0 0
        %1032 = vperm.xlu0 %1031, %v959
        %v1033 = vpop.permute.xlu0 %1032
        %1034 = vset.pattern.permute.xlu0 0
        %1035 = vperm.xlu0 %1034, %v960
        %v1036 = vpop.permute.xlu0 %1035
        %1037 = vset.pattern.permute.xlu0 0
        %1038 = vperm.xlu0 %1037, %v961
        %v1039 = vpop.permute.xlu0 %1038
        %1040 = vset.pattern.permute.xlu0 0
        %1041 = vperm.xlu0 %1040, %v962
        %v1042 = vpop.permute.xlu0 %1041
        %1043 = vset.pattern.permute.xlu0 0
        %1044 = vperm.xlu0 %1043, %v963
        %v1045 = vpop.permute.xlu0 %1044
        %1046 = vset.pattern.permute.xlu0 0
        %1047 = vperm.xlu0 %1046, %v964
        %v1048 = vpop.permute.xlu0 %1047
        %1049 = vset.pattern.permute.xlu0 0
        %1050 = vperm.xlu0 %1049, %v965
        %v1051 = vpop.permute.xlu0 %1050
        %1052 = vset.pattern.permute.xlu0 0
        %1053 = vperm.xlu0 %1052, %v966
        %v1054 = vpop.permute.xlu0 %1053
        %1055 = vset.pattern.permute.xlu0 0
        %1056 = vperm.xlu0 %1055, %v967
        %v1057 = vpop.permute.xlu0 %1056
        %1058 = vset.pattern.permute.xlu0 0
        %1059 = vperm.xlu0 %1058, %v968
        %v1060 = vpop.permute.xlu0 %1059
        %1061 = vset.pattern.permute.xlu0 0
        %1062 = vperm.xlu0 %1061, %v969
        %v1063 = vpop.permute.xlu0 %1062
        %1064 = vset.pattern.permute.xlu0 0
        %1065 = vperm.xlu0 %1064, %v970
        %v1066 = vpop.permute.xlu0 %1065
        %1067 = vset.pattern.permute.xlu0 0
        %1068 = vperm.xlu0 %1067, %v971
        %v1069 = vpop.permute.xlu0 %1068
        %1070 = vset.pattern.permute.xlu0 0
        %1071 = vperm.xlu0 %1070, %v972
        %v1072 = vpop.permute.xlu0 %1071
        %1073 = vset.pattern.permute.xlu0 0
        %1074 = vperm.xlu0 %1073, %v973
        %v1075 = vpop.permute.xlu0 %1074
        %1076 = vset.pattern.permute.xlu0 0
        %1077 = vperm.xlu0 %1076, %v974
        %v1078 = vpop.permute.xlu0 %1077
        %1079 = vset.pattern.permute.xlu0 0
        %1080 = vperm.xlu0 %1079, %v975
        %v1081 = vpop.permute.xlu0 %1080
        %1082 = vset.pattern.permute.xlu0 0
        %1083 = vperm.xlu0 %1082, %v976
        %v1084 = vpop.permute.xlu0 %1083
        %1085 = vset.pattern.permute.xlu0 0
        %1086 = vperm.xlu0 %1085, %v977
        %v1087 = vpop.permute.xlu0 %1086
        %1088 = vset.pattern.permute.xlu0 0
        %1089 = vperm.xlu0 %1088, %v978
        %v1090 = vpop.permute.xlu0 %1089
        %1091 = vset.pattern.permute.xlu0 0
        %1092 = vperm.xlu0 %1091, %v979
        %v1093 = vpop.permute.xlu0 %1092
        %1094 = vset.pattern.permute.xlu0 0
        %1095 = vperm.xlu0 %1094, %v980
        %v1096 = vpop.permute.xlu0 %1095
        %1097 = vset.pattern.permute.xlu0 0
        %1098 = vperm.xlu0 %1097, %v981
        %v1099 = vpop.permute.xlu0 %1098
        %1100 = vset.pattern.permute.xlu0 0
        %1101 = vperm.xlu0 %1100, %v982
        %v1102 = vpop.permute.xlu0 %1101
        %1103 = vset.pattern.permute.xlu0 0
        %1104 = vperm.xlu0 %1103, %v983
        %v1105 = vpop.permute.xlu0 %1104
        %1106 = vset.pattern.permute.xlu0 0
        %1107 = vperm.xlu0 %1106, %v984
        %v1108 = vpop.permute.xlu0 %1107
        %1109 = vset.pattern.permute.xlu0 0
        %1110 = vperm.xlu0 %1109, %v985
        %v1111 = vpop.permute.xlu0 %1110
        %1112 = vset.pattern.permute.xlu0 0
        %1113 = vperm.xlu0 %1112, %v986
        %v1114 = vpop.permute.xlu0 %1113
        %1115 = vset.pattern.permute.xlu0 0
        %1116 = vperm.xlu0 %1115, %v987
        %v1117 = vpop.permute.xlu0 %1116
        %1118 = vset.pattern.permute.xlu0 0
        %1119 = vperm.xlu0 %1118, %v988
        %v1120 = vpop.permute.xlu0 %1119
        %1121 = vset.pattern.permute.xlu0 0
        %1122 = vperm.xlu0 %1121, %v989
        %v1123 = vpop.permute.xlu0 %1122
        %1124 = vset.pattern.permute.xlu0 0
        %1125 = vperm.xlu0 %1124, %v990
        %v1126 = vpop.permute.xlu0 %1125
        %1127 = vset.pattern.permute.xlu0 0
        %1128 = vperm.xlu0 %1127, %v991
        %v1129 = vpop.permute.xlu0 %1128
        %1130 = vset.pattern.permute.xlu0 0
        %1131 = vperm.xlu0 %1130, %v992
        %v1132 = vpop.permute.xlu0 %1131
        %1133 = vset.pattern.permute.xlu0 0
        %1134 = vperm.xlu0 %1133, %v993
        %v1135 = vpop.permute.xlu0 %1134
        %1136 = vset.pattern.permute.xlu0 0
        %1137 = vperm.xlu0 %1136, %v994
        %v1138 = vpop.permute.xlu0 %1137
        %1139 = vset.pattern.permute.xlu0 0
        %1140 = vperm.xlu0 %1139, %v995
        %v1141 = vpop.permute.xlu0 %1140
        %1142 = vset.pattern.permute.xlu0 0
        %1143 = vperm.xlu0 %1142, %v996
        %v1144 = vpop.permute.xlu0 %1143
        %1145 = vset.pattern.permute.xlu0 0
        %1146 = vperm.xlu0 %1145, %v997
        %v1147 = vpop.permute.xlu0 %1146
        %1148 = vset.pattern.permute.xlu0 0
        %1149 = vperm.xlu0 %1148, %v998
        %v1150 = vpop.permute.xlu0 %1149
        %1151 = vset.pattern.permute.xlu0 0
        %1152 = vperm.xlu0 %1151, %v999
        %v1153 = vpop.permute.xlu0 %1152
        %1154 = vset.pattern.permute.xlu0 0
        %1155 = vperm.xlu0 %1154, %v1000
        %v1156 = vpop.permute.xlu0 %1155
        %1157 = vset.pattern.permute.xlu0 0
        %1158 = vperm.xlu0 %1157, %v1001
        %v1159 = vpop.permute.xlu0 %1158
        %1160 = vset.pattern.permute.xlu0 0
        %1161 = vperm.xlu0 %1160, %v1002
        %v1162 = vpop.permute.xlu0 %1161
        %1163 = vset.pattern.permute.xlu0 0
        %1164 = vperm.xlu0 %1163, %v1003
        %v1165 = vpop.permute.xlu0 %1164
        %1166 = vset.pattern.permute.xlu0 0
        %1167 = vperm.xlu0 %1166, %v1004
        %v1168 = vpop.permute.xlu0 %1167
        %1169 = vset.pattern.permute.xlu0 0
        %1170 = vperm.xlu0 %1169, %v1005
        %v1171 = vpop.permute.xlu0 %1170
        %1172 = vset.pattern.permute.xlu0 0
        %1173 = vperm.xlu0 %1172, %v1006
        %v1174 = vpop.permute.xlu0 %1173
        %1175 = vset.pattern.permute.xlu0 0
        %1176 = vperm.xlu0 %1175, %v1007
        %v1177 = vpop.permute.xlu0 %1176
        %1178 = vset.pattern.permute.xlu0 0
        %1179 = vperm.xlu0 %1178, %v1008
        %v1180 = vpop.permute.xlu0 %1179
        %1181 = vset.pattern.permute.xlu0 0
        %1182 = vperm.xlu0 %1181, %v1009
        %v1183 = vpop.permute.xlu0 %1182
        %1184 = vset.pattern.permute.xlu0 0
        %1185 = vperm.xlu0 %1184, %v1010
        %v1186 = vpop.permute.xlu0 %1185
        %1187 = vset.pattern.permute.xlu0 0
        %1188 = vperm.xlu0 %1187, %v1011
        %v1189 = vpop.permute.xlu0 %1188
        %1190 = vset.pattern.permute.xlu0 0
        %1191 = vperm.xlu0 %1190, %v1012
        %v1192 = vpop.permute.xlu0 %1191
        %1193 = vset.pattern.permute.xlu0 0
        %1194 = vperm.xlu0 %1193, %v1013
        %v1195 = vpop.permute.xlu0 %1194
        %1196 = vset.pattern.permute.xlu0 0
        %1197 = vperm.xlu0 %1196, %v1014
        %v1198 = vpop.permute.xlu0 %1197
        %1199 = vset.pattern.permute.xlu0 0
        %1200 = vperm.xlu0 %1199, %v1015
        %v1201 = vpop.permute.xlu0 %1200
        %1202 = vset.pattern.permute.xlu0 0
        %1203 = vperm.xlu0 %1202, %v1016
        %v1204 = vpop.permute.xlu0 %1203
        %1205 = vset.pattern.permute.xlu0 0
        %1206 = vperm.xlu0 %1205, %v1017
        %v1207 = vpop.permute.xlu0 %1206
        %1208 = vset.pattern.permute.xlu0 0
        %1209 = vperm.xlu0 %1208, %v1018
        %v1210 = vpop.permute.xlu0 %1209
        %vm1211 = vcmp.eq.s32.totalorder %v954, %v1021
        %vm1212 = vcmp.eq.s32.totalorder %v954, %v1024
        %vm1213 = vcmp.eq.s32.totalorder %v954, %v1027
        %vm1214 = vcmp.eq.s32.totalorder %v954, %v1030
        %vm1215 = vcmp.eq.s32.totalorder %v954, %v1033
        %vm1216 = vcmp.eq.s32.totalorder %v954, %v1036
        %vm1217 = vcmp.eq.s32.totalorder %v954, %v1039
        %vm1218 = vcmp.eq.s32.totalorder %v954, %v1042
        %vm1219 = vcmp.eq.s32.totalorder %v954, %v1045
        %vm1220 = vcmp.eq.s32.totalorder %v954, %v1048
        %vm1221 = vcmp.eq.s32.totalorder %v954, %v1051
        %vm1222 = vcmp.eq.s32.totalorder %v954, %v1054
        %vm1223 = vcmp.eq.s32.totalorder %v954, %v1057
        %vm1224 = vcmp.eq.s32.totalorder %v954, %v1060
        %vm1225 = vcmp.eq.s32.totalorder %v954, %v1063
        %vm1226 = vcmp.eq.s32.totalorder %v954, %v1066
        %vm1227 = vcmp.eq.s32.totalorder %v954, %v1069
        %vm1228 = vcmp.eq.s32.totalorder %v954, %v1072
        %vm1229 = vcmp.eq.s32.totalorder %v954, %v1075
        %vm1230 = vcmp.eq.s32.totalorder %v954, %v1078
        %vm1231 = vcmp.eq.s32.totalorder %v954, %v1081
        %vm1232 = vcmp.eq.s32.totalorder %v954, %v1084
        %vm1233 = vcmp.eq.s32.totalorder %v954, %v1087
        %vm1234 = vcmp.eq.s32.totalorder %v954, %v1090
        %vm1235 = vcmp.eq.s32.totalorder %v954, %v1093
        %vm1236 = vcmp.eq.s32.totalorder %v954, %v1096
        %vm1237 = vcmp.eq.s32.totalorder %v954, %v1099
        %vm1238 = vcmp.eq.s32.totalorder %v954, %v1102
        %vm1239 = vcmp.eq.s32.totalorder %v954, %v1105
        %vm1240 = vcmp.eq.s32.totalorder %v954, %v1108
        %vm1241 = vcmp.eq.s32.totalorder %v954, %v1111
        %vm1242 = vcmp.eq.s32.totalorder %v954, %v1114
        %vm1243 = vcmp.eq.s32.totalorder %v954, %v1117
        %vm1244 = vcmp.eq.s32.totalorder %v954, %v1120
        %vm1245 = vcmp.eq.s32.totalorder %v954, %v1123
        %vm1246 = vcmp.eq.s32.totalorder %v954, %v1126
        %vm1247 = vcmp.eq.s32.totalorder %v954, %v1129
        %vm1248 = vcmp.eq.s32.totalorder %v954, %v1132
        %vm1249 = vcmp.eq.s32.totalorder %v954, %v1135
        %vm1250 = vcmp.eq.s32.totalorder %v954, %v1138
        %vm1251 = vcmp.eq.s32.totalorder %v954, %v1141
        %vm1252 = vcmp.eq.s32.totalorder %v954, %v1144
        %vm1253 = vcmp.eq.s32.totalorder %v954, %v1147
        %vm1254 = vcmp.eq.s32.totalorder %v954, %v1150
        %vm1255 = vcmp.eq.s32.totalorder %v954, %v1153
        %vm1256 = vcmp.eq.s32.totalorder %v954, %v1156
        %vm1257 = vcmp.eq.s32.totalorder %v954, %v1159
        %vm1258 = vcmp.eq.s32.totalorder %v954, %v1162
        %vm1259 = vcmp.eq.s32.totalorder %v954, %v1165
        %vm1260 = vcmp.eq.s32.totalorder %v954, %v1168
        %vm1261 = vcmp.eq.s32.totalorder %v954, %v1171
        %vm1262 = vcmp.eq.s32.totalorder %v954, %v1174
        %vm1263 = vcmp.eq.s32.totalorder %v954, %v1177
        %vm1264 = vcmp.eq.s32.totalorder %v954, %v1180
        %vm1265 = vcmp.eq.s32.totalorder %v954, %v1183
        %vm1266 = vcmp.eq.s32.totalorder %v954, %v1186
        %vm1267 = vcmp.eq.s32.totalorder %v954, %v1189
        %vm1268 = vcmp.eq.s32.totalorder %v954, %v1192
        %vm1269 = vcmp.eq.s32.totalorder %v954, %v1195
        %vm1270 = vcmp.eq.s32.totalorder %v954, %v1198
        %vm1271 = vcmp.eq.s32.totalorder %v954, %v1201
        %vm1272 = vcmp.eq.s32.totalorder %v954, %v1204
        %vm1273 = vcmp.eq.s32.totalorder %v954, %v1207
        %vm1274 = vcmp.eq.s32.totalorder %v954, %v1210
        %v1275 = vsel %vm1211, 1, 0
        %v1276 = vsel %vm1212, 1, 0
        %v1277 = vsel %vm1213, 1, 0
        %v1278 = vsel %vm1214, 1, 0
        %v1279 = vsel %vm1215, 1, 0
        %v1280 = vsel %vm1216, 1, 0
        %v1281 = vsel %vm1217, 1, 0
        %v1282 = vsel %vm1218, 1, 0
        %v1283 = vsel %vm1219, 1, 0
        %v1284 = vsel %vm1220, 1, 0
        %v1285 = vsel %vm1221, 1, 0
        %v1286 = vsel %vm1222, 1, 0
        %v1287 = vsel %vm1223, 1, 0
        %v1288 = vsel %vm1224, 1, 0
        %v1289 = vsel %vm1225, 1, 0
        %v1290 = vsel %vm1226, 1, 0
        %v1291 = vsel %vm1227, 1, 0
        %v1292 = vsel %vm1228, 1, 0
        %v1293 = vsel %vm1229, 1, 0
        %v1294 = vsel %vm1230, 1, 0
        %v1295 = vsel %vm1231, 1, 0
        %v1296 = vsel %vm1232, 1, 0
        %v1297 = vsel %vm1233, 1, 0
        %v1298 = vsel %vm1234, 1, 0
        %v1299 = vsel %vm1235, 1, 0
        %v1300 = vsel %vm1236, 1, 0
        %v1301 = vsel %vm1237, 1, 0
        %v1302 = vsel %vm1238, 1, 0
        %v1303 = vsel %vm1239, 1, 0
        %v1304 = vsel %vm1240, 1, 0
        %v1305 = vsel %vm1241, 1, 0
        %v1306 = vsel %vm1242, 1, 0
        %v1307 = vsel %vm1243, 1, 0
        %v1308 = vsel %vm1244, 1, 0
        %v1309 = vsel %vm1245, 1, 0
        %v1310 = vsel %vm1246, 1, 0
        %v1311 = vsel %vm1247, 1, 0
        %v1312 = vsel %vm1248, 1, 0
        %v1313 = vsel %vm1249, 1, 0
        %v1314 = vsel %vm1250, 1, 0
        %v1315 = vsel %vm1251, 1, 0
        %v1316 = vsel %vm1252, 1, 0
        %v1317 = vsel %vm1253, 1, 0
        %v1318 = vsel %vm1254, 1, 0
        %v1319 = vsel %vm1255, 1, 0
        %v1320 = vsel %vm1256, 1, 0
        %v1321 = vsel %vm1257, 1, 0
        %v1322 = vsel %vm1258, 1, 0
        %v1323 = vsel %vm1259, 1, 0
        %v1324 = vsel %vm1260, 1, 0
        %v1325 = vsel %vm1261, 1, 0
        %v1326 = vsel %vm1262, 1, 0
        %v1327 = vsel %vm1263, 1, 0
        %v1328 = vsel %vm1264, 1, 0
        %v1329 = vsel %vm1265, 1, 0
        %v1330 = vsel %vm1266, 1, 0
        %v1331 = vsel %vm1267, 1, 0
        %v1332 = vsel %vm1268, 1, 0
        %v1333 = vsel %vm1269, 1, 0
        %v1334 = vsel %vm1270, 1, 0
        %v1335 = vsel %vm1271, 1, 0
        %v1336 = vsel %vm1272, 1, 0
        %v1337 = vsel %vm1273, 1, 0
        %v1338 = vsel %vm1274, 1, 0
        %v1339 = vcvt.s32.f32 %v1275
        %v1340 = vcvt.s32.f32 %v1276
        %v1341 = vcvt.s32.f32 %v1277
        %v1342 = vcvt.s32.f32 %v1278
        %v1343 = vcvt.s32.f32 %v1279
        %v1344 = vcvt.s32.f32 %v1280
        %v1345 = vcvt.s32.f32 %v1281
        %v1346 = vcvt.s32.f32 %v1282
        %v1347 = vcvt.s32.f32 %v1283
        %v1348 = vcvt.s32.f32 %v1284
        %v1349 = vcvt.s32.f32 %v1285
        %v1350 = vcvt.s32.f32 %v1286
        %v1351 = vcvt.s32.f32 %v1287
        %v1352 = vcvt.s32.f32 %v1288
        %v1353 = vcvt.s32.f32 %v1289
        %v1354 = vcvt.s32.f32 %v1290
        %v1355 = vcvt.s32.f32 %v1291
        %v1356 = vcvt.s32.f32 %v1292
        %v1357 = vcvt.s32.f32 %v1293
        %v1358 = vcvt.s32.f32 %v1294
        %v1359 = vcvt.s32.f32 %v1295
        %v1360 = vcvt.s32.f32 %v1296
        %v1361 = vcvt.s32.f32 %v1297
        %v1362 = vcvt.s32.f32 %v1298
        %v1363 = vcvt.s32.f32 %v1299
        %v1364 = vcvt.s32.f32 %v1300
        %v1365 = vcvt.s32.f32 %v1301
        %v1366 = vcvt.s32.f32 %v1302
        %v1367 = vcvt.s32.f32 %v1303
        %v1368 = vcvt.s32.f32 %v1304
        %v1369 = vcvt.s32.f32 %v1305
        %v1370 = vcvt.s32.f32 %v1306
        %v1371 = vcvt.s32.f32 %v1307
        %v1372 = vcvt.s32.f32 %v1308
        %v1373 = vcvt.s32.f32 %v1309
        %v1374 = vcvt.s32.f32 %v1310
        %v1375 = vcvt.s32.f32 %v1311
        %v1376 = vcvt.s32.f32 %v1312
        %v1377 = vcvt.s32.f32 %v1313
        %v1378 = vcvt.s32.f32 %v1314
        %v1379 = vcvt.s32.f32 %v1315
        %v1380 = vcvt.s32.f32 %v1316
        %v1381 = vcvt.s32.f32 %v1317
        %v1382 = vcvt.s32.f32 %v1318
        %v1383 = vcvt.s32.f32 %v1319
        %v1384 = vcvt.s32.f32 %v1320
        %v1385 = vcvt.s32.f32 %v1321
        %v1386 = vcvt.s32.f32 %v1322
        %v1387 = vcvt.s32.f32 %v1323
        %v1388 = vcvt.s32.f32 %v1324
        %v1389 = vcvt.s32.f32 %v1325
        %v1390 = vcvt.s32.f32 %v1326
        %v1391 = vcvt.s32.f32 %v1327
        %v1392 = vcvt.s32.f32 %v1328
        %v1393 = vcvt.s32.f32 %v1329
        %v1394 = vcvt.s32.f32 %v1330
        %v1395 = vcvt.s32.f32 %v1331
        %v1396 = vcvt.s32.f32 %v1332
        %v1397 = vcvt.s32.f32 %v1333
        %v1398 = vcvt.s32.f32 %v1334
        %v1399 = vcvt.s32.f32 %v1335
        %v1400 = vcvt.s32.f32 %v1336
        %v1401 = vcvt.s32.f32 %v1337
        %v1402 = vcvt.s32.f32 %v1338
        %v1403 = vpack.c.bf16 %v1340, %v1339
        %v1404 = vpack.c.bf16 %v1342, %v1341
        %v1405 = vpack.c.bf16 %v1344, %v1343
        %v1406 = vpack.c.bf16 %v1346, %v1345
        %v1407 = vpack.c.bf16 %v1348, %v1347
        %v1408 = vpack.c.bf16 %v1350, %v1349
        %v1409 = vpack.c.bf16 %v1352, %v1351
        %v1410 = vpack.c.bf16 %v1354, %v1353
        %v1411 = vpack.c.bf16 %v1356, %v1355
        %v1412 = vpack.c.bf16 %v1358, %v1357
        %v1413 = vpack.c.bf16 %v1360, %v1359
        %v1414 = vpack.c.bf16 %v1362, %v1361
        %v1415 = vpack.c.bf16 %v1364, %v1363
        %v1416 = vpack.c.bf16 %v1366, %v1365
        %v1417 = vpack.c.bf16 %v1368, %v1367
        %v1418 = vpack.c.bf16 %v1370, %v1369
        %v1419 = vpack.c.bf16 %v1372, %v1371
        %v1420 = vpack.c.bf16 %v1374, %v1373
        %v1421 = vpack.c.bf16 %v1376, %v1375
        %v1422 = vpack.c.bf16 %v1378, %v1377
        %v1423 = vpack.c.bf16 %v1380, %v1379
        %v1424 = vpack.c.bf16 %v1382, %v1381
        %v1425 = vpack.c.bf16 %v1384, %v1383
        %v1426 = vpack.c.bf16 %v1386, %v1385
        %v1427 = vpack.c.bf16 %v1388, %v1387
        %v1428 = vpack.c.bf16 %v1390, %v1389
        %v1429 = vpack.c.bf16 %v1392, %v1391
        %v1430 = vpack.c.bf16 %v1394, %v1393
        %v1431 = vpack.c.bf16 %v1396, %v1395
        %v1432 = vpack.c.bf16 %v1398, %v1397
        %v1433 = vpack.c.bf16 %v1400, %v1399
        %v1434 = vpack.c.bf16 %v1402, %v1401
        %v1435 = vld [vmem:[%s646] sm:$0xff]
        %v1436 = vld [vmem:[%s646 + $0x8] sm:$0xff]
        %v1437 = vld [vmem:[%s646 + $0x10] sm:$0xff]
        %v1438 = vld [vmem:[%s646 + $0x18] sm:$0xff]
        %v1439 = vld [vmem:[%s646 + $0x20] sm:$0xff]
        %v1440 = vld [vmem:[%s646 + $0x28] sm:$0xff]
        %v1441 = vld [vmem:[%s646 + $0x30] sm:$0xff]
        %v1442 = vld [vmem:[%s646 + $0x38] sm:$0xff]
        %v1443 = vld [vmem:[%s646 + $0x40] sm:$0xff]
        %v1444 = vld [vmem:[%s646 + $0x48] sm:$0xff]
        %v1445 = vld [vmem:[%s646 + $0x50] sm:$0xff]
        %v1446 = vld [vmem:[%s646 + $0x58] sm:$0xff]
        %v1447 = vld [vmem:[%s646 + $0x60] sm:$0xff]
        %v1448 = vld [vmem:[%s646 + $0x68] sm:$0xff]
        %v1449 = vld [vmem:[%s646 + $0x70] sm:$0xff]
        %v1450 = vld [vmem:[%s646 + $0x78] sm:$0xff]
        %v1451 = vld [vmem:[%s646 + $0x80] sm:$0xff]
        %v1452 = vld [vmem:[%s646 + $0x88] sm:$0xff]
        %v1453 = vld [vmem:[%s646 + $0x90] sm:$0xff]
        %v1454 = vld [vmem:[%s646 + $0x98] sm:$0xff]
        %v1455 = vld [vmem:[%s646 + $0xa0] sm:$0xff]
        %v1456 = vld [vmem:[%s646 + $0xa8] sm:$0xff]
        %v1457 = vld [vmem:[%s646 + $0xb0] sm:$0xff]
        %v1458 = vld [vmem:[%s646 + $0xb8] sm:$0xff]
        %v1459 = vld [vmem:[%s646 + $0xc0] sm:$0xff]
        %v1460 = vld [vmem:[%s646 + $0xc8] sm:$0xff]
        %v1461 = vld [vmem:[%s646 + $0xd0] sm:$0xff]
        %v1462 = vld [vmem:[%s646 + $0xd8] sm:$0xff]
        %v1463 = vld [vmem:[%s646 + $0xe0] sm:$0xff]
        %v1464 = vld [vmem:[%s646 + $0xe8] sm:$0xff]
        %v1465 = vld [vmem:[%s646 + $0xf0] sm:$0xff]
        %v1466 = vld [vmem:[%s646 + $0xf8] sm:$0xff]
        %v1467 = vld [vmem:[%s646 + $0x100] sm:$0xff]
        %v1468 = vld [vmem:[%s646 + $0x108] sm:$0xff]
        %v1469 = vld [vmem:[%s646 + $0x110] sm:$0xff]
        %v1470 = vld [vmem:[%s646 + $0x118] sm:$0xff]
        %v1471 = vld [vmem:[%s646 + $0x120] sm:$0xff]
        %v1472 = vld [vmem:[%s646 + $0x128] sm:$0xff]
        %v1473 = vld [vmem:[%s646 + $0x130] sm:$0xff]
        %v1474 = vld [vmem:[%s646 + $0x138] sm:$0xff]
        %v1475 = vld [vmem:[%s646 + $0x140] sm:$0xff]
        %v1476 = vld [vmem:[%s646 + $0x148] sm:$0xff]
        %v1477 = vld [vmem:[%s646 + $0x150] sm:$0xff]
        %v1478 = vld [vmem:[%s646 + $0x158] sm:$0xff]
        %v1479 = vld [vmem:[%s646 + $0x160] sm:$0xff]
        %v1480 = vld [vmem:[%s646 + $0x168] sm:$0xff]
        %v1481 = vld [vmem:[%s646 + $0x170] sm:$0xff]
        %v1482 = vld [vmem:[%s646 + $0x178] sm:$0xff]
        %v1483 = vld [vmem:[%s646 + $0x180] sm:$0xff]
        %v1484 = vld [vmem:[%s646 + $0x188] sm:$0xff]
        %v1485 = vld [vmem:[%s646 + $0x190] sm:$0xff]
        %v1486 = vld [vmem:[%s646 + $0x198] sm:$0xff]
        %v1487 = vld [vmem:[%s646 + $0x1a0] sm:$0xff]
        %v1488 = vld [vmem:[%s646 + $0x1a8] sm:$0xff]
        %v1489 = vld [vmem:[%s646 + $0x1b0] sm:$0xff]
        %v1490 = vld [vmem:[%s646 + $0x1b8] sm:$0xff]
        %v1491 = vld [vmem:[%s646 + $0x1c0] sm:$0xff]
        %v1492 = vld [vmem:[%s646 + $0x1c8] sm:$0xff]
        %v1493 = vld [vmem:[%s646 + $0x1d0] sm:$0xff]
        %v1494 = vld [vmem:[%s646 + $0x1d8] sm:$0xff]
        %v1495 = vld [vmem:[%s646 + $0x1e0] sm:$0xff]
        %v1496 = vld [vmem:[%s646 + $0x1e8] sm:$0xff]
        %v1497 = vld [vmem:[%s646 + $0x1f0] sm:$0xff]
        %v1498 = vld [vmem:[%s646 + $0x1f8] sm:$0xff]
        %1499 = vset.pattern.permute.xlu0 0
        %1500 = vperm.xlu0 %1499, %v1435
        %v1501 = vpop.permute.xlu0 %1500
        %1502 = vset.pattern.permute.xlu0 0
        %1503 = vperm.xlu0 %1502, %v1436
        %v1504 = vpop.permute.xlu0 %1503
        %1505 = vset.pattern.permute.xlu0 0
        %1506 = vperm.xlu0 %1505, %v1437
        %v1507 = vpop.permute.xlu0 %1506
        %1508 = vset.pattern.permute.xlu0 0
        %1509 = vperm.xlu0 %1508, %v1438
        %v1510 = vpop.permute.xlu0 %1509
        %1511 = vset.pattern.permute.xlu0 0
        %1512 = vperm.xlu0 %1511, %v1439
        %v1513 = vpop.permute.xlu0 %1512
        %1514 = vset.pattern.permute.xlu0 0
        %1515 = vperm.xlu0 %1514, %v1440
        %v1516 = vpop.permute.xlu0 %1515
        %1517 = vset.pattern.permute.xlu0 0
        %1518 = vperm.xlu0 %1517, %v1441
        %v1519 = vpop.permute.xlu0 %1518
        %1520 = vset.pattern.permute.xlu0 0
        %1521 = vperm.xlu0 %1520, %v1442
        %v1522 = vpop.permute.xlu0 %1521
        %1523 = vset.pattern.permute.xlu0 0
        %1524 = vperm.xlu0 %1523, %v1443
        %v1525 = vpop.permute.xlu0 %1524
        %1526 = vset.pattern.permute.xlu0 0
        %1527 = vperm.xlu0 %1526, %v1444
        %v1528 = vpop.permute.xlu0 %1527
        %1529 = vset.pattern.permute.xlu0 0
        %1530 = vperm.xlu0 %1529, %v1445
        %v1531 = vpop.permute.xlu0 %1530
        %1532 = vset.pattern.permute.xlu0 0
        %1533 = vperm.xlu0 %1532, %v1446
        %v1534 = vpop.permute.xlu0 %1533
        %1535 = vset.pattern.permute.xlu0 0
        %1536 = vperm.xlu0 %1535, %v1447
        %v1537 = vpop.permute.xlu0 %1536
        %1538 = vset.pattern.permute.xlu0 0
        %1539 = vperm.xlu0 %1538, %v1448
        %v1540 = vpop.permute.xlu0 %1539
        %1541 = vset.pattern.permute.xlu0 0
        %1542 = vperm.xlu0 %1541, %v1449
        %v1543 = vpop.permute.xlu0 %1542
        %1544 = vset.pattern.permute.xlu0 0
        %1545 = vperm.xlu0 %1544, %v1450
        %v1546 = vpop.permute.xlu0 %1545
        %1547 = vset.pattern.permute.xlu0 0
        %1548 = vperm.xlu0 %1547, %v1451
        %v1549 = vpop.permute.xlu0 %1548
        %1550 = vset.pattern.permute.xlu0 0
        %1551 = vperm.xlu0 %1550, %v1452
        %v1552 = vpop.permute.xlu0 %1551
        %1553 = vset.pattern.permute.xlu0 0
        %1554 = vperm.xlu0 %1553, %v1453
        %v1555 = vpop.permute.xlu0 %1554
        %1556 = vset.pattern.permute.xlu0 0
        %1557 = vperm.xlu0 %1556, %v1454
        %v1558 = vpop.permute.xlu0 %1557
        %1559 = vset.pattern.permute.xlu0 0
        %1560 = vperm.xlu0 %1559, %v1455
        %v1561 = vpop.permute.xlu0 %1560
        %1562 = vset.pattern.permute.xlu0 0
        %1563 = vperm.xlu0 %1562, %v1456
        %v1564 = vpop.permute.xlu0 %1563
        %1565 = vset.pattern.permute.xlu0 0
        %1566 = vperm.xlu0 %1565, %v1457
        %v1567 = vpop.permute.xlu0 %1566
        %1568 = vset.pattern.permute.xlu0 0
        %1569 = vperm.xlu0 %1568, %v1458
        %v1570 = vpop.permute.xlu0 %1569
        %1571 = vset.pattern.permute.xlu0 0
        %1572 = vperm.xlu0 %1571, %v1459
        %v1573 = vpop.permute.xlu0 %1572
        %1574 = vset.pattern.permute.xlu0 0
        %1575 = vperm.xlu0 %1574, %v1460
        %v1576 = vpop.permute.xlu0 %1575
        %1577 = vset.pattern.permute.xlu0 0
        %1578 = vperm.xlu0 %1577, %v1461
        %v1579 = vpop.permute.xlu0 %1578
        %1580 = vset.pattern.permute.xlu0 0
        %1581 = vperm.xlu0 %1580, %v1462
        %v1582 = vpop.permute.xlu0 %1581
        %1583 = vset.pattern.permute.xlu0 0
        %1584 = vperm.xlu0 %1583, %v1463
        %v1585 = vpop.permute.xlu0 %1584
        %1586 = vset.pattern.permute.xlu0 0
        %1587 = vperm.xlu0 %1586, %v1464
        %v1588 = vpop.permute.xlu0 %1587
        %1589 = vset.pattern.permute.xlu0 0
        %1590 = vperm.xlu0 %1589, %v1465
        %v1591 = vpop.permute.xlu0 %1590
        %1592 = vset.pattern.permute.xlu0 0
        %1593 = vperm.xlu0 %1592, %v1466
        %v1594 = vpop.permute.xlu0 %1593
        %1595 = vset.pattern.permute.xlu0 0
        %1596 = vperm.xlu0 %1595, %v1467
        %v1597 = vpop.permute.xlu0 %1596
        %1598 = vset.pattern.permute.xlu0 0
        %1599 = vperm.xlu0 %1598, %v1468
        %v1600 = vpop.permute.xlu0 %1599
        %1601 = vset.pattern.permute.xlu0 0
        %1602 = vperm.xlu0 %1601, %v1469
        %v1603 = vpop.permute.xlu0 %1602
        %1604 = vset.pattern.permute.xlu0 0
        %1605 = vperm.xlu0 %1604, %v1470
        %v1606 = vpop.permute.xlu0 %1605
        %1607 = vset.pattern.permute.xlu0 0
        %1608 = vperm.xlu0 %1607, %v1471
        %v1609 = vpop.permute.xlu0 %1608
        %1610 = vset.pattern.permute.xlu0 0
        %1611 = vperm.xlu0 %1610, %v1472
        %v1612 = vpop.permute.xlu0 %1611
        %1613 = vset.pattern.permute.xlu0 0
        %1614 = vperm.xlu0 %1613, %v1473
        %v1615 = vpop.permute.xlu0 %1614
        %1616 = vset.pattern.permute.xlu0 0
        %1617 = vperm.xlu0 %1616, %v1474
        %v1618 = vpop.permute.xlu0 %1617
        %1619 = vset.pattern.permute.xlu0 0
        %1620 = vperm.xlu0 %1619, %v1475
        %v1621 = vpop.permute.xlu0 %1620
        %1622 = vset.pattern.permute.xlu0 0
        %1623 = vperm.xlu0 %1622, %v1476
        %v1624 = vpop.permute.xlu0 %1623
        %1625 = vset.pattern.permute.xlu0 0
        %1626 = vperm.xlu0 %1625, %v1477
        %v1627 = vpop.permute.xlu0 %1626
        %1628 = vset.pattern.permute.xlu0 0
        %1629 = vperm.xlu0 %1628, %v1478
        %v1630 = vpop.permute.xlu0 %1629
        %1631 = vset.pattern.permute.xlu0 0
        %1632 = vperm.xlu0 %1631, %v1479
        %v1633 = vpop.permute.xlu0 %1632
        %1634 = vset.pattern.permute.xlu0 0
        %1635 = vperm.xlu0 %1634, %v1480
        %v1636 = vpop.permute.xlu0 %1635
        %1637 = vset.pattern.permute.xlu0 0
        %1638 = vperm.xlu0 %1637, %v1481
        %v1639 = vpop.permute.xlu0 %1638
        %1640 = vset.pattern.permute.xlu0 0
        %1641 = vperm.xlu0 %1640, %v1482
        %v1642 = vpop.permute.xlu0 %1641
        %1643 = vset.pattern.permute.xlu0 0
        %1644 = vperm.xlu0 %1643, %v1483
        %v1645 = vpop.permute.xlu0 %1644
        %1646 = vset.pattern.permute.xlu0 0
        %1647 = vperm.xlu0 %1646, %v1484
        %v1648 = vpop.permute.xlu0 %1647
        %1649 = vset.pattern.permute.xlu0 0
        %1650 = vperm.xlu0 %1649, %v1485
        %v1651 = vpop.permute.xlu0 %1650
        %1652 = vset.pattern.permute.xlu0 0
        %1653 = vperm.xlu0 %1652, %v1486
        %v1654 = vpop.permute.xlu0 %1653
        %1655 = vset.pattern.permute.xlu0 0
        %1656 = vperm.xlu0 %1655, %v1487
        %v1657 = vpop.permute.xlu0 %1656
        %1658 = vset.pattern.permute.xlu0 0
        %1659 = vperm.xlu0 %1658, %v1488
        %v1660 = vpop.permute.xlu0 %1659
        %1661 = vset.pattern.permute.xlu0 0
        %1662 = vperm.xlu0 %1661, %v1489
        %v1663 = vpop.permute.xlu0 %1662
        %1664 = vset.pattern.permute.xlu0 0
        %1665 = vperm.xlu0 %1664, %v1490
        %v1666 = vpop.permute.xlu0 %1665
        %1667 = vset.pattern.permute.xlu0 0
        %1668 = vperm.xlu0 %1667, %v1491
        %v1669 = vpop.permute.xlu0 %1668
        %1670 = vset.pattern.permute.xlu0 0
        %1671 = vperm.xlu0 %1670, %v1492
        %v1672 = vpop.permute.xlu0 %1671
        %1673 = vset.pattern.permute.xlu0 0
        %1674 = vperm.xlu0 %1673, %v1493
        %v1675 = vpop.permute.xlu0 %1674
        %1676 = vset.pattern.permute.xlu0 0
        %1677 = vperm.xlu0 %1676, %v1494
        %v1678 = vpop.permute.xlu0 %1677
        %1679 = vset.pattern.permute.xlu0 0
        %1680 = vperm.xlu0 %1679, %v1495
        %v1681 = vpop.permute.xlu0 %1680
        %1682 = vset.pattern.permute.xlu0 0
        %1683 = vperm.xlu0 %1682, %v1496
        %v1684 = vpop.permute.xlu0 %1683
        %1685 = vset.pattern.permute.xlu0 0
        %1686 = vperm.xlu0 %1685, %v1497
        %v1687 = vpop.permute.xlu0 %1686
        %1688 = vset.pattern.permute.xlu0 0
        %1689 = vperm.xlu0 %1688, %v1498
        %v1690 = vpop.permute.xlu0 %1689
        %vm1691 = vcmp.eq.s32.totalorder %v954, %v1501
        %vm1692 = vcmp.eq.s32.totalorder %v954, %v1504
        %vm1693 = vcmp.eq.s32.totalorder %v954, %v1507
        %vm1694 = vcmp.eq.s32.totalorder %v954, %v1510
        %vm1695 = vcmp.eq.s32.totalorder %v954, %v1513
        %vm1696 = vcmp.eq.s32.totalorder %v954, %v1516
        %vm1697 = vcmp.eq.s32.totalorder %v954, %v1519
        %vm1698 = vcmp.eq.s32.totalorder %v954, %v1522
        %vm1699 = vcmp.eq.s32.totalorder %v954, %v1525
        %vm1700 = vcmp.eq.s32.totalorder %v954, %v1528
        %vm1701 = vcmp.eq.s32.totalorder %v954, %v1531
        %vm1702 = vcmp.eq.s32.totalorder %v954, %v1534
        %vm1703 = vcmp.eq.s32.totalorder %v954, %v1537
        %vm1704 = vcmp.eq.s32.totalorder %v954, %v1540
        %vm1705 = vcmp.eq.s32.totalorder %v954, %v1543
        %vm1706 = vcmp.eq.s32.totalorder %v954, %v1546
        %vm1707 = vcmp.eq.s32.totalorder %v954, %v1549
        %vm1708 = vcmp.eq.s32.totalorder %v954, %v1552
        %vm1709 = vcmp.eq.s32.totalorder %v954, %v1555
        %vm1710 = vcmp.eq.s32.totalorder %v954, %v1558
        %vm1711 = vcmp.eq.s32.totalorder %v954, %v1561
        %vm1712 = vcmp.eq.s32.totalorder %v954, %v1564
        %vm1713 = vcmp.eq.s32.totalorder %v954, %v1567
        %vm1714 = vcmp.eq.s32.totalorder %v954, %v1570
        %vm1715 = vcmp.eq.s32.totalorder %v954, %v1573
        %vm1716 = vcmp.eq.s32.totalorder %v954, %v1576
        %vm1717 = vcmp.eq.s32.totalorder %v954, %v1579
        %vm1718 = vcmp.eq.s32.totalorder %v954, %v1582
        %vm1719 = vcmp.eq.s32.totalorder %v954, %v1585
        %vm1720 = vcmp.eq.s32.totalorder %v954, %v1588
        %vm1721 = vcmp.eq.s32.totalorder %v954, %v1591
        %vm1722 = vcmp.eq.s32.totalorder %v954, %v1594
        %vm1723 = vcmp.eq.s32.totalorder %v954, %v1597
        %vm1724 = vcmp.eq.s32.totalorder %v954, %v1600
        %vm1725 = vcmp.eq.s32.totalorder %v954, %v1603
        %vm1726 = vcmp.eq.s32.totalorder %v954, %v1606
        %vm1727 = vcmp.eq.s32.totalorder %v954, %v1609
        %vm1728 = vcmp.eq.s32.totalorder %v954, %v1612
        %vm1729 = vcmp.eq.s32.totalorder %v954, %v1615
        %vm1730 = vcmp.eq.s32.totalorder %v954, %v1618
        %vm1731 = vcmp.eq.s32.totalorder %v954, %v1621
        %vm1732 = vcmp.eq.s32.totalorder %v954, %v1624
        %vm1733 = vcmp.eq.s32.totalorder %v954, %v1627
        %vm1734 = vcmp.eq.s32.totalorder %v954, %v1630
        %vm1735 = vcmp.eq.s32.totalorder %v954, %v1633
        %vm1736 = vcmp.eq.s32.totalorder %v954, %v1636
        %vm1737 = vcmp.eq.s32.totalorder %v954, %v1639
        %vm1738 = vcmp.eq.s32.totalorder %v954, %v1642
        %vm1739 = vcmp.eq.s32.totalorder %v954, %v1645
        %vm1740 = vcmp.eq.s32.totalorder %v954, %v1648
        %vm1741 = vcmp.eq.s32.totalorder %v954, %v1651
        %vm1742 = vcmp.eq.s32.totalorder %v954, %v1654
        %vm1743 = vcmp.eq.s32.totalorder %v954, %v1657
        %vm1744 = vcmp.eq.s32.totalorder %v954, %v1660
        %vm1745 = vcmp.eq.s32.totalorder %v954, %v1663
        %vm1746 = vcmp.eq.s32.totalorder %v954, %v1666
        %vm1747 = vcmp.eq.s32.totalorder %v954, %v1669
        %vm1748 = vcmp.eq.s32.totalorder %v954, %v1672
        %vm1749 = vcmp.eq.s32.totalorder %v954, %v1675
        %vm1750 = vcmp.eq.s32.totalorder %v954, %v1678
        %vm1751 = vcmp.eq.s32.totalorder %v954, %v1681
        %vm1752 = vcmp.eq.s32.totalorder %v954, %v1684
        %vm1753 = vcmp.eq.s32.totalorder %v954, %v1687
        %vm1754 = vcmp.eq.s32.totalorder %v954, %v1690
        %v1755 = vsel %vm1691, 1, 0
        %v1756 = vsel %vm1692, 1, 0
        %v1757 = vsel %vm1693, 1, 0
        %v1758 = vsel %vm1694, 1, 0
        %v1759 = vsel %vm1695, 1, 0
        %v1760 = vsel %vm1696, 1, 0
        %v1761 = vsel %vm1697, 1, 0
        %v1762 = vsel %vm1698, 1, 0
        %v1763 = vsel %vm1699, 1, 0
        %v1764 = vsel %vm1700, 1, 0
        %v1765 = vsel %vm1701, 1, 0
        %v1766 = vsel %vm1702, 1, 0
        %v1767 = vsel %vm1703, 1, 0
        %v1768 = vsel %vm1704, 1, 0
        %v1769 = vsel %vm1705, 1, 0
        %v1770 = vsel %vm1706, 1, 0
        %v1771 = vsel %vm1707, 1, 0
        %v1772 = vsel %vm1708, 1, 0
        %v1773 = vsel %vm1709, 1, 0
        %v1774 = vsel %vm1710, 1, 0
        %v1775 = vsel %vm1711, 1, 0
        %v1776 = vsel %vm1712, 1, 0
        %v1777 = vsel %vm1713, 1, 0
        %v1778 = vsel %vm1714, 1, 0
        %v1779 = vsel %vm1715, 1, 0
        %v1780 = vsel %vm1716, 1, 0
        %v1781 = vsel %vm1717, 1, 0
        %v1782 = vsel %vm1718, 1, 0
        %v1783 = vsel %vm1719, 1, 0
        %v1784 = vsel %vm1720, 1, 0
        %v1785 = vsel %vm1721, 1, 0
        %v1786 = vsel %vm1722, 1, 0
        %v1787 = vsel %vm1723, 1, 0
        %v1788 = vsel %vm1724, 1, 0
        %v1789 = vsel %vm1725, 1, 0
        %v1790 = vsel %vm1726, 1, 0
        %v1791 = vsel %vm1727, 1, 0
        %v1792 = vsel %vm1728, 1, 0
        %v1793 = vsel %vm1729, 1, 0
        %v1794 = vsel %vm1730, 1, 0
        %v1795 = vsel %vm1731, 1, 0
        %v1796 = vsel %vm1732, 1, 0
        %v1797 = vsel %vm1733, 1, 0
        %v1798 = vsel %vm1734, 1, 0
        %v1799 = vsel %vm1735, 1, 0
        %v1800 = vsel %vm1736, 1, 0
        %v1801 = vsel %vm1737, 1, 0
        %v1802 = vsel %vm1738, 1, 0
        %v1803 = vsel %vm1739, 1, 0
        %v1804 = vsel %vm1740, 1, 0
        %v1805 = vsel %vm1741, 1, 0
        %v1806 = vsel %vm1742, 1, 0
        %v1807 = vsel %vm1743, 1, 0
        %v1808 = vsel %vm1744, 1, 0
        %v1809 = vsel %vm1745, 1, 0
        %v1810 = vsel %vm1746, 1, 0
        %v1811 = vsel %vm1747, 1, 0
        %v1812 = vsel %vm1748, 1, 0
        %v1813 = vsel %vm1749, 1, 0
        %v1814 = vsel %vm1750, 1, 0
        %v1815 = vsel %vm1751, 1, 0
        %v1816 = vsel %vm1752, 1, 0
        %v1817 = vsel %vm1753, 1, 0
        %v1818 = vsel %vm1754, 1, 0
        %v1819 = vcvt.s32.f32 %v1755
        %v1820 = vcvt.s32.f32 %v1756
        %v1821 = vcvt.s32.f32 %v1757
        %v1822 = vcvt.s32.f32 %v1758
        %v1823 = vcvt.s32.f32 %v1759
        %v1824 = vcvt.s32.f32 %v1760
        %v1825 = vcvt.s32.f32 %v1761
        %v1826 = vcvt.s32.f32 %v1762
        %v1827 = vcvt.s32.f32 %v1763
        %v1828 = vcvt.s32.f32 %v1764
        %v1829 = vcvt.s32.f32 %v1765
        %v1830 = vcvt.s32.f32 %v1766
        %v1831 = vcvt.s32.f32 %v1767
        %v1832 = vcvt.s32.f32 %v1768
        %v1833 = vcvt.s32.f32 %v1769
        %v1834 = vcvt.s32.f32 %v1770
        %v1835 = vcvt.s32.f32 %v1771
        %v1836 = vcvt.s32.f32 %v1772
        %v1837 = vcvt.s32.f32 %v1773
        %v1838 = vcvt.s32.f32 %v1774
        %v1839 = vcvt.s32.f32 %v1775
        %v1840 = vcvt.s32.f32 %v1776
        %v1841 = vcvt.s32.f32 %v1777
        %v1842 = vcvt.s32.f32 %v1778
        %v1843 = vcvt.s32.f32 %v1779
        %v1844 = vcvt.s32.f32 %v1780
        %v1845 = vcvt.s32.f32 %v1781
        %v1846 = vcvt.s32.f32 %v1782
        %v1847 = vcvt.s32.f32 %v1783
        %v1848 = vcvt.s32.f32 %v1784
        %v1849 = vcvt.s32.f32 %v1785
        %v1850 = vcvt.s32.f32 %v1786
        %v1851 = vcvt.s32.f32 %v1787
        %v1852 = vcvt.s32.f32 %v1788
        %v1853 = vcvt.s32.f32 %v1789
        %v1854 = vcvt.s32.f32 %v1790
        %v1855 = vcvt.s32.f32 %v1791
        %v1856 = vcvt.s32.f32 %v1792
        %v1857 = vcvt.s32.f32 %v1793
        %v1858 = vcvt.s32.f32 %v1794
        %v1859 = vcvt.s32.f32 %v1795
        %v1860 = vcvt.s32.f32 %v1796
        %v1861 = vcvt.s32.f32 %v1797
        %v1862 = vcvt.s32.f32 %v1798
        %v1863 = vcvt.s32.f32 %v1799
        %v1864 = vcvt.s32.f32 %v1800
        %v1865 = vcvt.s32.f32 %v1801
        %v1866 = vcvt.s32.f32 %v1802
        %v1867 = vcvt.s32.f32 %v1803
        %v1868 = vcvt.s32.f32 %v1804
        %v1869 = vcvt.s32.f32 %v1805
        %v1870 = vcvt.s32.f32 %v1806
        %v1871 = vcvt.s32.f32 %v1807
        %v1872 = vcvt.s32.f32 %v1808
        %v1873 = vcvt.s32.f32 %v1809
        %v1874 = vcvt.s32.f32 %v1810
        %v1875 = vcvt.s32.f32 %v1811
        %v1876 = vcvt.s32.f32 %v1812
        %v1877 = vcvt.s32.f32 %v1813
        %v1878 = vcvt.s32.f32 %v1814
        %v1879 = vcvt.s32.f32 %v1815
        %v1880 = vcvt.s32.f32 %v1816
        %v1881 = vcvt.s32.f32 %v1817
        %v1882 = vcvt.s32.f32 %v1818
        %v1883 = vpack.c.bf16 %v1820, %v1819
        %v1884 = vpack.c.bf16 %v1822, %v1821
        %v1885 = vpack.c.bf16 %v1824, %v1823
        %v1886 = vpack.c.bf16 %v1826, %v1825
        %v1887 = vpack.c.bf16 %v1828, %v1827
        %v1888 = vpack.c.bf16 %v1830, %v1829
        %v1889 = vpack.c.bf16 %v1832, %v1831
        %v1890 = vpack.c.bf16 %v1834, %v1833
        %v1891 = vpack.c.bf16 %v1836, %v1835
        %v1892 = vpack.c.bf16 %v1838, %v1837
        %v1893 = vpack.c.bf16 %v1840, %v1839
        %v1894 = vpack.c.bf16 %v1842, %v1841
        %v1895 = vpack.c.bf16 %v1844, %v1843
        %v1896 = vpack.c.bf16 %v1846, %v1845
        %v1897 = vpack.c.bf16 %v1848, %v1847
        %v1898 = vpack.c.bf16 %v1850, %v1849
        %v1899 = vpack.c.bf16 %v1852, %v1851
        %v1900 = vpack.c.bf16 %v1854, %v1853
        %v1901 = vpack.c.bf16 %v1856, %v1855
        %v1902 = vpack.c.bf16 %v1858, %v1857
        %v1903 = vpack.c.bf16 %v1860, %v1859
        %v1904 = vpack.c.bf16 %v1862, %v1861
        %v1905 = vpack.c.bf16 %v1864, %v1863
        %v1906 = vpack.c.bf16 %v1866, %v1865
        %v1907 = vpack.c.bf16 %v1868, %v1867
        %v1908 = vpack.c.bf16 %v1870, %v1869
        %v1909 = vpack.c.bf16 %v1872, %v1871
        %v1910 = vpack.c.bf16 %v1874, %v1873
        %v1911 = vpack.c.bf16 %v1876, %v1875
        %v1912 = vpack.c.bf16 %v1878, %v1877
        %v1913 = vpack.c.bf16 %v1880, %v1879
        %v1914 = vpack.c.bf16 %v1882, %v1881
        %v1915 = vlaneseq
        %v1916 = vshrl.u32 %v1915, 7
        %v1917 = vadd.s32 %v1916, 8
        %v1918 = vadd.s32 %v1916, 16
        %v1919 = vadd.s32 %v1916, 24
        %v1920 = vld [vmem:[%s634] sm:$0xf]
        %v1921 = vperm.slane %v1920, 0
        %v1922 = vperm.slane %v1920, 1
        %v1923 = vperm.slane %v1920, 2
        %v1924 = vperm.slane %v1920, 3
        %vm1925 = vcmp.eq.s32.totalorder %v1916, %v1921
        %vm1926 = vcmp.eq.s32.totalorder %v1916, %v1922
        %vm1927 = vcmp.eq.s32.totalorder %v1916, %v1923
        %vm1928 = vcmp.eq.s32.totalorder %v1916, %v1924
        %vm1929 = vcmp.eq.s32.totalorder %v1917, %v1921
        %vm1930 = vcmp.eq.s32.totalorder %v1917, %v1922
        %vm1931 = vcmp.eq.s32.totalorder %v1917, %v1923
        %vm1932 = vcmp.eq.s32.totalorder %v1917, %v1924
        %vm1933 = vcmp.eq.s32.totalorder %v1918, %v1921
        %vm1934 = vcmp.eq.s32.totalorder %v1918, %v1922
        %vm1935 = vcmp.eq.s32.totalorder %v1918, %v1923
        %vm1936 = vcmp.eq.s32.totalorder %v1918, %v1924
        %vm1937 = vcmp.eq.s32.totalorder %v1919, %v1921
        %vm1938 = vcmp.eq.s32.totalorder %v1919, %v1922
        %vm1939 = vcmp.eq.s32.totalorder %v1919, %v1923
        %vm1940 = vcmp.eq.s32.totalorder %v1919, %v1924
        %v1941 = vsel %vm1925, 1, 0
        %v1942 = vsel %vm1926, 1, 0
        %v1943 = vsel %vm1927, 1, 0
        %v1944 = vsel %vm1928, 1, 0
        %v1945 = vsel %vm1929, 1, 0
        %v1946 = vsel %vm1930, 1, 0
        %v1947 = vsel %vm1931, 1, 0
        %v1948 = vsel %vm1932, 1, 0
        %v1949 = vsel %vm1933, 1, 0
        %v1950 = vsel %vm1934, 1, 0
        %v1951 = vsel %vm1935, 1, 0
        %v1952 = vsel %vm1936, 1, 0
        %v1953 = vsel %vm1937, 1, 0
        %v1954 = vsel %vm1938, 1, 0
        %v1955 = vsel %vm1939, 1, 0
        %v1956 = vsel %vm1940, 1, 0
        %v1957 = vcvt.s32.f32 %v1941
        %v1958 = vcvt.s32.f32 %v1942
        %v1959 = vcvt.s32.f32 %v1943
        %v1960 = vcvt.s32.f32 %v1944
        %v1961 = vcvt.s32.f32 %v1945
        %v1962 = vcvt.s32.f32 %v1946
        %v1963 = vcvt.s32.f32 %v1947
        %v1964 = vcvt.s32.f32 %v1948
        %v1965 = vcvt.s32.f32 %v1949
        %v1966 = vcvt.s32.f32 %v1950
        %v1967 = vcvt.s32.f32 %v1951
        %v1968 = vcvt.s32.f32 %v1952
        %v1969 = vcvt.s32.f32 %v1953
        %v1970 = vcvt.s32.f32 %v1954
        %v1971 = vcvt.s32.f32 %v1955
        %v1972 = vcvt.s32.f32 %v1956
        %v1973 = vpack.c.bf16 %v1961, %v1957
        %v1974 = vpack.c.bf16 %v1962, %v1958
        %v1975 = vpack.c.bf16 %v1963, %v1959
        %v1976 = vpack.c.bf16 %v1964, %v1960
        %v1977 = vpack.c.bf16 %v1969, %v1965
        %v1978 = vpack.c.bf16 %v1970, %v1966
        %v1979 = vpack.c.bf16 %v1971, %v1967
        %v1980 = vpack.c.bf16 %v1972, %v1968
        %v1981 = vld [vmem:[#allocation3] sm:$0xff]
        %v1982 = vld [vmem:[#allocation3 + $0x8] sm:$0xff]
        %v1983 = vld [vmem:[#allocation3 + $0x10] sm:$0xff]
        %v1984 = vld [vmem:[#allocation3 + $0x18] sm:$0xff]
        %v1985 = vld [vmem:[#allocation4] sm:$0xff]
        %v1986 = vld [vmem:[#allocation4 + $0x8] sm:$0xff]
        %v1987 = vld [vmem:[#allocation4 + $0x10] sm:$0xff]
        %v1988 = vld [vmem:[#allocation4 + $0x18] sm:$0xff]
        %v1993 = vunpack.c.l.b16 %v1985
        %v1994 = vunpack.c.h.b16 %v1985
        %v1995 = vunpack.c.l.b16 %v1986
        %v1996 = vunpack.c.h.b16 %v1986
        %v1997 = vunpack.c.l.b16 %v1987
        %v1998 = vunpack.c.h.b16 %v1987
        %v1999 = vunpack.c.l.b16 %v1988
        %v2000 = vunpack.c.h.b16 %v1988
        %v2001 = vpack.c.b16 %v1995, %v1993
        %v2002 = vpack.c.b16 %v1996, %v1994
        %v2003 = vpack.c.b16 %v1999, %v1997
        %v2004 = vpack.c.b16 %v2000, %v1998
        %vm2009 = vcmask 261120
        %v2011 = vsel %vm2009, %v1883, 0
        %v2014 = vsel %vm2009, %v1884, 0
        %v2017 = vsel %vm2009, %v1885, 0
        %v2020 = vsel %vm2009, %v1886, 0
        %v2023 = vsel %vm2009, %v1887, 0
        %v2026 = vsel %vm2009, %v1888, 0
        %v2029 = vsel %vm2009, %v1889, 0
        %v2032 = vsel %vm2009, %v1890, 0
        %v2035 = vsel %vm2009, %v1891, 0
        %v2038 = vsel %vm2009, %v1892, 0
        %v2041 = vsel %vm2009, %v1893, 0
        %v2044 = vsel %vm2009, %v1894, 0
        %v2047 = vsel %vm2009, %v1895, 0
        %v2050 = vsel %vm2009, %v1896, 0
        %v2053 = vsel %vm2009, %v1897, 0
        %v2056 = vsel %vm2009, %v1898, 0
        %v2059 = vsel %vm2009, %v1899, 0
        %v2062 = vsel %vm2009, %v1900, 0
        %v2065 = vsel %vm2009, %v1901, 0
        %v2068 = vsel %vm2009, %v1902, 0
        %v2071 = vsel %vm2009, %v1903, 0
        %v2074 = vsel %vm2009, %v1904, 0
        %v2077 = vsel %vm2009, %v1905, 0
        %v2080 = vsel %vm2009, %v1906, 0
        %v2083 = vsel %vm2009, %v1907, 0
        %v2086 = vsel %vm2009, %v1908, 0
        %v2089 = vsel %vm2009, %v1909, 0
        %v2092 = vsel %vm2009, %v1910, 0
        %v2095 = vsel %vm2009, %v1911, 0
        %v2098 = vsel %vm2009, %v1912, 0
        %v2101 = vsel %vm2009, %v1913, 0
        %v2104 = vsel %vm2009, %v1914, 0
        %2106 = vmatpush.bf16.msra.mxu0 0
        %2107 = vmatpush.bf16.msra.mxu0 0
        %2108 = vmatpush.bf16.msra.mxu0 0
        %2109 = vmatpush.bf16.msra.mxu0 0
        %2110 = vmatpush.bf16.msra.mxu0 0
        %2111 = vmatpush.bf16.msra.mxu0 0
        %2112 = vmatpush.bf16.msra.mxu0 %v2003
        %2113 = vmatpush.bf16.msra.mxu0 %v2001
        %2114 = vmatmul.bf16.gmra.mxu0 %v2011
        %v2115 = vpop.f32.mrf.mxu0
        %v2116 = vadd.f32 0.0, %v2115
        %v2117 = vpop.f32.mrf.mxu0
        %v2118 = vadd.f32 0.0, %v2117
        %2119 = vmatmul.bf16.gmra.mxu0 %v2014
        %v2120 = vpop.f32.mrf.mxu0
        %v2121 = vadd.f32 0.0, %v2120
        %v2122 = vpop.f32.mrf.mxu0
        %v2123 = vadd.f32 0.0, %v2122
        %2124 = vmatmul.bf16.gmra.mxu0 %v2017
        %v2125 = vpop.f32.mrf.mxu0
        %v2126 = vadd.f32 0.0, %v2125
        %v2127 = vpop.f32.mrf.mxu0
        %v2128 = vadd.f32 0.0, %v2127
        %2129 = vmatmul.bf16.gmra.mxu0 %v2020
        %v2130 = vpop.f32.mrf.mxu0
        %v2131 = vadd.f32 0.0, %v2130
        %v2132 = vpop.f32.mrf.mxu0
        %v2133 = vadd.f32 0.0, %v2132
        %2134 = vmatmul.bf16.gmra.mxu0 %v2023
        %v2135 = vpop.f32.mrf.mxu0
        %v2136 = vadd.f32 0.0, %v2135
        %v2137 = vpop.f32.mrf.mxu0
        %v2138 = vadd.f32 0.0, %v2137
        %2139 = vmatmul.bf16.gmra.mxu0 %v2026
        %v2140 = vpop.f32.mrf.mxu0
        %v2141 = vadd.f32 0.0, %v2140
        %v2142 = vpop.f32.mrf.mxu0
        %v2143 = vadd.f32 0.0, %v2142
        %2144 = vmatmul.bf16.gmra.mxu0 %v2029
        %v2145 = vpop.f32.mrf.mxu0
        %v2146 = vadd.f32 0.0, %v2145
        %v2147 = vpop.f32.mrf.mxu0
        %v2148 = vadd.f32 0.0, %v2147
        %2149 = vmatmul.bf16.gmra.mxu0 %v2032
        %v2150 = vpop.f32.mrf.mxu0
        %v2151 = vadd.f32 0.0, %v2150
        %v2152 = vpop.f32.mrf.mxu0
        %v2153 = vadd.f32 0.0, %v2152
        %2154 = vmatmul.bf16.gmra.mxu0 %v2035
        %v2155 = vpop.f32.mrf.mxu0
        %v2156 = vadd.f32 0.0, %v2155
        %v2157 = vpop.f32.mrf.mxu0
        %v2158 = vadd.f32 0.0, %v2157
        %2159 = vmatmul.bf16.gmra.mxu0 %v2038
        %v2160 = vpop.f32.mrf.mxu0
        %v2161 = vadd.f32 0.0, %v2160
        %v2162 = vpop.f32.mrf.mxu0
        %v2163 = vadd.f32 0.0, %v2162
        %2164 = vmatmul.bf16.gmra.mxu0 %v2041
        %v2165 = vpop.f32.mrf.mxu0
        %v2166 = vadd.f32 0.0, %v2165
        %v2167 = vpop.f32.mrf.mxu0
        %v2168 = vadd.f32 0.0, %v2167
        %2169 = vmatmul.bf16.gmra.mxu0 %v2044
        %v2170 = vpop.f32.mrf.mxu0
        %v2171 = vadd.f32 0.0, %v2170
        %v2172 = vpop.f32.mrf.mxu0
        %v2173 = vadd.f32 0.0, %v2172
        %2174 = vmatmul.bf16.gmra.mxu0 %v2047
        %v2175 = vpop.f32.mrf.mxu0
        %v2176 = vadd.f32 0.0, %v2175
        %v2177 = vpop.f32.mrf.mxu0
        %v2178 = vadd.f32 0.0, %v2177
        %2179 = vmatmul.bf16.gmra.mxu0 %v2050
        %v2180 = vpop.f32.mrf.mxu0
        %v2181 = vadd.f32 0.0, %v2180
        %v2182 = vpop.f32.mrf.mxu0
        %v2183 = vadd.f32 0.0, %v2182
        %2184 = vmatmul.bf16.gmra.mxu0 %v2053
        %v2185 = vpop.f32.mrf.mxu0
        %v2186 = vadd.f32 0.0, %v2185
        %v2187 = vpop.f32.mrf.mxu0
        %v2188 = vadd.f32 0.0, %v2187
        %2189 = vmatmul.bf16.gmra.mxu0 %v2056
        %v2190 = vpop.f32.mrf.mxu0
        %v2191 = vadd.f32 0.0, %v2190
        %v2192 = vpop.f32.mrf.mxu0
        %v2193 = vadd.f32 0.0, %v2192
        %2194 = vmatmul.bf16.gmra.mxu0 %v2059
        %v2195 = vpop.f32.mrf.mxu0
        %v2196 = vadd.f32 0.0, %v2195
        %v2197 = vpop.f32.mrf.mxu0
        %v2198 = vadd.f32 0.0, %v2197
        %2199 = vmatmul.bf16.gmra.mxu0 %v2062
        %v2200 = vpop.f32.mrf.mxu0
        %v2201 = vadd.f32 0.0, %v2200
        %v2202 = vpop.f32.mrf.mxu0
        %v2203 = vadd.f32 0.0, %v2202
        %2204 = vmatmul.bf16.gmra.mxu0 %v2065
        %v2205 = vpop.f32.mrf.mxu0
        %v2206 = vadd.f32 0.0, %v2205
        %v2207 = vpop.f32.mrf.mxu0
        %v2208 = vadd.f32 0.0, %v2207
        %2209 = vmatmul.bf16.gmra.mxu0 %v2068
        %v2210 = vpop.f32.mrf.mxu0
        %v2211 = vadd.f32 0.0, %v2210
        %v2212 = vpop.f32.mrf.mxu0
        %v2213 = vadd.f32 0.0, %v2212
        %2214 = vmatmul.bf16.gmra.mxu0 %v2071
        %v2215 = vpop.f32.mrf.mxu0
        %v2216 = vadd.f32 0.0, %v2215
        %v2217 = vpop.f32.mrf.mxu0
        %v2218 = vadd.f32 0.0, %v2217
        %2219 = vmatmul.bf16.gmra.mxu0 %v2074
        %v2220 = vpop.f32.mrf.mxu0
        %v2221 = vadd.f32 0.0, %v2220
        %v2222 = vpop.f32.mrf.mxu0
        %v2223 = vadd.f32 0.0, %v2222
        %2224 = vmatmul.bf16.gmra.mxu0 %v2077
        %v2225 = vpop.f32.mrf.mxu0
        %v2226 = vadd.f32 0.0, %v2225
        %v2227 = vpop.f32.mrf.mxu0
        %v2228 = vadd.f32 0.0, %v2227
        %2229 = vmatmul.bf16.gmra.mxu0 %v2080
        %v2230 = vpop.f32.mrf.mxu0
        %v2231 = vadd.f32 0.0, %v2230
        %v2232 = vpop.f32.mrf.mxu0
        %v2233 = vadd.f32 0.0, %v2232
        %2234 = vmatmul.bf16.gmra.mxu0 %v2083
        %v2235 = vpop.f32.mrf.mxu0
        %v2236 = vadd.f32 0.0, %v2235
        %v2237 = vpop.f32.mrf.mxu0
        %v2238 = vadd.f32 0.0, %v2237
        %2239 = vmatmul.bf16.gmra.mxu0 %v2086
        %v2240 = vpop.f32.mrf.mxu0
        %v2241 = vadd.f32 0.0, %v2240
        %v2242 = vpop.f32.mrf.mxu0
        %v2243 = vadd.f32 0.0, %v2242
        %2244 = vmatmul.bf16.gmra.mxu0 %v2089
        %v2245 = vpop.f32.mrf.mxu0
        %v2246 = vadd.f32 0.0, %v2245
        %v2247 = vpop.f32.mrf.mxu0
        %v2248 = vadd.f32 0.0, %v2247
        %2249 = vmatmul.bf16.gmra.mxu0 %v2092
        %v2250 = vpop.f32.mrf.mxu0
        %v2251 = vadd.f32 0.0, %v2250
        %v2252 = vpop.f32.mrf.mxu0
        %v2253 = vadd.f32 0.0, %v2252
        %2254 = vmatmul.bf16.gmra.mxu0 %v2095
        %v2255 = vpop.f32.mrf.mxu0
        %v2256 = vadd.f32 0.0, %v2255
        %v2257 = vpop.f32.mrf.mxu0
        %v2258 = vadd.f32 0.0, %v2257
        %2259 = vmatmul.bf16.gmra.mxu0 %v2098
        %v2260 = vpop.f32.mrf.mxu0
        %v2261 = vadd.f32 0.0, %v2260
        %v2262 = vpop.f32.mrf.mxu0
        %v2263 = vadd.f32 0.0, %v2262
        %2264 = vmatmul.bf16.gmra.mxu0 %v2101
        %v2265 = vpop.f32.mrf.mxu0
        %v2266 = vadd.f32 0.0, %v2265
        %v2267 = vpop.f32.mrf.mxu0
        %v2268 = vadd.f32 0.0, %v2267
        %2269 = vmatmul.bf16.gmra.mxu0 %v2104
        %v2270 = vpop.f32.mrf.mxu0
        %v2271 = vadd.f32 0.0, %v2270
        %v2272 = vpop.f32.mrf.mxu0
        %v2273 = vadd.f32 0.0, %v2272
        %2274 = vdwg.mxu0
        %2275 = vmatpush.bf16.msra.mxu0 0
        %2276 = vmatpush.bf16.msra.mxu0 0
        %2277 = vmatpush.bf16.msra.mxu0 0
        %2278 = vmatpush.bf16.msra.mxu0 0
        %2279 = vmatpush.bf16.msra.mxu0 0
        %2280 = vmatpush.bf16.msra.mxu0 0
        %2281 = vmatpush.bf16.msra.mxu0 %v2004
        %2282 = vmatpush.bf16.msra.mxu0 %v2002
        %2283 = vmatmul.bf16.gmra.mxu0 %v2011
        %v2284 = vpop.f32.mrf.mxu0
        %v2285 = vadd.f32 0.0, %v2284
        %v2286 = vpop.f32.mrf.mxu0
        %v2287 = vadd.f32 0.0, %v2286
        %2288 = vmatmul.bf16.gmra.mxu0 %v2014
        %v2289 = vpop.f32.mrf.mxu0
        %v2290 = vadd.f32 0.0, %v2289
        %v2291 = vpop.f32.mrf.mxu0
        %v2292 = vadd.f32 0.0, %v2291
        %2293 = vmatmul.bf16.gmra.mxu0 %v2017
        %v2294 = vpop.f32.mrf.mxu0
        %v2295 = vadd.f32 0.0, %v2294
        %v2296 = vpop.f32.mrf.mxu0
        %v2297 = vadd.f32 0.0, %v2296
        %2298 = vmatmul.bf16.gmra.mxu0 %v2020
        %v2299 = vpop.f32.mrf.mxu0
        %v2300 = vadd.f32 0.0, %v2299
        %v2301 = vpop.f32.mrf.mxu0
        %v2302 = vadd.f32 0.0, %v2301
        %2303 = vmatmul.bf16.gmra.mxu0 %v2023
        %v2304 = vpop.f32.mrf.mxu0
        %v2305 = vadd.f32 0.0, %v2304
        %v2306 = vpop.f32.mrf.mxu0
        %v2307 = vadd.f32 0.0, %v2306
        %2308 = vmatmul.bf16.gmra.mxu0 %v2026
        %v2309 = vpop.f32.mrf.mxu0
        %v2310 = vadd.f32 0.0, %v2309
        %v2311 = vpop.f32.mrf.mxu0
        %v2312 = vadd.f32 0.0, %v2311
        %2313 = vmatmul.bf16.gmra.mxu0 %v2029
        %v2314 = vpop.f32.mrf.mxu0
        %v2315 = vadd.f32 0.0, %v2314
        %v2316 = vpop.f32.mrf.mxu0
        %v2317 = vadd.f32 0.0, %v2316
        %2318 = vmatmul.bf16.gmra.mxu0 %v2032
        %v2319 = vpop.f32.mrf.mxu0
        %v2320 = vadd.f32 0.0, %v2319
        %v2321 = vpop.f32.mrf.mxu0
        %v2322 = vadd.f32 0.0, %v2321
        %2323 = vmatmul.bf16.gmra.mxu0 %v2035
        %v2324 = vpop.f32.mrf.mxu0
        %v2325 = vadd.f32 0.0, %v2324
        %v2326 = vpop.f32.mrf.mxu0
        %v2327 = vadd.f32 0.0, %v2326
        %2328 = vmatmul.bf16.gmra.mxu0 %v2038
        %v2329 = vpop.f32.mrf.mxu0
        %v2330 = vadd.f32 0.0, %v2329
        %v2331 = vpop.f32.mrf.mxu0
        %v2332 = vadd.f32 0.0, %v2331
        %2333 = vmatmul.bf16.gmra.mxu0 %v2041
        %v2334 = vpop.f32.mrf.mxu0
        %v2335 = vadd.f32 0.0, %v2334
        %v2336 = vpop.f32.mrf.mxu0
        %v2337 = vadd.f32 0.0, %v2336
        %2338 = vmatmul.bf16.gmra.mxu0 %v2044
        %v2339 = vpop.f32.mrf.mxu0
        %v2340 = vadd.f32 0.0, %v2339
        %v2341 = vpop.f32.mrf.mxu0
        %v2342 = vadd.f32 0.0, %v2341
        %2343 = vmatmul.bf16.gmra.mxu0 %v2047
        %v2344 = vpop.f32.mrf.mxu0
        %v2345 = vadd.f32 0.0, %v2344
        %v2346 = vpop.f32.mrf.mxu0
        %v2347 = vadd.f32 0.0, %v2346
        %2348 = vmatmul.bf16.gmra.mxu0 %v2050
        %v2349 = vpop.f32.mrf.mxu0
        %v2350 = vadd.f32 0.0, %v2349
        %v2351 = vpop.f32.mrf.mxu0
        %v2352 = vadd.f32 0.0, %v2351
        %2353 = vmatmul.bf16.gmra.mxu0 %v2053
        %v2354 = vpop.f32.mrf.mxu0
        %v2355 = vadd.f32 0.0, %v2354
        %v2356 = vpop.f32.mrf.mxu0
        %v2357 = vadd.f32 0.0, %v2356
        %2358 = vmatmul.bf16.gmra.mxu0 %v2056
        %v2359 = vpop.f32.mrf.mxu0
        %v2360 = vadd.f32 0.0, %v2359
        %v2361 = vpop.f32.mrf.mxu0
        %v2362 = vadd.f32 0.0, %v2361
        %2363 = vmatmul.bf16.gmra.mxu0 %v2059
        %v2364 = vpop.f32.mrf.mxu0
        %v2365 = vadd.f32 0.0, %v2364
        %v2366 = vpop.f32.mrf.mxu0
        %v2367 = vadd.f32 0.0, %v2366
        %2368 = vmatmul.bf16.gmra.mxu0 %v2062
        %v2369 = vpop.f32.mrf.mxu0
        %v2370 = vadd.f32 0.0, %v2369
        %v2371 = vpop.f32.mrf.mxu0
        %v2372 = vadd.f32 0.0, %v2371
        %2373 = vmatmul.bf16.gmra.mxu0 %v2065
        %v2374 = vpop.f32.mrf.mxu0
        %v2375 = vadd.f32 0.0, %v2374
        %v2376 = vpop.f32.mrf.mxu0
        %v2377 = vadd.f32 0.0, %v2376
        %2378 = vmatmul.bf16.gmra.mxu0 %v2068
        %v2379 = vpop.f32.mrf.mxu0
        %v2380 = vadd.f32 0.0, %v2379
        %v2381 = vpop.f32.mrf.mxu0
        %v2382 = vadd.f32 0.0, %v2381
        %2383 = vmatmul.bf16.gmra.mxu0 %v2071
        %v2384 = vpop.f32.mrf.mxu0
        %v2385 = vadd.f32 0.0, %v2384
        %v2386 = vpop.f32.mrf.mxu0
        %v2387 = vadd.f32 0.0, %v2386
        %2388 = vmatmul.bf16.gmra.mxu0 %v2074
        %v2389 = vpop.f32.mrf.mxu0
        %v2390 = vadd.f32 0.0, %v2389
        %v2391 = vpop.f32.mrf.mxu0
        %v2392 = vadd.f32 0.0, %v2391
        %2393 = vmatmul.bf16.gmra.mxu0 %v2077
        %v2394 = vpop.f32.mrf.mxu0
        %v2395 = vadd.f32 0.0, %v2394
        %v2396 = vpop.f32.mrf.mxu0
        %v2397 = vadd.f32 0.0, %v2396
        %2398 = vmatmul.bf16.gmra.mxu0 %v2080
        %v2399 = vpop.f32.mrf.mxu0
        %v2400 = vadd.f32 0.0, %v2399
        %v2401 = vpop.f32.mrf.mxu0
        %v2402 = vadd.f32 0.0, %v2401
        %2403 = vmatmul.bf16.gmra.mxu0 %v2083
        %v2404 = vpop.f32.mrf.mxu0
        %v2405 = vadd.f32 0.0, %v2404
        %v2406 = vpop.f32.mrf.mxu0
        %v2407 = vadd.f32 0.0, %v2406
        %2408 = vmatmul.bf16.gmra.mxu0 %v2086
        %v2409 = vpop.f32.mrf.mxu0
        %v2410 = vadd.f32 0.0, %v2409
        %v2411 = vpop.f32.mrf.mxu0
        %v2412 = vadd.f32 0.0, %v2411
        %2413 = vmatmul.bf16.gmra.mxu0 %v2089
        %v2414 = vpop.f32.mrf.mxu0
        %v2415 = vadd.f32 0.0, %v2414
        %v2416 = vpop.f32.mrf.mxu0
        %v2417 = vadd.f32 0.0, %v2416
        %2418 = vmatmul.bf16.gmra.mxu0 %v2092
        %v2419 = vpop.f32.mrf.mxu0
        %v2420 = vadd.f32 0.0, %v2419
        %v2421 = vpop.f32.mrf.mxu0
        %v2422 = vadd.f32 0.0, %v2421
        %2423 = vmatmul.bf16.gmra.mxu0 %v2095
        %v2424 = vpop.f32.mrf.mxu0
        %v2425 = vadd.f32 0.0, %v2424
        %v2426 = vpop.f32.mrf.mxu0
        %v2427 = vadd.f32 0.0, %v2426
        %2428 = vmatmul.bf16.gmra.mxu0 %v2098
        %v2429 = vpop.f32.mrf.mxu0
        %v2430 = vadd.f32 0.0, %v2429
        %v2431 = vpop.f32.mrf.mxu0
        %v2432 = vadd.f32 0.0, %v2431
        %2433 = vmatmul.bf16.gmra.mxu0 %v2101
        %v2434 = vpop.f32.mrf.mxu0
        %v2435 = vadd.f32 0.0, %v2434
        %v2436 = vpop.f32.mrf.mxu0
        %v2437 = vadd.f32 0.0, %v2436
        %2438 = vmatmul.bf16.gmra.mxu0 %v2104
        %v2439 = vpop.f32.mrf.mxu0
        %v2440 = vadd.f32 0.0, %v2439
        %v2441 = vpop.f32.mrf.mxu0
        %v2442 = vadd.f32 0.0, %v2441
        %2443 = vdwg.mxu0
        %v2448 = vunpack.c.l.b16 %v1981
        %v2449 = vunpack.c.h.b16 %v1981
        %v2450 = vunpack.c.l.b16 %v1982
        %v2451 = vunpack.c.h.b16 %v1982
        %v2452 = vunpack.c.l.b16 %v1983
        %v2453 = vunpack.c.h.b16 %v1983
        %v2454 = vunpack.c.l.b16 %v1984
        %v2455 = vunpack.c.h.b16 %v1984
        %v2456 = vpack.c.b16 %v2450, %v2448
        %v2457 = vpack.c.b16 %v2451, %v2449
        %v2458 = vpack.c.b16 %v2454, %v2452
        %v2459 = vpack.c.b16 %v2455, %v2453
        %v2465 = vsel %vm2009, %v1403, 0
        %v2468 = vsel %vm2009, %v1404, 0
        %v2471 = vsel %vm2009, %v1405, 0
        %v2474 = vsel %vm2009, %v1406, 0
        %v2477 = vsel %vm2009, %v1407, 0
        %v2480 = vsel %vm2009, %v1408, 0
        %v2483 = vsel %vm2009, %v1409, 0
        %v2486 = vsel %vm2009, %v1410, 0
        %v2489 = vsel %vm2009, %v1411, 0
        %v2492 = vsel %vm2009, %v1412, 0
        %v2495 = vsel %vm2009, %v1413, 0
        %v2498 = vsel %vm2009, %v1414, 0
        %v2501 = vsel %vm2009, %v1415, 0
        %v2504 = vsel %vm2009, %v1416, 0
        %v2507 = vsel %vm2009, %v1417, 0
        %v2510 = vsel %vm2009, %v1418, 0
        %v2513 = vsel %vm2009, %v1419, 0
        %v2516 = vsel %vm2009, %v1420, 0
        %v2519 = vsel %vm2009, %v1421, 0
        %v2522 = vsel %vm2009, %v1422, 0
        %v2525 = vsel %vm2009, %v1423, 0
        %v2528 = vsel %vm2009, %v1424, 0
        %v2531 = vsel %vm2009, %v1425, 0
        %v2534 = vsel %vm2009, %v1426, 0
        %v2537 = vsel %vm2009, %v1427, 0
        %v2540 = vsel %vm2009, %v1428, 0
        %v2543 = vsel %vm2009, %v1429, 0
        %v2546 = vsel %vm2009, %v1430, 0
        %v2549 = vsel %vm2009, %v1431, 0
        %v2552 = vsel %vm2009, %v1432, 0
        %v2555 = vsel %vm2009, %v1433, 0
        %v2558 = vsel %vm2009, %v1434, 0
        %2560 = vmatpush.bf16.msra.mxu0 0
        %2561 = vmatpush.bf16.msra.mxu0 0
        %2562 = vmatpush.bf16.msra.mxu0 0
        %2563 = vmatpush.bf16.msra.mxu0 0
        %2564 = vmatpush.bf16.msra.mxu0 0
        %2565 = vmatpush.bf16.msra.mxu0 0
        %2566 = vmatpush.bf16.msra.mxu0 %v2458
        %2567 = vmatpush.bf16.msra.mxu0 %v2456
        %2568 = vmatmul.bf16.gmra.mxu0 %v2465
        %v2569 = vpop.f32.mrf.mxu0
        %v2570 = vadd.f32 %v2116, %v2569
        %v2571 = vpop.f32.mrf.mxu0
        %v2572 = vadd.f32 %v2118, %v2571
        %2573 = vmatmul.bf16.gmra.mxu0 %v2468
        %v2574 = vpop.f32.mrf.mxu0
        %v2575 = vadd.f32 %v2121, %v2574
        %v2576 = vpop.f32.mrf.mxu0
        %v2577 = vadd.f32 %v2123, %v2576
        %2578 = vmatmul.bf16.gmra.mxu0 %v2471
        %v2579 = vpop.f32.mrf.mxu0
        %v2580 = vadd.f32 %v2126, %v2579
        %v2581 = vpop.f32.mrf.mxu0
        %v2582 = vadd.f32 %v2128, %v2581
        %2583 = vmatmul.bf16.gmra.mxu0 %v2474
        %v2584 = vpop.f32.mrf.mxu0
        %v2585 = vadd.f32 %v2131, %v2584
        %v2586 = vpop.f32.mrf.mxu0
        %v2587 = vadd.f32 %v2133, %v2586
        %2588 = vmatmul.bf16.gmra.mxu0 %v2477
        %v2589 = vpop.f32.mrf.mxu0
        %v2590 = vadd.f32 %v2136, %v2589
        %v2591 = vpop.f32.mrf.mxu0
        %v2592 = vadd.f32 %v2138, %v2591
        %2593 = vmatmul.bf16.gmra.mxu0 %v2480
        %v2594 = vpop.f32.mrf.mxu0
        %v2595 = vadd.f32 %v2141, %v2594
        %v2596 = vpop.f32.mrf.mxu0
        %v2597 = vadd.f32 %v2143, %v2596
        %2598 = vmatmul.bf16.gmra.mxu0 %v2483
        %v2599 = vpop.f32.mrf.mxu0
        %v2600 = vadd.f32 %v2146, %v2599
        %v2601 = vpop.f32.mrf.mxu0
        %v2602 = vadd.f32 %v2148, %v2601
        %2603 = vmatmul.bf16.gmra.mxu0 %v2486
        %v2604 = vpop.f32.mrf.mxu0
        %v2605 = vadd.f32 %v2151, %v2604
        %v2606 = vpop.f32.mrf.mxu0
        %v2607 = vadd.f32 %v2153, %v2606
        %2608 = vmatmul.bf16.gmra.mxu0 %v2489
        %v2609 = vpop.f32.mrf.mxu0
        %v2610 = vadd.f32 %v2156, %v2609
        %v2611 = vpop.f32.mrf.mxu0
        %v2612 = vadd.f32 %v2158, %v2611
        %2613 = vmatmul.bf16.gmra.mxu0 %v2492
        %v2614 = vpop.f32.mrf.mxu0
        %v2615 = vadd.f32 %v2161, %v2614
        %v2616 = vpop.f32.mrf.mxu0
        %v2617 = vadd.f32 %v2163, %v2616
        %2618 = vmatmul.bf16.gmra.mxu0 %v2495
        %v2619 = vpop.f32.mrf.mxu0
        %v2620 = vadd.f32 %v2166, %v2619
        %v2621 = vpop.f32.mrf.mxu0
        %v2622 = vadd.f32 %v2168, %v2621
        %2623 = vmatmul.bf16.gmra.mxu0 %v2498
        %v2624 = vpop.f32.mrf.mxu0
        %v2625 = vadd.f32 %v2171, %v2624
        %v2626 = vpop.f32.mrf.mxu0
        %v2627 = vadd.f32 %v2173, %v2626
        %2628 = vmatmul.bf16.gmra.mxu0 %v2501
        %v2629 = vpop.f32.mrf.mxu0
        %v2630 = vadd.f32 %v2176, %v2629
        %v2631 = vpop.f32.mrf.mxu0
        %v2632 = vadd.f32 %v2178, %v2631
        %2633 = vmatmul.bf16.gmra.mxu0 %v2504
        %v2634 = vpop.f32.mrf.mxu0
        %v2635 = vadd.f32 %v2181, %v2634
        %v2636 = vpop.f32.mrf.mxu0
        %v2637 = vadd.f32 %v2183, %v2636
        %2638 = vmatmul.bf16.gmra.mxu0 %v2507
        %v2639 = vpop.f32.mrf.mxu0
        %v2640 = vadd.f32 %v2186, %v2639
        %v2641 = vpop.f32.mrf.mxu0
        %v2642 = vadd.f32 %v2188, %v2641
        %2643 = vmatmul.bf16.gmra.mxu0 %v2510
        %v2644 = vpop.f32.mrf.mxu0
        %v2645 = vadd.f32 %v2191, %v2644
        %v2646 = vpop.f32.mrf.mxu0
        %v2647 = vadd.f32 %v2193, %v2646
        %2648 = vmatmul.bf16.gmra.mxu0 %v2513
        %v2649 = vpop.f32.mrf.mxu0
        %v2650 = vadd.f32 %v2196, %v2649
        %v2651 = vpop.f32.mrf.mxu0
        %v2652 = vadd.f32 %v2198, %v2651
        %2653 = vmatmul.bf16.gmra.mxu0 %v2516
        %v2654 = vpop.f32.mrf.mxu0
        %v2655 = vadd.f32 %v2201, %v2654
        %v2656 = vpop.f32.mrf.mxu0
        %v2657 = vadd.f32 %v2203, %v2656
        %2658 = vmatmul.bf16.gmra.mxu0 %v2519
        %v2659 = vpop.f32.mrf.mxu0
        %v2660 = vadd.f32 %v2206, %v2659
        %v2661 = vpop.f32.mrf.mxu0
        %v2662 = vadd.f32 %v2208, %v2661
        %2663 = vmatmul.bf16.gmra.mxu0 %v2522
        %v2664 = vpop.f32.mrf.mxu0
        %v2665 = vadd.f32 %v2211, %v2664
        %v2666 = vpop.f32.mrf.mxu0
        %v2667 = vadd.f32 %v2213, %v2666
        %2668 = vmatmul.bf16.gmra.mxu0 %v2525
        %v2669 = vpop.f32.mrf.mxu0
        %v2670 = vadd.f32 %v2216, %v2669
        %v2671 = vpop.f32.mrf.mxu0
        %v2672 = vadd.f32 %v2218, %v2671
        %2673 = vmatmul.bf16.gmra.mxu0 %v2528
        %v2674 = vpop.f32.mrf.mxu0
        %v2675 = vadd.f32 %v2221, %v2674
        %v2676 = vpop.f32.mrf.mxu0
        %v2677 = vadd.f32 %v2223, %v2676
        %2678 = vmatmul.bf16.gmra.mxu0 %v2531
        %v2679 = vpop.f32.mrf.mxu0
        %v2680 = vadd.f32 %v2226, %v2679
        %v2681 = vpop.f32.mrf.mxu0
        %v2682 = vadd.f32 %v2228, %v2681
        %2683 = vmatmul.bf16.gmra.mxu0 %v2534
        %v2684 = vpop.f32.mrf.mxu0
        %v2685 = vadd.f32 %v2231, %v2684
        %v2686 = vpop.f32.mrf.mxu0
        %v2687 = vadd.f32 %v2233, %v2686
        %2688 = vmatmul.bf16.gmra.mxu0 %v2537
        %v2689 = vpop.f32.mrf.mxu0
        %v2690 = vadd.f32 %v2236, %v2689
        %v2691 = vpop.f32.mrf.mxu0
        %v2692 = vadd.f32 %v2238, %v2691
        %2693 = vmatmul.bf16.gmra.mxu0 %v2540
        %v2694 = vpop.f32.mrf.mxu0
        %v2695 = vadd.f32 %v2241, %v2694
        %v2696 = vpop.f32.mrf.mxu0
        %v2697 = vadd.f32 %v2243, %v2696
        %2698 = vmatmul.bf16.gmra.mxu0 %v2543
        %v2699 = vpop.f32.mrf.mxu0
        %v2700 = vadd.f32 %v2246, %v2699
        %v2701 = vpop.f32.mrf.mxu0
        %v2702 = vadd.f32 %v2248, %v2701
        %2703 = vmatmul.bf16.gmra.mxu0 %v2546
        %v2704 = vpop.f32.mrf.mxu0
        %v2705 = vadd.f32 %v2251, %v2704
        %v2706 = vpop.f32.mrf.mxu0
        %v2707 = vadd.f32 %v2253, %v2706
        %2708 = vmatmul.bf16.gmra.mxu0 %v2549
        %v2709 = vpop.f32.mrf.mxu0
        %v2710 = vadd.f32 %v2256, %v2709
        %v2711 = vpop.f32.mrf.mxu0
        %v2712 = vadd.f32 %v2258, %v2711
        %2713 = vmatmul.bf16.gmra.mxu0 %v2552
        %v2714 = vpop.f32.mrf.mxu0
        %v2715 = vadd.f32 %v2261, %v2714
        %v2716 = vpop.f32.mrf.mxu0
        %v2717 = vadd.f32 %v2263, %v2716
        %2718 = vmatmul.bf16.gmra.mxu0 %v2555
        %v2719 = vpop.f32.mrf.mxu0
        %v2720 = vadd.f32 %v2266, %v2719
        %v2721 = vpop.f32.mrf.mxu0
        %v2722 = vadd.f32 %v2268, %v2721
        %2723 = vmatmul.bf16.gmra.mxu0 %v2558
        %v2724 = vpop.f32.mrf.mxu0
        %v2725 = vadd.f32 %v2271, %v2724
        %v2726 = vpop.f32.mrf.mxu0
        %v2727 = vadd.f32 %v2273, %v2726
        %2728 = vdwg.mxu0
        %2729 = vmatpush.bf16.msra.mxu0 0
        %2730 = vmatpush.bf16.msra.mxu0 0
        %2731 = vmatpush.bf16.msra.mxu0 0
        %2732 = vmatpush.bf16.msra.mxu0 0
        %2733 = vmatpush.bf16.msra.mxu0 0
        %2734 = vmatpush.bf16.msra.mxu0 0
        %2735 = vmatpush.bf16.msra.mxu0 %v2459
        %2736 = vmatpush.bf16.msra.mxu0 %v2457
        %2737 = vmatmul.bf16.gmra.mxu0 %v2465
        %v2738 = vpop.f32.mrf.mxu0
        %v2739 = vadd.f32 %v2285, %v2738
        %v2740 = vpop.f32.mrf.mxu0
        %v2741 = vadd.f32 %v2287, %v2740
        %2742 = vmatmul.bf16.gmra.mxu0 %v2468
        %v2743 = vpop.f32.mrf.mxu0
        %v2744 = vadd.f32 %v2290, %v2743
        %v2745 = vpop.f32.mrf.mxu0
        %v2746 = vadd.f32 %v2292, %v2745
        %2747 = vmatmul.bf16.gmra.mxu0 %v2471
        %v2748 = vpop.f32.mrf.mxu0
        %v2749 = vadd.f32 %v2295, %v2748
        %v2750 = vpop.f32.mrf.mxu0
        %v2751 = vadd.f32 %v2297, %v2750
        %2752 = vmatmul.bf16.gmra.mxu0 %v2474
        %v2753 = vpop.f32.mrf.mxu0
        %v2754 = vadd.f32 %v2300, %v2753
        %v2755 = vpop.f32.mrf.mxu0
        %v2756 = vadd.f32 %v2302, %v2755
        %2757 = vmatmul.bf16.gmra.mxu0 %v2477
        %v2758 = vpop.f32.mrf.mxu0
        %v2759 = vadd.f32 %v2305, %v2758
        %v2760 = vpop.f32.mrf.mxu0
        %v2761 = vadd.f32 %v2307, %v2760
        %2762 = vmatmul.bf16.gmra.mxu0 %v2480
        %v2763 = vpop.f32.mrf.mxu0
        %v2764 = vadd.f32 %v2310, %v2763
        %v2765 = vpop.f32.mrf.mxu0
        %v2766 = vadd.f32 %v2312, %v2765
        %2767 = vmatmul.bf16.gmra.mxu0 %v2483
        %v2768 = vpop.f32.mrf.mxu0
        %v2769 = vadd.f32 %v2315, %v2768
        %v2770 = vpop.f32.mrf.mxu0
        %v2771 = vadd.f32 %v2317, %v2770
        %2772 = vmatmul.bf16.gmra.mxu0 %v2486
        %v2773 = vpop.f32.mrf.mxu0
        %v2774 = vadd.f32 %v2320, %v2773
        %v2775 = vpop.f32.mrf.mxu0
        %v2776 = vadd.f32 %v2322, %v2775
        %2777 = vmatmul.bf16.gmra.mxu0 %v2489
        %v2778 = vpop.f32.mrf.mxu0
        %v2779 = vadd.f32 %v2325, %v2778
        %v2780 = vpop.f32.mrf.mxu0
        %v2781 = vadd.f32 %v2327, %v2780
        %2782 = vmatmul.bf16.gmra.mxu0 %v2492
        %v2783 = vpop.f32.mrf.mxu0
        %v2784 = vadd.f32 %v2330, %v2783
        %v2785 = vpop.f32.mrf.mxu0
        %v2786 = vadd.f32 %v2332, %v2785
        %2787 = vmatmul.bf16.gmra.mxu0 %v2495
        %v2788 = vpop.f32.mrf.mxu0
        %v2789 = vadd.f32 %v2335, %v2788
        %v2790 = vpop.f32.mrf.mxu0
        %v2791 = vadd.f32 %v2337, %v2790
        %2792 = vmatmul.bf16.gmra.mxu0 %v2498
        %v2793 = vpop.f32.mrf.mxu0
        %v2794 = vadd.f32 %v2340, %v2793
        %v2795 = vpop.f32.mrf.mxu0
        %v2796 = vadd.f32 %v2342, %v2795
        %2797 = vmatmul.bf16.gmra.mxu0 %v2501
        %v2798 = vpop.f32.mrf.mxu0
        %v2799 = vadd.f32 %v2345, %v2798
        %v2800 = vpop.f32.mrf.mxu0
        %v2801 = vadd.f32 %v2347, %v2800
        %2802 = vmatmul.bf16.gmra.mxu0 %v2504
        %v2803 = vpop.f32.mrf.mxu0
        %v2804 = vadd.f32 %v2350, %v2803
        %v2805 = vpop.f32.mrf.mxu0
        %v2806 = vadd.f32 %v2352, %v2805
        %2807 = vmatmul.bf16.gmra.mxu0 %v2507
        %v2808 = vpop.f32.mrf.mxu0
        %v2809 = vadd.f32 %v2355, %v2808
        %v2810 = vpop.f32.mrf.mxu0
        %v2811 = vadd.f32 %v2357, %v2810
        %2812 = vmatmul.bf16.gmra.mxu0 %v2510
        %v2813 = vpop.f32.mrf.mxu0
        %v2814 = vadd.f32 %v2360, %v2813
        %v2815 = vpop.f32.mrf.mxu0
        %v2816 = vadd.f32 %v2362, %v2815
        %2817 = vmatmul.bf16.gmra.mxu0 %v2513
        %v2818 = vpop.f32.mrf.mxu0
        %v2819 = vadd.f32 %v2365, %v2818
        %v2820 = vpop.f32.mrf.mxu0
        %v2821 = vadd.f32 %v2367, %v2820
        %2822 = vmatmul.bf16.gmra.mxu0 %v2516
        %v2823 = vpop.f32.mrf.mxu0
        %v2824 = vadd.f32 %v2370, %v2823
        %v2825 = vpop.f32.mrf.mxu0
        %v2826 = vadd.f32 %v2372, %v2825
        %2827 = vmatmul.bf16.gmra.mxu0 %v2519
        %v2828 = vpop.f32.mrf.mxu0
        %v2829 = vadd.f32 %v2375, %v2828
        %v2830 = vpop.f32.mrf.mxu0
        %v2831 = vadd.f32 %v2377, %v2830
        %2832 = vmatmul.bf16.gmra.mxu0 %v2522
        %v2833 = vpop.f32.mrf.mxu0
        %v2834 = vadd.f32 %v2380, %v2833
        %v2835 = vpop.f32.mrf.mxu0
        %v2836 = vadd.f32 %v2382, %v2835
        %2837 = vmatmul.bf16.gmra.mxu0 %v2525
        %v2838 = vpop.f32.mrf.mxu0
        %v2839 = vadd.f32 %v2385, %v2838
        %v2840 = vpop.f32.mrf.mxu0
        %v2841 = vadd.f32 %v2387, %v2840
        %2842 = vmatmul.bf16.gmra.mxu0 %v2528
        %v2843 = vpop.f32.mrf.mxu0
        %v2844 = vadd.f32 %v2390, %v2843
        %v2845 = vpop.f32.mrf.mxu0
        %v2846 = vadd.f32 %v2392, %v2845
        %2847 = vmatmul.bf16.gmra.mxu0 %v2531
        %v2848 = vpop.f32.mrf.mxu0
        %v2849 = vadd.f32 %v2395, %v2848
        %v2850 = vpop.f32.mrf.mxu0
        %v2851 = vadd.f32 %v2397, %v2850
        %2852 = vmatmul.bf16.gmra.mxu0 %v2534
        %v2853 = vpop.f32.mrf.mxu0
        %v2854 = vadd.f32 %v2400, %v2853
        %v2855 = vpop.f32.mrf.mxu0
        %v2856 = vadd.f32 %v2402, %v2855
        %2857 = vmatmul.bf16.gmra.mxu0 %v2537
        %v2858 = vpop.f32.mrf.mxu0
        %v2859 = vadd.f32 %v2405, %v2858
        %v2860 = vpop.f32.mrf.mxu0
        %v2861 = vadd.f32 %v2407, %v2860
        %2862 = vmatmul.bf16.gmra.mxu0 %v2540
        %v2863 = vpop.f32.mrf.mxu0
        %v2864 = vadd.f32 %v2410, %v2863
        %v2865 = vpop.f32.mrf.mxu0
        %v2866 = vadd.f32 %v2412, %v2865
        %2867 = vmatmul.bf16.gmra.mxu0 %v2543
        %v2868 = vpop.f32.mrf.mxu0
        %v2869 = vadd.f32 %v2415, %v2868
        %v2870 = vpop.f32.mrf.mxu0
        %v2871 = vadd.f32 %v2417, %v2870
        %2872 = vmatmul.bf16.gmra.mxu0 %v2546
        %v2873 = vpop.f32.mrf.mxu0
        %v2874 = vadd.f32 %v2420, %v2873
        %v2875 = vpop.f32.mrf.mxu0
        %v2876 = vadd.f32 %v2422, %v2875
        %2877 = vmatmul.bf16.gmra.mxu0 %v2549
        %v2878 = vpop.f32.mrf.mxu0
        %v2879 = vadd.f32 %v2425, %v2878
        %v2880 = vpop.f32.mrf.mxu0
        %v2881 = vadd.f32 %v2427, %v2880
        %2882 = vmatmul.bf16.gmra.mxu0 %v2552
        %v2883 = vpop.f32.mrf.mxu0
        %v2884 = vadd.f32 %v2430, %v2883
        %v2885 = vpop.f32.mrf.mxu0
        %v2886 = vadd.f32 %v2432, %v2885
        %2887 = vmatmul.bf16.gmra.mxu0 %v2555
        %v2888 = vpop.f32.mrf.mxu0
        %v2889 = vadd.f32 %v2435, %v2888
        %v2890 = vpop.f32.mrf.mxu0
        %v2891 = vadd.f32 %v2437, %v2890
        %2892 = vmatmul.bf16.gmra.mxu0 %v2558
        %v2893 = vpop.f32.mrf.mxu0
        %v2894 = vadd.f32 %v2440, %v2893
        %v2895 = vpop.f32.mrf.mxu0
        %v2896 = vadd.f32 %v2442, %v2895
        %2897 = vdwg.mxu0
        %v2898 = vld [vmem:[%s652] sm:$0xf]
        %v2899 = vld [vmem:[%s652 + $0x4] sm:$0xf]
        %v2900 = vld [vmem:[%s652 + $0x8] sm:$0xf]
        %v2901 = vld [vmem:[%s652 + $0xc] sm:$0xf]
        %v2902 = vld [vmem:[%s652 + $0x10] sm:$0xf]
        %v2903 = vld [vmem:[%s652 + $0x14] sm:$0xf]
        %v2904 = vld [vmem:[%s652 + $0x18] sm:$0xf]
        %v2905 = vld [vmem:[%s652 + $0x1c] sm:$0xf]
        %v2906 = vld [vmem:[%s652 + $0x20] sm:$0xf]
        %v2907 = vld [vmem:[%s652 + $0x24] sm:$0xf]
        %v2908 = vld [vmem:[%s652 + $0x28] sm:$0xf]
        %v2909 = vld [vmem:[%s652 + $0x2c] sm:$0xf]
        %v2910 = vld [vmem:[%s652 + $0x30] sm:$0xf]
        %v2911 = vld [vmem:[%s652 + $0x34] sm:$0xf]
        %v2912 = vld [vmem:[%s652 + $0x38] sm:$0xf]
        %v2913 = vld [vmem:[%s652 + $0x3c] sm:$0xf]
        %v2914 = vld [vmem:[%s652 + $0x40] sm:$0xf]
        %v2915 = vld [vmem:[%s652 + $0x44] sm:$0xf]
        %v2916 = vld [vmem:[%s652 + $0x48] sm:$0xf]
        %v2917 = vld [vmem:[%s652 + $0x4c] sm:$0xf]
        %v2918 = vld [vmem:[%s652 + $0x50] sm:$0xf]
        %v2919 = vld [vmem:[%s652 + $0x54] sm:$0xf]
        %v2920 = vld [vmem:[%s652 + $0x58] sm:$0xf]
        %v2921 = vld [vmem:[%s652 + $0x5c] sm:$0xf]
        %v2922 = vld [vmem:[%s652 + $0x60] sm:$0xf]
        %v2923 = vld [vmem:[%s652 + $0x64] sm:$0xf]
        %v2924 = vld [vmem:[%s652 + $0x68] sm:$0xf]
        %v2925 = vld [vmem:[%s652 + $0x6c] sm:$0xf]
        %v2926 = vld [vmem:[%s652 + $0x70] sm:$0xf]
        %v2927 = vld [vmem:[%s652 + $0x74] sm:$0xf]
        %v2928 = vld [vmem:[%s652 + $0x78] sm:$0xf]
        %v2929 = vld [vmem:[%s652 + $0x7c] sm:$0xf]
        %v2930 = vld [vmem:[%s652 + $0x80] sm:$0xf]
        %v2931 = vld [vmem:[%s652 + $0x84] sm:$0xf]
        %v2932 = vld [vmem:[%s652 + $0x88] sm:$0xf]
        %v2933 = vld [vmem:[%s652 + $0x8c] sm:$0xf]
        %v2934 = vld [vmem:[%s652 + $0x90] sm:$0xf]
        %v2935 = vld [vmem:[%s652 + $0x94] sm:$0xf]
        %v2936 = vld [vmem:[%s652 + $0x98] sm:$0xf]
        %v2937 = vld [vmem:[%s652 + $0x9c] sm:$0xf]
        %v2938 = vld [vmem:[%s652 + $0xa0] sm:$0xf]
        %v2939 = vld [vmem:[%s652 + $0xa4] sm:$0xf]
        %v2940 = vld [vmem:[%s652 + $0xa8] sm:$0xf]
        %v2941 = vld [vmem:[%s652 + $0xac] sm:$0xf]
        %v2942 = vld [vmem:[%s652 + $0xb0] sm:$0xf]
        %v2943 = vld [vmem:[%s652 + $0xb4] sm:$0xf]
        %v2944 = vld [vmem:[%s652 + $0xb8] sm:$0xf]
        %v2945 = vld [vmem:[%s652 + $0xbc] sm:$0xf]
        %v2946 = vld [vmem:[%s652 + $0xc0] sm:$0xf]
        %v2947 = vld [vmem:[%s652 + $0xc4] sm:$0xf]
        %v2948 = vld [vmem:[%s652 + $0xc8] sm:$0xf]
        %v2949 = vld [vmem:[%s652 + $0xcc] sm:$0xf]
        %v2950 = vld [vmem:[%s652 + $0xd0] sm:$0xf]
        %v2951 = vld [vmem:[%s652 + $0xd4] sm:$0xf]
        %v2952 = vld [vmem:[%s652 + $0xd8] sm:$0xf]
        %v2953 = vld [vmem:[%s652 + $0xdc] sm:$0xf]
        %v2954 = vld [vmem:[%s652 + $0xe0] sm:$0xf]
        %v2955 = vld [vmem:[%s652 + $0xe4] sm:$0xf]
        %v2956 = vld [vmem:[%s652 + $0xe8] sm:$0xf]
        %v2957 = vld [vmem:[%s652 + $0xec] sm:$0xf]
        %v2958 = vld [vmem:[%s652 + $0xf0] sm:$0xf]
        %v2959 = vld [vmem:[%s652 + $0xf4] sm:$0xf]
        %v2960 = vld [vmem:[%s652 + $0xf8] sm:$0xf]
        %v2961 = vld [vmem:[%s652 + $0xfc] sm:$0xf]
        %v2962 = vld [vmem:[%s9] sm:$0xff]
        %v2963 = vld [vmem:[%s9 + $0x8] sm:$0xff]
        %v2964 = vld [vmem:[%s9 + $0x10] sm:$0xff]
        %v2965 = vld [vmem:[%s9 + $0x18] sm:$0xff]
        %v2966 = vld [vmem:[%s9 + $0x20] sm:$0xff]
        %v2967 = vld [vmem:[%s9 + $0x28] sm:$0xff]
        %v2968 = vld [vmem:[%s9 + $0x30] sm:$0xff]
        %v2969 = vld [vmem:[%s9 + $0x38] sm:$0xff]
        %v2970 = vld [vmem:[%s9 + $0x40] sm:$0xff]
        %v2971 = vld [vmem:[%s9 + $0x48] sm:$0xff]
        %v2972 = vld [vmem:[%s9 + $0x50] sm:$0xff]
        %v2973 = vld [vmem:[%s9 + $0x58] sm:$0xff]
        %v2974 = vld [vmem:[%s9 + $0x60] sm:$0xff]
        %v2975 = vld [vmem:[%s9 + $0x68] sm:$0xff]
        %v2976 = vld [vmem:[%s9 + $0x70] sm:$0xff]
        %v2977 = vld [vmem:[%s9 + $0x78] sm:$0xff]
        %v3042 = vunpack.c.l.b16 %v2898
        %v3043 = vunpack.c.l.b16 %v2899
        %v3044 = vunpack.c.l.b16 %v2900
        %v3045 = vunpack.c.l.b16 %v2901
        %v3046 = vunpack.c.l.b16 %v2902
        %v3047 = vunpack.c.l.b16 %v2903
        %v3048 = vunpack.c.l.b16 %v2904
        %v3049 = vunpack.c.l.b16 %v2905
        %v3050 = vunpack.c.l.b16 %v2906
        %v3051 = vunpack.c.l.b16 %v2907
        %v3052 = vunpack.c.l.b16 %v2908
        %v3053 = vunpack.c.l.b16 %v2909
        %v3054 = vunpack.c.l.b16 %v2910
        %v3055 = vunpack.c.l.b16 %v2911
        %v3056 = vunpack.c.l.b16 %v2912
        %v3057 = vunpack.c.l.b16 %v2913
        %v3058 = vunpack.c.l.b16 %v2914
        %v3059 = vunpack.c.l.b16 %v2915
        %v3060 = vunpack.c.l.b16 %v2916
        %v3061 = vunpack.c.l.b16 %v2917
        %v3062 = vunpack.c.l.b16 %v2918
        %v3063 = vunpack.c.l.b16 %v2919
        %v3064 = vunpack.c.l.b16 %v2920
        %v3065 = vunpack.c.l.b16 %v2921
        %v3066 = vunpack.c.l.b16 %v2922
        %v3067 = vunpack.c.l.b16 %v2923
        %v3068 = vunpack.c.l.b16 %v2924
        %v3069 = vunpack.c.l.b16 %v2925
        %v3070 = vunpack.c.l.b16 %v2926
        %v3071 = vunpack.c.l.b16 %v2927
        %v3072 = vunpack.c.l.b16 %v2928
        %v3073 = vunpack.c.l.b16 %v2929
        %v3074 = vunpack.c.l.b16 %v2930
        %v3075 = vunpack.c.l.b16 %v2931
        %v3076 = vunpack.c.l.b16 %v2932
        %v3077 = vunpack.c.l.b16 %v2933
        %v3078 = vunpack.c.l.b16 %v2934
        %v3079 = vunpack.c.l.b16 %v2935
        %v3080 = vunpack.c.l.b16 %v2936
        %v3081 = vunpack.c.l.b16 %v2937
        %v3082 = vunpack.c.l.b16 %v2938
        %v3083 = vunpack.c.l.b16 %v2939
        %v3084 = vunpack.c.l.b16 %v2940
        %v3085 = vunpack.c.l.b16 %v2941
        %v3086 = vunpack.c.l.b16 %v2942
        %v3087 = vunpack.c.l.b16 %v2943
        %v3088 = vunpack.c.l.b16 %v2944
        %v3089 = vunpack.c.l.b16 %v2945
        %v3090 = vunpack.c.l.b16 %v2946
        %v3091 = vunpack.c.l.b16 %v2947
        %v3092 = vunpack.c.l.b16 %v2948
        %v3093 = vunpack.c.l.b16 %v2949
        %v3094 = vunpack.c.l.b16 %v2950
        %v3095 = vunpack.c.l.b16 %v2951
        %v3096 = vunpack.c.l.b16 %v2952
        %v3097 = vunpack.c.l.b16 %v2953
        %v3098 = vunpack.c.l.b16 %v2954
        %v3099 = vunpack.c.l.b16 %v2955
        %v3100 = vunpack.c.l.b16 %v2956
        %v3101 = vunpack.c.l.b16 %v2957
        %v3102 = vunpack.c.l.b16 %v2958
        %v3103 = vunpack.c.l.b16 %v2959
        %v3104 = vunpack.c.l.b16 %v2960
        %v3105 = vunpack.c.l.b16 %v2961
        %v3106 = vpack.c.b16 %v3043, %v3042
        %v3107 = vpack.c.b16 %v3045, %v3044
        %v3108 = vpack.c.b16 %v3047, %v3046
        %v3109 = vpack.c.b16 %v3049, %v3048
        %v3110 = vpack.c.b16 %v3051, %v3050
        %v3111 = vpack.c.b16 %v3053, %v3052
        %v3112 = vpack.c.b16 %v3055, %v3054
        %v3113 = vpack.c.b16 %v3057, %v3056
        %v3114 = vpack.c.b16 %v3059, %v3058
        %v3115 = vpack.c.b16 %v3061, %v3060
        %v3116 = vpack.c.b16 %v3063, %v3062
        %v3117 = vpack.c.b16 %v3065, %v3064
        %v3118 = vpack.c.b16 %v3067, %v3066
        %v3119 = vpack.c.b16 %v3069, %v3068
        %v3120 = vpack.c.b16 %v3071, %v3070
        %v3121 = vpack.c.b16 %v3073, %v3072
        %v3122 = vpack.c.b16 %v3075, %v3074
        %v3123 = vpack.c.b16 %v3077, %v3076
        %v3124 = vpack.c.b16 %v3079, %v3078
        %v3125 = vpack.c.b16 %v3081, %v3080
        %v3126 = vpack.c.b16 %v3083, %v3082
        %v3127 = vpack.c.b16 %v3085, %v3084
        %v3128 = vpack.c.b16 %v3087, %v3086
        %v3129 = vpack.c.b16 %v3089, %v3088
        %v3130 = vpack.c.b16 %v3091, %v3090
        %v3131 = vpack.c.b16 %v3093, %v3092
        %v3132 = vpack.c.b16 %v3095, %v3094
        %v3133 = vpack.c.b16 %v3097, %v3096
        %v3134 = vpack.c.b16 %v3099, %v3098
        %v3135 = vpack.c.b16 %v3101, %v3100
        %v3136 = vpack.c.b16 %v3103, %v3102
        %v3137 = vpack.c.b16 %v3105, %v3104
        %v3186 = vunpack.c.l.b16 %v2962
        %v3187 = vunpack.c.h.b16 %v2962
        %v3188 = vunpack.c.l.b16 %v2963
        %v3189 = vunpack.c.h.b16 %v2963
        %v3190 = vunpack.c.l.b16 %v2964
        %v3191 = vunpack.c.h.b16 %v2964
        %v3192 = vunpack.c.l.b16 %v2965
        %v3193 = vunpack.c.h.b16 %v2965
        %v3194 = vunpack.c.l.b16 %v2966
        %v3195 = vunpack.c.h.b16 %v2966
        %v3196 = vunpack.c.l.b16 %v2967
        %v3197 = vunpack.c.h.b16 %v2967
        %v3198 = vunpack.c.l.b16 %v2968
        %v3199 = vunpack.c.h.b16 %v2968
        %v3200 = vunpack.c.l.b16 %v2969
        %v3201 = vunpack.c.h.b16 %v2969
        %v3202 = vunpack.c.l.b16 %v2970
        %v3203 = vunpack.c.h.b16 %v2970
        %v3204 = vunpack.c.l.b16 %v2971
        %v3205 = vunpack.c.h.b16 %v2971
        %v3206 = vunpack.c.l.b16 %v2972
        %v3207 = vunpack.c.h.b16 %v2972
        %v3208 = vunpack.c.l.b16 %v2973
        %v3209 = vunpack.c.h.b16 %v2973
        %v3210 = vunpack.c.l.b16 %v2974
        %v3211 = vunpack.c.h.b16 %v2974
        %v3212 = vunpack.c.l.b16 %v2975
        %v3213 = vunpack.c.h.b16 %v2975
        %v3214 = vunpack.c.l.b16 %v2976
        %v3215 = vunpack.c.h.b16 %v2976
        %v3216 = vunpack.c.l.b16 %v2977
        %v3217 = vunpack.c.h.b16 %v2977
        %v3218 = vpack.c.b16 %v3188, %v3186
        %v3219 = vpack.c.b16 %v3189, %v3187
        %v3220 = vpack.c.b16 %v3192, %v3190
        %v3221 = vpack.c.b16 %v3193, %v3191
        %v3222 = vpack.c.b16 %v3196, %v3194
        %v3223 = vpack.c.b16 %v3197, %v3195
        %v3224 = vpack.c.b16 %v3200, %v3198
        %v3225 = vpack.c.b16 %v3201, %v3199
        %v3226 = vpack.c.b16 %v3204, %v3202
        %v3227 = vpack.c.b16 %v3205, %v3203
        %v3228 = vpack.c.b16 %v3208, %v3206
        %v3229 = vpack.c.b16 %v3209, %v3207
        %v3230 = vpack.c.b16 %v3212, %v3210
        %v3231 = vpack.c.b16 %v3213, %v3211
        %v3232 = vpack.c.b16 %v3216, %v3214
        %v3233 = vpack.c.b16 %v3217, %v3215
        %3250 = vmatpush.bf16.msra.mxu0 %v3232
        %3251 = vmatpush.bf16.msra.mxu0 %v3230
        %3252 = vmatpush.bf16.msra.mxu0 %v3228
        %3253 = vmatpush.bf16.msra.mxu0 %v3226
        %3254 = vmatpush.bf16.msra.mxu0 %v3224
        %3255 = vmatpush.bf16.msra.mxu0 %v3222
        %3256 = vmatpush.bf16.msra.mxu0 %v3220
        %3257 = vmatpush.bf16.msra.mxu0 %v3218
        %3258 = vmatmul.bf16.gmra.mxu0 %v3106
        %v3259 = vpop.f32.mrf.mxu0
        %v3260 = vadd.f32 0.0, %v3259
        %v3261 = vpop.f32.mrf.mxu0
        %v3262 = vadd.f32 0.0, %v3261
        %3263 = vmatmul.bf16.gmra.mxu0 %v3107
        %v3264 = vpop.f32.mrf.mxu0
        %v3265 = vadd.f32 0.0, %v3264
        %v3266 = vpop.f32.mrf.mxu0
        %v3267 = vadd.f32 0.0, %v3266
        %3268 = vmatmul.bf16.gmra.mxu0 %v3108
        %v3269 = vpop.f32.mrf.mxu0
        %v3270 = vadd.f32 0.0, %v3269
        %v3271 = vpop.f32.mrf.mxu0
        %v3272 = vadd.f32 0.0, %v3271
        %3273 = vmatmul.bf16.gmra.mxu0 %v3109
        %v3274 = vpop.f32.mrf.mxu0
        %v3275 = vadd.f32 0.0, %v3274
        %v3276 = vpop.f32.mrf.mxu0
        %v3277 = vadd.f32 0.0, %v3276
        %3278 = vmatmul.bf16.gmra.mxu0 %v3110
        %v3279 = vpop.f32.mrf.mxu0
        %v3280 = vadd.f32 0.0, %v3279
        %v3281 = vpop.f32.mrf.mxu0
        %v3282 = vadd.f32 0.0, %v3281
        %3283 = vmatmul.bf16.gmra.mxu0 %v3111
        %v3284 = vpop.f32.mrf.mxu0
        %v3285 = vadd.f32 0.0, %v3284
        %v3286 = vpop.f32.mrf.mxu0
        %v3287 = vadd.f32 0.0, %v3286
        %3288 = vmatmul.bf16.gmra.mxu0 %v3112
        %v3289 = vpop.f32.mrf.mxu0
        %v3290 = vadd.f32 0.0, %v3289
        %v3291 = vpop.f32.mrf.mxu0
        %v3292 = vadd.f32 0.0, %v3291
        %3293 = vmatmul.bf16.gmra.mxu0 %v3113
        %v3294 = vpop.f32.mrf.mxu0
        %v3295 = vadd.f32 0.0, %v3294
        %v3296 = vpop.f32.mrf.mxu0
        %v3297 = vadd.f32 0.0, %v3296
        %3298 = vmatmul.bf16.gmra.mxu0 %v3114
        %v3299 = vpop.f32.mrf.mxu0
        %v3300 = vadd.f32 0.0, %v3299
        %v3301 = vpop.f32.mrf.mxu0
        %v3302 = vadd.f32 0.0, %v3301
        %3303 = vmatmul.bf16.gmra.mxu0 %v3115
        %v3304 = vpop.f32.mrf.mxu0
        %v3305 = vadd.f32 0.0, %v3304
        %v3306 = vpop.f32.mrf.mxu0
        %v3307 = vadd.f32 0.0, %v3306
        %3308 = vmatmul.bf16.gmra.mxu0 %v3116
        %v3309 = vpop.f32.mrf.mxu0
        %v3310 = vadd.f32 0.0, %v3309
        %v3311 = vpop.f32.mrf.mxu0
        %v3312 = vadd.f32 0.0, %v3311
        %3313 = vmatmul.bf16.gmra.mxu0 %v3117
        %v3314 = vpop.f32.mrf.mxu0
        %v3315 = vadd.f32 0.0, %v3314
        %v3316 = vpop.f32.mrf.mxu0
        %v3317 = vadd.f32 0.0, %v3316
        %3318 = vmatmul.bf16.gmra.mxu0 %v3118
        %v3319 = vpop.f32.mrf.mxu0
        %v3320 = vadd.f32 0.0, %v3319
        %v3321 = vpop.f32.mrf.mxu0
        %v3322 = vadd.f32 0.0, %v3321
        %3323 = vmatmul.bf16.gmra.mxu0 %v3119
        %v3324 = vpop.f32.mrf.mxu0
        %v3325 = vadd.f32 0.0, %v3324
        %v3326 = vpop.f32.mrf.mxu0
        %v3327 = vadd.f32 0.0, %v3326
        %3328 = vmatmul.bf16.gmra.mxu0 %v3120
        %v3329 = vpop.f32.mrf.mxu0
        %v3330 = vadd.f32 0.0, %v3329
        %v3331 = vpop.f32.mrf.mxu0
        %v3332 = vadd.f32 0.0, %v3331
        %3333 = vmatmul.bf16.gmra.mxu0 %v3121
        %v3334 = vpop.f32.mrf.mxu0
        %v3335 = vadd.f32 0.0, %v3334
        %v3336 = vpop.f32.mrf.mxu0
        %v3337 = vadd.f32 0.0, %v3336
        %3338 = vmatmul.bf16.gmra.mxu0 %v3122
        %v3339 = vpop.f32.mrf.mxu0
        %v3340 = vadd.f32 0.0, %v3339
        %v3341 = vpop.f32.mrf.mxu0
        %v3342 = vadd.f32 0.0, %v3341
        %3343 = vmatmul.bf16.gmra.mxu0 %v3123
        %v3344 = vpop.f32.mrf.mxu0
        %v3345 = vadd.f32 0.0, %v3344
        %v3346 = vpop.f32.mrf.mxu0
        %v3347 = vadd.f32 0.0, %v3346
        %3348 = vmatmul.bf16.gmra.mxu0 %v3124
        %v3349 = vpop.f32.mrf.mxu0
        %v3350 = vadd.f32 0.0, %v3349
        %v3351 = vpop.f32.mrf.mxu0
        %v3352 = vadd.f32 0.0, %v3351
        %3353 = vmatmul.bf16.gmra.mxu0 %v3125
        %v3354 = vpop.f32.mrf.mxu0
        %v3355 = vadd.f32 0.0, %v3354
        %v3356 = vpop.f32.mrf.mxu0
        %v3357 = vadd.f32 0.0, %v3356
        %3358 = vmatmul.bf16.gmra.mxu0 %v3126
        %v3359 = vpop.f32.mrf.mxu0
        %v3360 = vadd.f32 0.0, %v3359
        %v3361 = vpop.f32.mrf.mxu0
        %v3362 = vadd.f32 0.0, %v3361
        %3363 = vmatmul.bf16.gmra.mxu0 %v3127
        %v3364 = vpop.f32.mrf.mxu0
        %v3365 = vadd.f32 0.0, %v3364
        %v3366 = vpop.f32.mrf.mxu0
        %v3367 = vadd.f32 0.0, %v3366
        %3368 = vmatmul.bf16.gmra.mxu0 %v3128
        %v3369 = vpop.f32.mrf.mxu0
        %v3370 = vadd.f32 0.0, %v3369
        %v3371 = vpop.f32.mrf.mxu0
        %v3372 = vadd.f32 0.0, %v3371
        %3373 = vmatmul.bf16.gmra.mxu0 %v3129
        %v3374 = vpop.f32.mrf.mxu0
        %v3375 = vadd.f32 0.0, %v3374
        %v3376 = vpop.f32.mrf.mxu0
        %v3377 = vadd.f32 0.0, %v3376
        %3378 = vmatmul.bf16.gmra.mxu0 %v3130
        %v3379 = vpop.f32.mrf.mxu0
        %v3380 = vadd.f32 0.0, %v3379
        %v3381 = vpop.f32.mrf.mxu0
        %v3382 = vadd.f32 0.0, %v3381
        %3383 = vmatmul.bf16.gmra.mxu0 %v3131
        %v3384 = vpop.f32.mrf.mxu0
        %v3385 = vadd.f32 0.0, %v3384
        %v3386 = vpop.f32.mrf.mxu0
        %v3387 = vadd.f32 0.0, %v3386
        %3388 = vmatmul.bf16.gmra.mxu0 %v3132
        %v3389 = vpop.f32.mrf.mxu0
        %v3390 = vadd.f32 0.0, %v3389
        %v3391 = vpop.f32.mrf.mxu0
        %v3392 = vadd.f32 0.0, %v3391
        %3393 = vmatmul.bf16.gmra.mxu0 %v3133
        %v3394 = vpop.f32.mrf.mxu0
        %v3395 = vadd.f32 0.0, %v3394
        %v3396 = vpop.f32.mrf.mxu0
        %v3397 = vadd.f32 0.0, %v3396
        %3398 = vmatmul.bf16.gmra.mxu0 %v3134
        %v3399 = vpop.f32.mrf.mxu0
        %v3400 = vadd.f32 0.0, %v3399
        %v3401 = vpop.f32.mrf.mxu0
        %v3402 = vadd.f32 0.0, %v3401
        %3403 = vmatmul.bf16.gmra.mxu0 %v3135
        %v3404 = vpop.f32.mrf.mxu0
        %v3405 = vadd.f32 0.0, %v3404
        %v3406 = vpop.f32.mrf.mxu0
        %v3407 = vadd.f32 0.0, %v3406
        %3408 = vmatmul.bf16.gmra.mxu0 %v3136
        %v3409 = vpop.f32.mrf.mxu0
        %v3410 = vadd.f32 0.0, %v3409
        %v3411 = vpop.f32.mrf.mxu0
        %v3412 = vadd.f32 0.0, %v3411
        %3413 = vmatmul.bf16.gmra.mxu0 %v3137
        %v3414 = vpop.f32.mrf.mxu0
        %v3415 = vadd.f32 0.0, %v3414
        %v3416 = vpop.f32.mrf.mxu0
        %v3417 = vadd.f32 0.0, %v3416
        %3418 = vdwg.mxu0
        %3419 = vmatpush.bf16.msra.mxu0 %v3233
        %3420 = vmatpush.bf16.msra.mxu0 %v3231
        %3421 = vmatpush.bf16.msra.mxu0 %v3229
        %3422 = vmatpush.bf16.msra.mxu0 %v3227
        %3423 = vmatpush.bf16.msra.mxu0 %v3225
        %3424 = vmatpush.bf16.msra.mxu0 %v3223
        %3425 = vmatpush.bf16.msra.mxu0 %v3221
        %3426 = vmatpush.bf16.msra.mxu0 %v3219
        %3427 = vmatmul.bf16.gmra.mxu0 %v3106
        %v3428 = vpop.f32.mrf.mxu0
        %v3429 = vadd.f32 0.0, %v3428
        %v3430 = vpop.f32.mrf.mxu0
        %v3431 = vadd.f32 0.0, %v3430
        %3432 = vmatmul.bf16.gmra.mxu0 %v3107
        %v3433 = vpop.f32.mrf.mxu0
        %v3434 = vadd.f32 0.0, %v3433
        %v3435 = vpop.f32.mrf.mxu0
        %v3436 = vadd.f32 0.0, %v3435
        %3437 = vmatmul.bf16.gmra.mxu0 %v3108
        %v3438 = vpop.f32.mrf.mxu0
        %v3439 = vadd.f32 0.0, %v3438
        %v3440 = vpop.f32.mrf.mxu0
        %v3441 = vadd.f32 0.0, %v3440
        %3442 = vmatmul.bf16.gmra.mxu0 %v3109
        %v3443 = vpop.f32.mrf.mxu0
        %v3444 = vadd.f32 0.0, %v3443
        %v3445 = vpop.f32.mrf.mxu0
        %v3446 = vadd.f32 0.0, %v3445
        %3447 = vmatmul.bf16.gmra.mxu0 %v3110
        %v3448 = vpop.f32.mrf.mxu0
        %v3449 = vadd.f32 0.0, %v3448
        %v3450 = vpop.f32.mrf.mxu0
        %v3451 = vadd.f32 0.0, %v3450
        %3452 = vmatmul.bf16.gmra.mxu0 %v3111
        %v3453 = vpop.f32.mrf.mxu0
        %v3454 = vadd.f32 0.0, %v3453
        %v3455 = vpop.f32.mrf.mxu0
        %v3456 = vadd.f32 0.0, %v3455
        %3457 = vmatmul.bf16.gmra.mxu0 %v3112
        %v3458 = vpop.f32.mrf.mxu0
        %v3459 = vadd.f32 0.0, %v3458
        %v3460 = vpop.f32.mrf.mxu0
        %v3461 = vadd.f32 0.0, %v3460
        %3462 = vmatmul.bf16.gmra.mxu0 %v3113
        %v3463 = vpop.f32.mrf.mxu0
        %v3464 = vadd.f32 0.0, %v3463
        %v3465 = vpop.f32.mrf.mxu0
        %v3466 = vadd.f32 0.0, %v3465
        %3467 = vmatmul.bf16.gmra.mxu0 %v3114
        %v3468 = vpop.f32.mrf.mxu0
        %v3469 = vadd.f32 0.0, %v3468
        %v3470 = vpop.f32.mrf.mxu0
        %v3471 = vadd.f32 0.0, %v3470
        %3472 = vmatmul.bf16.gmra.mxu0 %v3115
        %v3473 = vpop.f32.mrf.mxu0
        %v3474 = vadd.f32 0.0, %v3473
        %v3475 = vpop.f32.mrf.mxu0
        %v3476 = vadd.f32 0.0, %v3475
        %3477 = vmatmul.bf16.gmra.mxu0 %v3116
        %v3478 = vpop.f32.mrf.mxu0
        %v3479 = vadd.f32 0.0, %v3478
        %v3480 = vpop.f32.mrf.mxu0
        %v3481 = vadd.f32 0.0, %v3480
        %3482 = vmatmul.bf16.gmra.mxu0 %v3117
        %v3483 = vpop.f32.mrf.mxu0
        %v3484 = vadd.f32 0.0, %v3483
        %v3485 = vpop.f32.mrf.mxu0
        %v3486 = vadd.f32 0.0, %v3485
        %3487 = vmatmul.bf16.gmra.mxu0 %v3118
        %v3488 = vpop.f32.mrf.mxu0
        %v3489 = vadd.f32 0.0, %v3488
        %v3490 = vpop.f32.mrf.mxu0
        %v3491 = vadd.f32 0.0, %v3490
        %3492 = vmatmul.bf16.gmra.mxu0 %v3119
        %v3493 = vpop.f32.mrf.mxu0
        %v3494 = vadd.f32 0.0, %v3493
        %v3495 = vpop.f32.mrf.mxu0
        %v3496 = vadd.f32 0.0, %v3495
        %3497 = vmatmul.bf16.gmra.mxu0 %v3120
        %v3498 = vpop.f32.mrf.mxu0
        %v3499 = vadd.f32 0.0, %v3498
        %v3500 = vpop.f32.mrf.mxu0
        %v3501 = vadd.f32 0.0, %v3500
        %3502 = vmatmul.bf16.gmra.mxu0 %v3121
        %v3503 = vpop.f32.mrf.mxu0
        %v3504 = vadd.f32 0.0, %v3503
        %v3505 = vpop.f32.mrf.mxu0
        %v3506 = vadd.f32 0.0, %v3505
        %3507 = vmatmul.bf16.gmra.mxu0 %v3122
        %v3508 = vpop.f32.mrf.mxu0
        %v3509 = vadd.f32 0.0, %v3508
        %v3510 = vpop.f32.mrf.mxu0
        %v3511 = vadd.f32 0.0, %v3510
        %3512 = vmatmul.bf16.gmra.mxu0 %v3123
        %v3513 = vpop.f32.mrf.mxu0
        %v3514 = vadd.f32 0.0, %v3513
        %v3515 = vpop.f32.mrf.mxu0
        %v3516 = vadd.f32 0.0, %v3515
        %3517 = vmatmul.bf16.gmra.mxu0 %v3124
        %v3518 = vpop.f32.mrf.mxu0
        %v3519 = vadd.f32 0.0, %v3518
        %v3520 = vpop.f32.mrf.mxu0
        %v3521 = vadd.f32 0.0, %v3520
        %3522 = vmatmul.bf16.gmra.mxu0 %v3125
        %v3523 = vpop.f32.mrf.mxu0
        %v3524 = vadd.f32 0.0, %v3523
        %v3525 = vpop.f32.mrf.mxu0
        %v3526 = vadd.f32 0.0, %v3525
        %3527 = vmatmul.bf16.gmra.mxu0 %v3126
        %v3528 = vpop.f32.mrf.mxu0
        %v3529 = vadd.f32 0.0, %v3528
        %v3530 = vpop.f32.mrf.mxu0
        %v3531 = vadd.f32 0.0, %v3530
        %3532 = vmatmul.bf16.gmra.mxu0 %v3127
        %v3533 = vpop.f32.mrf.mxu0
        %v3534 = vadd.f32 0.0, %v3533
        %v3535 = vpop.f32.mrf.mxu0
        %v3536 = vadd.f32 0.0, %v3535
        %3537 = vmatmul.bf16.gmra.mxu0 %v3128
        %v3538 = vpop.f32.mrf.mxu0
        %v3539 = vadd.f32 0.0, %v3538
        %v3540 = vpop.f32.mrf.mxu0
        %v3541 = vadd.f32 0.0, %v3540
        %3542 = vmatmul.bf16.gmra.mxu0 %v3129
        %v3543 = vpop.f32.mrf.mxu0
        %v3544 = vadd.f32 0.0, %v3543
        %v3545 = vpop.f32.mrf.mxu0
        %v3546 = vadd.f32 0.0, %v3545
        %3547 = vmatmul.bf16.gmra.mxu0 %v3130
        %v3548 = vpop.f32.mrf.mxu0
        %v3549 = vadd.f32 0.0, %v3548
        %v3550 = vpop.f32.mrf.mxu0
        %v3551 = vadd.f32 0.0, %v3550
        %3552 = vmatmul.bf16.gmra.mxu0 %v3131
        %v3553 = vpop.f32.mrf.mxu0
        %v3554 = vadd.f32 0.0, %v3553
        %v3555 = vpop.f32.mrf.mxu0
        %v3556 = vadd.f32 0.0, %v3555
        %3557 = vmatmul.bf16.gmra.mxu0 %v3132
        %v3558 = vpop.f32.mrf.mxu0
        %v3559 = vadd.f32 0.0, %v3558
        %v3560 = vpop.f32.mrf.mxu0
        %v3561 = vadd.f32 0.0, %v3560
        %3562 = vmatmul.bf16.gmra.mxu0 %v3133
        %v3563 = vpop.f32.mrf.mxu0
        %v3564 = vadd.f32 0.0, %v3563
        %v3565 = vpop.f32.mrf.mxu0
        %v3566 = vadd.f32 0.0, %v3565
        %3567 = vmatmul.bf16.gmra.mxu0 %v3134
        %v3568 = vpop.f32.mrf.mxu0
        %v3569 = vadd.f32 0.0, %v3568
        %v3570 = vpop.f32.mrf.mxu0
        %v3571 = vadd.f32 0.0, %v3570
        %3572 = vmatmul.bf16.gmra.mxu0 %v3135
        %v3573 = vpop.f32.mrf.mxu0
        %v3574 = vadd.f32 0.0, %v3573
        %v3575 = vpop.f32.mrf.mxu0
        %v3576 = vadd.f32 0.0, %v3575
        %3577 = vmatmul.bf16.gmra.mxu0 %v3136
        %v3578 = vpop.f32.mrf.mxu0
        %v3579 = vadd.f32 0.0, %v3578
        %v3580 = vpop.f32.mrf.mxu0
        %v3581 = vadd.f32 0.0, %v3580
        %3582 = vmatmul.bf16.gmra.mxu0 %v3137
        %v3583 = vpop.f32.mrf.mxu0
        %v3584 = vadd.f32 0.0, %v3583
        %v3585 = vpop.f32.mrf.mxu0
        %v3586 = vadd.f32 0.0, %v3585
        %3587 = vdwg.mxu0
        %v3588 = vadd.f32 %v2570, %v3260
        %v3589 = vadd.f32 %v2739, %v3429
        %v3590 = vadd.f32 %v2572, %v3262
        %v3591 = vadd.f32 %v2741, %v3431
        %v3592 = vadd.f32 %v2575, %v3265
        %v3593 = vadd.f32 %v2744, %v3434
        %v3594 = vadd.f32 %v2577, %v3267
        %v3595 = vadd.f32 %v2746, %v3436
        %v3596 = vadd.f32 %v2580, %v3270
        %v3597 = vadd.f32 %v2749, %v3439
        %v3598 = vadd.f32 %v2582, %v3272
        %v3599 = vadd.f32 %v2751, %v3441
        %v3600 = vadd.f32 %v2585, %v3275
        %v3601 = vadd.f32 %v2754, %v3444
        %v3602 = vadd.f32 %v2587, %v3277
        %v3603 = vadd.f32 %v2756, %v3446
        %v3604 = vadd.f32 %v2590, %v3280
        %v3605 = vadd.f32 %v2759, %v3449
        %v3606 = vadd.f32 %v2592, %v3282
        %v3607 = vadd.f32 %v2761, %v3451
        %v3608 = vadd.f32 %v2595, %v3285
        %v3609 = vadd.f32 %v2764, %v3454
        %v3610 = vadd.f32 %v2597, %v3287
        %v3611 = vadd.f32 %v2766, %v3456
        %v3612 = vadd.f32 %v2600, %v3290
        %v3613 = vadd.f32 %v2769, %v3459
        %v3614 = vadd.f32 %v2602, %v3292
        %v3615 = vadd.f32 %v2771, %v3461
        %v3616 = vadd.f32 %v2605, %v3295
        %v3617 = vadd.f32 %v2774, %v3464
        %v3618 = vadd.f32 %v2607, %v3297
        %v3619 = vadd.f32 %v2776, %v3466
        %v3620 = vadd.f32 %v2610, %v3300
        %v3621 = vadd.f32 %v2779, %v3469
        %v3622 = vadd.f32 %v2612, %v3302
        %v3623 = vadd.f32 %v2781, %v3471
        %v3624 = vadd.f32 %v2615, %v3305
        %v3625 = vadd.f32 %v2784, %v3474
        %v3626 = vadd.f32 %v2617, %v3307
        %v3627 = vadd.f32 %v2786, %v3476
        %v3628 = vadd.f32 %v2620, %v3310
        %v3629 = vadd.f32 %v2789, %v3479
        %v3630 = vadd.f32 %v2622, %v3312
        %v3631 = vadd.f32 %v2791, %v3481
        %v3632 = vadd.f32 %v2625, %v3315
        %v3633 = vadd.f32 %v2794, %v3484
        %v3634 = vadd.f32 %v2627, %v3317
        %v3635 = vadd.f32 %v2796, %v3486
        %v3636 = vadd.f32 %v2630, %v3320
        %v3637 = vadd.f32 %v2799, %v3489
        %v3638 = vadd.f32 %v2632, %v3322
        %v3639 = vadd.f32 %v2801, %v3491
        %v3640 = vadd.f32 %v2635, %v3325
        %v3641 = vadd.f32 %v2804, %v3494
        %v3642 = vadd.f32 %v2637, %v3327
        %v3643 = vadd.f32 %v2806, %v3496
        %v3644 = vadd.f32 %v2640, %v3330
        %v3645 = vadd.f32 %v2809, %v3499
        %v3646 = vadd.f32 %v2642, %v3332
        %v3647 = vadd.f32 %v2811, %v3501
        %v3648 = vadd.f32 %v2645, %v3335
        %v3649 = vadd.f32 %v2814, %v3504
        %v3650 = vadd.f32 %v2647, %v3337
        %v3651 = vadd.f32 %v2816, %v3506
        %v3652 = vadd.f32 %v2650, %v3340
        %v3653 = vadd.f32 %v2819, %v3509
        %v3654 = vadd.f32 %v2652, %v3342
        %v3655 = vadd.f32 %v2821, %v3511
        %v3656 = vadd.f32 %v2655, %v3345
        %v3657 = vadd.f32 %v2824, %v3514
        %v3658 = vadd.f32 %v2657, %v3347
        %v3659 = vadd.f32 %v2826, %v3516
        %v3660 = vadd.f32 %v2660, %v3350
        %v3661 = vadd.f32 %v2829, %v3519
        %v3662 = vadd.f32 %v2662, %v3352
        %v3663 = vadd.f32 %v2831, %v3521
        %v3664 = vadd.f32 %v2665, %v3355
        %v3665 = vadd.f32 %v2834, %v3524
        %v3666 = vadd.f32 %v2667, %v3357
        %v3667 = vadd.f32 %v2836, %v3526
        %v3668 = vadd.f32 %v2670, %v3360
        %v3669 = vadd.f32 %v2839, %v3529
        %v3670 = vadd.f32 %v2672, %v3362
        %v3671 = vadd.f32 %v2841, %v3531
        %v3672 = vadd.f32 %v2675, %v3365
        %v3673 = vadd.f32 %v2844, %v3534
        %v3674 = vadd.f32 %v2677, %v3367
        %v3675 = vadd.f32 %v2846, %v3536
        %v3676 = vadd.f32 %v2680, %v3370
        %v3677 = vadd.f32 %v2849, %v3539
        %v3678 = vadd.f32 %v2682, %v3372
        %v3679 = vadd.f32 %v2851, %v3541
        %v3680 = vadd.f32 %v2685, %v3375
        %v3681 = vadd.f32 %v2854, %v3544
        %v3682 = vadd.f32 %v2687, %v3377
        %v3683 = vadd.f32 %v2856, %v3546
        %v3684 = vadd.f32 %v2690, %v3380
        %v3685 = vadd.f32 %v2859, %v3549
        %v3686 = vadd.f32 %v2692, %v3382
        %v3687 = vadd.f32 %v2861, %v3551
        %v3688 = vadd.f32 %v2695, %v3385
        %v3689 = vadd.f32 %v2864, %v3554
        %v3690 = vadd.f32 %v2697, %v3387
        %v3691 = vadd.f32 %v2866, %v3556
        %v3692 = vadd.f32 %v2700, %v3390
        %v3693 = vadd.f32 %v2869, %v3559
        %v3694 = vadd.f32 %v2702, %v3392
        %v3695 = vadd.f32 %v2871, %v3561
        %v3696 = vadd.f32 %v2705, %v3395
        %v3697 = vadd.f32 %v2874, %v3564
        %v3698 = vadd.f32 %v2707, %v3397
        %v3699 = vadd.f32 %v2876, %v3566
        %v3700 = vadd.f32 %v2710, %v3400
        %v3701 = vadd.f32 %v2879, %v3569
        %v3702 = vadd.f32 %v2712, %v3402
        %v3703 = vadd.f32 %v2881, %v3571
        %v3704 = vadd.f32 %v2715, %v3405
        %v3705 = vadd.f32 %v2884, %v3574
        %v3706 = vadd.f32 %v2717, %v3407
        %v3707 = vadd.f32 %v2886, %v3576
        %v3708 = vadd.f32 %v2720, %v3410
        %v3709 = vadd.f32 %v2889, %v3579
        %v3710 = vadd.f32 %v2722, %v3412
        %v3711 = vadd.f32 %v2891, %v3581
        %v3712 = vadd.f32 %v2725, %v3415
        %v3713 = vadd.f32 %v2894, %v3584
        %v3714 = vadd.f32 %v2727, %v3417
        %v3715 = vadd.f32 %v2896, %v3586
        %v3716 = vld [vmem:[%s10] sm:$0x3]
        %v3718 = vperm.slane %v3716, 0
        %v3719 = vperm.slane %v3716, 1
        %v3722 = vadd.f32 %v3588, %v3718
        %v3723 = vadd.f32 %v3589, %v3719
        %v3724 = vadd.f32 %v3590, %v3718
        %v3725 = vadd.f32 %v3591, %v3719
        %v3726 = vadd.f32 %v3592, %v3718
        %v3727 = vadd.f32 %v3593, %v3719
        %v3728 = vadd.f32 %v3594, %v3718
        %v3729 = vadd.f32 %v3595, %v3719
        %v3730 = vadd.f32 %v3596, %v3718
        %v3731 = vadd.f32 %v3597, %v3719
        %v3732 = vadd.f32 %v3598, %v3718
        %v3733 = vadd.f32 %v3599, %v3719
        %v3734 = vadd.f32 %v3600, %v3718
        %v3735 = vadd.f32 %v3601, %v3719
        %v3736 = vadd.f32 %v3602, %v3718
        %v3737 = vadd.f32 %v3603, %v3719
        %v3738 = vadd.f32 %v3604, %v3718
        %v3739 = vadd.f32 %v3605, %v3719
        %v3740 = vadd.f32 %v3606, %v3718
        %v3741 = vadd.f32 %v3607, %v3719
        %v3742 = vadd.f32 %v3608, %v3718
        %v3743 = vadd.f32 %v3609, %v3719
        %v3744 = vadd.f32 %v3610, %v3718
        %v3745 = vadd.f32 %v3611, %v3719
        %v3746 = vadd.f32 %v3612, %v3718
        %v3747 = vadd.f32 %v3613, %v3719
        %v3748 = vadd.f32 %v3614, %v3718
        %v3749 = vadd.f32 %v3615, %v3719
        %v3750 = vadd.f32 %v3616, %v3718
        %v3751 = vadd.f32 %v3617, %v3719
        %v3752 = vadd.f32 %v3618, %v3718
        %v3753 = vadd.f32 %v3619, %v3719
        %v3754 = vadd.f32 %v3620, %v3718
        %v3755 = vadd.f32 %v3621, %v3719
        %v3756 = vadd.f32 %v3622, %v3718
        %v3757 = vadd.f32 %v3623, %v3719
        %v3758 = vadd.f32 %v3624, %v3718
        %v3759 = vadd.f32 %v3625, %v3719
        %v3760 = vadd.f32 %v3626, %v3718
        %v3761 = vadd.f32 %v3627, %v3719
        %v3762 = vadd.f32 %v3628, %v3718
        %v3763 = vadd.f32 %v3629, %v3719
        %v3764 = vadd.f32 %v3630, %v3718
        %v3765 = vadd.f32 %v3631, %v3719
        %v3766 = vadd.f32 %v3632, %v3718
        %v3767 = vadd.f32 %v3633, %v3719
        %v3768 = vadd.f32 %v3634, %v3718
        %v3769 = vadd.f32 %v3635, %v3719
        %v3770 = vadd.f32 %v3636, %v3718
        %v3771 = vadd.f32 %v3637, %v3719
        %v3772 = vadd.f32 %v3638, %v3718
        %v3773 = vadd.f32 %v3639, %v3719
        %v3774 = vadd.f32 %v3640, %v3718
        %v3775 = vadd.f32 %v3641, %v3719
        %v3776 = vadd.f32 %v3642, %v3718
        %v3777 = vadd.f32 %v3643, %v3719
        %v3778 = vadd.f32 %v3644, %v3718
        %v3779 = vadd.f32 %v3645, %v3719
        %v3780 = vadd.f32 %v3646, %v3718
        %v3781 = vadd.f32 %v3647, %v3719
        %v3782 = vadd.f32 %v3648, %v3718
        %v3783 = vadd.f32 %v3649, %v3719
        %v3784 = vadd.f32 %v3650, %v3718
        %v3785 = vadd.f32 %v3651, %v3719
        %v3786 = vadd.f32 %v3652, %v3718
        %v3787 = vadd.f32 %v3653, %v3719
        %v3788 = vadd.f32 %v3654, %v3718
        %v3789 = vadd.f32 %v3655, %v3719
        %v3790 = vadd.f32 %v3656, %v3718
        %v3791 = vadd.f32 %v3657, %v3719
        %v3792 = vadd.f32 %v3658, %v3718
        %v3793 = vadd.f32 %v3659, %v3719
        %v3794 = vadd.f32 %v3660, %v3718
        %v3795 = vadd.f32 %v3661, %v3719
        %v3796 = vadd.f32 %v3662, %v3718
        %v3797 = vadd.f32 %v3663, %v3719
        %v3798 = vadd.f32 %v3664, %v3718
        %v3799 = vadd.f32 %v3665, %v3719
        %v3800 = vadd.f32 %v3666, %v3718
        %v3801 = vadd.f32 %v3667, %v3719
        %v3802 = vadd.f32 %v3668, %v3718
        %v3803 = vadd.f32 %v3669, %v3719
        %v3804 = vadd.f32 %v3670, %v3718
        %v3805 = vadd.f32 %v3671, %v3719
        %v3806 = vadd.f32 %v3672, %v3718
        %v3807 = vadd.f32 %v3673, %v3719
        %v3808 = vadd.f32 %v3674, %v3718
        %v3809 = vadd.f32 %v3675, %v3719
        %v3810 = vadd.f32 %v3676, %v3718
        %v3811 = vadd.f32 %v3677, %v3719
        %v3812 = vadd.f32 %v3678, %v3718
        %v3813 = vadd.f32 %v3679, %v3719
        %v3814 = vadd.f32 %v3680, %v3718
        %v3815 = vadd.f32 %v3681, %v3719
        %v3816 = vadd.f32 %v3682, %v3718
        %v3817 = vadd.f32 %v3683, %v3719
        %v3818 = vadd.f32 %v3684, %v3718
        %v3819 = vadd.f32 %v3685, %v3719
        %v3820 = vadd.f32 %v3686, %v3718
        %v3821 = vadd.f32 %v3687, %v3719
        %v3822 = vadd.f32 %v3688, %v3718
        %v3823 = vadd.f32 %v3689, %v3719
        %v3824 = vadd.f32 %v3690, %v3718
        %v3825 = vadd.f32 %v3691, %v3719
        %v3826 = vadd.f32 %v3692, %v3718
        %v3827 = vadd.f32 %v3693, %v3719
        %v3828 = vadd.f32 %v3694, %v3718
        %v3829 = vadd.f32 %v3695, %v3719
        %v3830 = vadd.f32 %v3696, %v3718
        %v3831 = vadd.f32 %v3697, %v3719
        %v3832 = vadd.f32 %v3698, %v3718
        %v3833 = vadd.f32 %v3699, %v3719
        %v3834 = vadd.f32 %v3700, %v3718
        %v3835 = vadd.f32 %v3701, %v3719
        %v3836 = vadd.f32 %v3702, %v3718
        %v3837 = vadd.f32 %v3703, %v3719
        %v3838 = vadd.f32 %v3704, %v3718
        %v3839 = vadd.f32 %v3705, %v3719
        %v3840 = vadd.f32 %v3706, %v3718
        %v3841 = vadd.f32 %v3707, %v3719
        %v3842 = vadd.f32 %v3708, %v3718
        %v3843 = vadd.f32 %v3709, %v3719
        %v3844 = vadd.f32 %v3710, %v3718
        %v3845 = vadd.f32 %v3711, %v3719
        %v3846 = vadd.f32 %v3712, %v3718
        %v3847 = vadd.f32 %v3713, %v3719
        %v3848 = vadd.f32 %v3714, %v3718
        %v3849 = vadd.f32 %v3715, %v3719
        %v3850 = vmul.f32 %v3722, 0.5
        %v3851 = vmul.f32 %v3724, 0.5
        %v3852 = vmul.f32 %v3726, 0.5
        %v3853 = vmul.f32 %v3728, 0.5
        %v3854 = vmul.f32 %v3730, 0.5
        %v3855 = vmul.f32 %v3732, 0.5
        %v3856 = vmul.f32 %v3734, 0.5
        %v3857 = vmul.f32 %v3736, 0.5
        %v3858 = vmul.f32 %v3738, 0.5
        %v3859 = vmul.f32 %v3740, 0.5
        %v3860 = vmul.f32 %v3742, 0.5
        %v3861 = vmul.f32 %v3744, 0.5
        %v3862 = vmul.f32 %v3746, 0.5
        %v3863 = vmul.f32 %v3748, 0.5
        %v3864 = vmul.f32 %v3750, 0.5
        %v3865 = vmul.f32 %v3752, 0.5
        %v3866 = vmul.f32 %v3754, 0.5
        %v3867 = vmul.f32 %v3756, 0.5
        %v3868 = vmul.f32 %v3758, 0.5
        %v3869 = vmul.f32 %v3760, 0.5
        %v3870 = vmul.f32 %v3762, 0.5
        %v3871 = vmul.f32 %v3764, 0.5
        %v3872 = vmul.f32 %v3766, 0.5
        %v3873 = vmul.f32 %v3768, 0.5
        %v3874 = vmul.f32 %v3770, 0.5
        %v3875 = vmul.f32 %v3772, 0.5
        %v3876 = vmul.f32 %v3774, 0.5
        %v3877 = vmul.f32 %v3776, 0.5
        %v3878 = vmul.f32 %v3778, 0.5
        %v3879 = vmul.f32 %v3780, 0.5
        %v3880 = vmul.f32 %v3782, 0.5
        %v3881 = vmul.f32 %v3784, 0.5
        %v3882 = vmul.f32 %v3786, 0.5
        %v3883 = vmul.f32 %v3788, 0.5
        %v3884 = vmul.f32 %v3790, 0.5
        %v3885 = vmul.f32 %v3792, 0.5
        %v3886 = vmul.f32 %v3794, 0.5
        %v3887 = vmul.f32 %v3796, 0.5
        %v3888 = vmul.f32 %v3798, 0.5
        %v3889 = vmul.f32 %v3800, 0.5
        %v3890 = vmul.f32 %v3802, 0.5
        %v3891 = vmul.f32 %v3804, 0.5
        %v3892 = vmul.f32 %v3806, 0.5
        %v3893 = vmul.f32 %v3808, 0.5
        %v3894 = vmul.f32 %v3810, 0.5
        %v3895 = vmul.f32 %v3812, 0.5
        %v3896 = vmul.f32 %v3814, 0.5
        %v3897 = vmul.f32 %v3816, 0.5
        %v3898 = vmul.f32 %v3818, 0.5
        %v3899 = vmul.f32 %v3820, 0.5
        %v3900 = vmul.f32 %v3822, 0.5
        %v3901 = vmul.f32 %v3824, 0.5
        %v3902 = vmul.f32 %v3826, 0.5
        %v3903 = vmul.f32 %v3828, 0.5
        %v3904 = vmul.f32 %v3830, 0.5
        %v3905 = vmul.f32 %v3832, 0.5
        %v3906 = vmul.f32 %v3834, 0.5
        %v3907 = vmul.f32 %v3836, 0.5
        %v3908 = vmul.f32 %v3838, 0.5
        %v3909 = vmul.f32 %v3840, 0.5
        %v3910 = vmul.f32 %v3842, 0.5
        %v3911 = vmul.f32 %v3844, 0.5
        %v3912 = vmul.f32 %v3846, 0.5
        %v3913 = vmul.f32 %v3848, 0.5
        %v3914 = vtanh.pop %v3850
        %v3915 = vtanh.pop %v3851
        %v3916 = vtanh.pop %v3852
        %v3917 = vtanh.pop %v3853
        %v3918 = vtanh.pop %v3854
        %v3919 = vtanh.pop %v3855
        %v3920 = vtanh.pop %v3856
        %v3921 = vtanh.pop %v3857
        %v3922 = vtanh.pop %v3858
        %v3923 = vtanh.pop %v3859
        %v3924 = vtanh.pop %v3860
        %v3925 = vtanh.pop %v3861
        %v3926 = vtanh.pop %v3862
        %v3927 = vtanh.pop %v3863
        %v3928 = vtanh.pop %v3864
        %v3929 = vtanh.pop %v3865
        %v3930 = vtanh.pop %v3866
        %v3931 = vtanh.pop %v3867
        %v3932 = vtanh.pop %v3868
        %v3933 = vtanh.pop %v3869
        %v3934 = vtanh.pop %v3870
        %v3935 = vtanh.pop %v3871
        %v3936 = vtanh.pop %v3872
        %v3937 = vtanh.pop %v3873
        %v3938 = vtanh.pop %v3874
        %v3939 = vtanh.pop %v3875
        %v3940 = vtanh.pop %v3876
        %v3941 = vtanh.pop %v3877
        %v3942 = vtanh.pop %v3878
        %v3943 = vtanh.pop %v3879
        %v3944 = vtanh.pop %v3880
        %v3945 = vtanh.pop %v3881
        %v3946 = vtanh.pop %v3882
        %v3947 = vtanh.pop %v3883
        %v3948 = vtanh.pop %v3884
        %v3949 = vtanh.pop %v3885
        %v3950 = vtanh.pop %v3886
        %v3951 = vtanh.pop %v3887
        %v3952 = vtanh.pop %v3888
        %v3953 = vtanh.pop %v3889
        %v3954 = vtanh.pop %v3890
        %v3955 = vtanh.pop %v3891
        %v3956 = vtanh.pop %v3892
        %v3957 = vtanh.pop %v3893
        %v3958 = vtanh.pop %v3894
        %v3959 = vtanh.pop %v3895
        %v3960 = vtanh.pop %v3896
        %v3961 = vtanh.pop %v3897
        %v3962 = vtanh.pop %v3898
        %v3963 = vtanh.pop %v3899
        %v3964 = vtanh.pop %v3900
        %v3965 = vtanh.pop %v3901
        %v3966 = vtanh.pop %v3902
        %v3967 = vtanh.pop %v3903
        %v3968 = vtanh.pop %v3904
        %v3969 = vtanh.pop %v3905
        %v3970 = vtanh.pop %v3906
        %v3971 = vtanh.pop %v3907
        %v3972 = vtanh.pop %v3908
        %v3973 = vtanh.pop %v3909
        %v3974 = vtanh.pop %v3910
        %v3975 = vtanh.pop %v3911
        %v3976 = vtanh.pop %v3912
        %v3977 = vtanh.pop %v3913
        %v3978 = vadd.f32 %v3914, 1.0
        %v3979 = vadd.f32 %v3915, 1.0
        %v3980 = vadd.f32 %v3916, 1.0
        %v3981 = vadd.f32 %v3917, 1.0
        %v3982 = vadd.f32 %v3918, 1.0
        %v3983 = vadd.f32 %v3919, 1.0
        %v3984 = vadd.f32 %v3920, 1.0
        %v3985 = vadd.f32 %v3921, 1.0
        %v3986 = vadd.f32 %v3922, 1.0
        %v3987 = vadd.f32 %v3923, 1.0
        %v3988 = vadd.f32 %v3924, 1.0
        %v3989 = vadd.f32 %v3925, 1.0
        %v3990 = vadd.f32 %v3926, 1.0
        %v3991 = vadd.f32 %v3927, 1.0
        %v3992 = vadd.f32 %v3928, 1.0
        %v3993 = vadd.f32 %v3929, 1.0
        %v3994 = vadd.f32 %v3930, 1.0
        %v3995 = vadd.f32 %v3931, 1.0
        %v3996 = vadd.f32 %v3932, 1.0
        %v3997 = vadd.f32 %v3933, 1.0
        %v3998 = vadd.f32 %v3934, 1.0
        %v3999 = vadd.f32 %v3935, 1.0
        %v4000 = vadd.f32 %v3936, 1.0
        %v4001 = vadd.f32 %v3937, 1.0
        %v4002 = vadd.f32 %v3938, 1.0
        %v4003 = vadd.f32 %v3939, 1.0
        %v4004 = vadd.f32 %v3940, 1.0
        %v4005 = vadd.f32 %v3941, 1.0
        %v4006 = vadd.f32 %v3942, 1.0
        %v4007 = vadd.f32 %v3943, 1.0
        %v4008 = vadd.f32 %v3944, 1.0
        %v4009 = vadd.f32 %v3945, 1.0
        %v4010 = vadd.f32 %v3946, 1.0
        %v4011 = vadd.f32 %v3947, 1.0
        %v4012 = vadd.f32 %v3948, 1.0
        %v4013 = vadd.f32 %v3949, 1.0
        %v4014 = vadd.f32 %v3950, 1.0
        %v4015 = vadd.f32 %v3951, 1.0
        %v4016 = vadd.f32 %v3952, 1.0
        %v4017 = vadd.f32 %v3953, 1.0
        %v4018 = vadd.f32 %v3954, 1.0
        %v4019 = vadd.f32 %v3955, 1.0
        %v4020 = vadd.f32 %v3956, 1.0
        %v4021 = vadd.f32 %v3957, 1.0
        %v4022 = vadd.f32 %v3958, 1.0
        %v4023 = vadd.f32 %v3959, 1.0
        %v4024 = vadd.f32 %v3960, 1.0
        %v4025 = vadd.f32 %v3961, 1.0
        %v4026 = vadd.f32 %v3962, 1.0
        %v4027 = vadd.f32 %v3963, 1.0
        %v4028 = vadd.f32 %v3964, 1.0
        %v4029 = vadd.f32 %v3965, 1.0
        %v4030 = vadd.f32 %v3966, 1.0
        %v4031 = vadd.f32 %v3967, 1.0
        %v4032 = vadd.f32 %v3968, 1.0
        %v4033 = vadd.f32 %v3969, 1.0
        %v4034 = vadd.f32 %v3970, 1.0
        %v4035 = vadd.f32 %v3971, 1.0
        %v4036 = vadd.f32 %v3972, 1.0
        %v4037 = vadd.f32 %v3973, 1.0
        %v4038 = vadd.f32 %v3974, 1.0
        %v4039 = vadd.f32 %v3975, 1.0
        %v4040 = vadd.f32 %v3976, 1.0
        %v4041 = vadd.f32 %v3977, 1.0
        %v4042 = vmul.f32 %v3978, 0.5
        %v4043 = vmul.f32 %v3979, 0.5
        %v4044 = vmul.f32 %v3980, 0.5
        %v4045 = vmul.f32 %v3981, 0.5
        %v4046 = vmul.f32 %v3982, 0.5
        %v4047 = vmul.f32 %v3983, 0.5
        %v4048 = vmul.f32 %v3984, 0.5
        %v4049 = vmul.f32 %v3985, 0.5
        %v4050 = vmul.f32 %v3986, 0.5
        %v4051 = vmul.f32 %v3987, 0.5
        %v4052 = vmul.f32 %v3988, 0.5
        %v4053 = vmul.f32 %v3989, 0.5
        %v4054 = vmul.f32 %v3990, 0.5
        %v4055 = vmul.f32 %v3991, 0.5
        %v4056 = vmul.f32 %v3992, 0.5
        %v4057 = vmul.f32 %v3993, 0.5
        %v4058 = vmul.f32 %v3994, 0.5
        %v4059 = vmul.f32 %v3995, 0.5
        %v4060 = vmul.f32 %v3996, 0.5
        %v4061 = vmul.f32 %v3997, 0.5
        %v4062 = vmul.f32 %v3998, 0.5
        %v4063 = vmul.f32 %v3999, 0.5
        %v4064 = vmul.f32 %v4000, 0.5
        %v4065 = vmul.f32 %v4001, 0.5
        %v4066 = vmul.f32 %v4002, 0.5
        %v4067 = vmul.f32 %v4003, 0.5
        %v4068 = vmul.f32 %v4004, 0.5
        %v4069 = vmul.f32 %v4005, 0.5
        %v4070 = vmul.f32 %v4006, 0.5
        %v4071 = vmul.f32 %v4007, 0.5
        %v4072 = vmul.f32 %v4008, 0.5
        %v4073 = vmul.f32 %v4009, 0.5
        %v4074 = vmul.f32 %v4010, 0.5
        %v4075 = vmul.f32 %v4011, 0.5
        %v4076 = vmul.f32 %v4012, 0.5
        %v4077 = vmul.f32 %v4013, 0.5
        %v4078 = vmul.f32 %v4014, 0.5
        %v4079 = vmul.f32 %v4015, 0.5
        %v4080 = vmul.f32 %v4016, 0.5
        %v4081 = vmul.f32 %v4017, 0.5
        %v4082 = vmul.f32 %v4018, 0.5
        %v4083 = vmul.f32 %v4019, 0.5
        %v4084 = vmul.f32 %v4020, 0.5
        %v4085 = vmul.f32 %v4021, 0.5
        %v4086 = vmul.f32 %v4022, 0.5
        %v4087 = vmul.f32 %v4023, 0.5
        %v4088 = vmul.f32 %v4024, 0.5
        %v4089 = vmul.f32 %v4025, 0.5
        %v4090 = vmul.f32 %v4026, 0.5
        %v4091 = vmul.f32 %v4027, 0.5
        %v4092 = vmul.f32 %v4028, 0.5
        %v4093 = vmul.f32 %v4029, 0.5
        %v4094 = vmul.f32 %v4030, 0.5
        %v4095 = vmul.f32 %v4031, 0.5
        %v4096 = vmul.f32 %v4032, 0.5
        %v4097 = vmul.f32 %v4033, 0.5
        %v4098 = vmul.f32 %v4034, 0.5
        %v4099 = vmul.f32 %v4035, 0.5
        %v4100 = vmul.f32 %v4036, 0.5
        %v4101 = vmul.f32 %v4037, 0.5
        %v4102 = vmul.f32 %v4038, 0.5
        %v4103 = vmul.f32 %v4039, 0.5
        %v4104 = vmul.f32 %v4040, 0.5
        %v4105 = vmul.f32 %v4041, 0.5
        %v4106 = vmax.f32 %v3723, 0.0
        %v4107 = vmax.f32 %v3725, 0.0
        %v4108 = vmax.f32 %v3727, 0.0
        %v4109 = vmax.f32 %v3729, 0.0
        %v4110 = vmax.f32 %v3731, 0.0
        %v4111 = vmax.f32 %v3733, 0.0
        %v4112 = vmax.f32 %v3735, 0.0
        %v4113 = vmax.f32 %v3737, 0.0
        %v4114 = vmax.f32 %v3739, 0.0
        %v4115 = vmax.f32 %v3741, 0.0
        %v4116 = vmax.f32 %v3743, 0.0
        %v4117 = vmax.f32 %v3745, 0.0
        %v4118 = vmax.f32 %v3747, 0.0
        %v4119 = vmax.f32 %v3749, 0.0
        %v4120 = vmax.f32 %v3751, 0.0
        %v4121 = vmax.f32 %v3753, 0.0
        %v4122 = vmax.f32 %v3755, 0.0
        %v4123 = vmax.f32 %v3757, 0.0
        %v4124 = vmax.f32 %v3759, 0.0
        %v4125 = vmax.f32 %v3761, 0.0
        %v4126 = vmax.f32 %v3763, 0.0
        %v4127 = vmax.f32 %v3765, 0.0
        %v4128 = vmax.f32 %v3767, 0.0
        %v4129 = vmax.f32 %v3769, 0.0
        %v4130 = vmax.f32 %v3771, 0.0
        %v4131 = vmax.f32 %v3773, 0.0
        %v4132 = vmax.f32 %v3775, 0.0
        %v4133 = vmax.f32 %v3777, 0.0
        %v4134 = vmax.f32 %v3779, 0.0
        %v4135 = vmax.f32 %v3781, 0.0
        %v4136 = vmax.f32 %v3783, 0.0
        %v4137 = vmax.f32 %v3785, 0.0
        %v4138 = vmax.f32 %v3787, 0.0
        %v4139 = vmax.f32 %v3789, 0.0
        %v4140 = vmax.f32 %v3791, 0.0
        %v4141 = vmax.f32 %v3793, 0.0
        %v4142 = vmax.f32 %v3795, 0.0
        %v4143 = vmax.f32 %v3797, 0.0
        %v4144 = vmax.f32 %v3799, 0.0
        %v4145 = vmax.f32 %v3801, 0.0
        %v4146 = vmax.f32 %v3803, 0.0
        %v4147 = vmax.f32 %v3805, 0.0
        %v4148 = vmax.f32 %v3807, 0.0
        %v4149 = vmax.f32 %v3809, 0.0
        %v4150 = vmax.f32 %v3811, 0.0
        %v4151 = vmax.f32 %v3813, 0.0
        %v4152 = vmax.f32 %v3815, 0.0
        %v4153 = vmax.f32 %v3817, 0.0
        %v4154 = vmax.f32 %v3819, 0.0
        %v4155 = vmax.f32 %v3821, 0.0
        %v4156 = vmax.f32 %v3823, 0.0
        %v4157 = vmax.f32 %v3825, 0.0
        %v4158 = vmax.f32 %v3827, 0.0
        %v4159 = vmax.f32 %v3829, 0.0
        %v4160 = vmax.f32 %v3831, 0.0
        %v4161 = vmax.f32 %v3833, 0.0
        %v4162 = vmax.f32 %v3835, 0.0
        %v4163 = vmax.f32 %v3837, 0.0
        %v4164 = vmax.f32 %v3839, 0.0
        %v4165 = vmax.f32 %v3841, 0.0
        %v4166 = vmax.f32 %v3843, 0.0
        %v4167 = vmax.f32 %v3845, 0.0
        %v4168 = vmax.f32 %v3847, 0.0
        %v4169 = vmax.f32 %v3849, 0.0
        %v4170 = vand.u32 2147483647, %v3723
        %v4171 = vand.u32 2147483647, %v3725
        %v4172 = vand.u32 2147483647, %v3727
        %v4173 = vand.u32 2147483647, %v3729
        %v4174 = vand.u32 2147483647, %v3731
        %v4175 = vand.u32 2147483647, %v3733
        %v4176 = vand.u32 2147483647, %v3735
        %v4177 = vand.u32 2147483647, %v3737
        %v4178 = vand.u32 2147483647, %v3739
        %v4179 = vand.u32 2147483647, %v3741
        %v4180 = vand.u32 2147483647, %v3743
        %v4181 = vand.u32 2147483647, %v3745
        %v4182 = vand.u32 2147483647, %v3747
        %v4183 = vand.u32 2147483647, %v3749
        %v4184 = vand.u32 2147483647, %v3751
        %v4185 = vand.u32 2147483647, %v3753
        %v4186 = vand.u32 2147483647, %v3755
        %v4187 = vand.u32 2147483647, %v3757
        %v4188 = vand.u32 2147483647, %v3759
        %v4189 = vand.u32 2147483647, %v3761
        %v4190 = vand.u32 2147483647, %v3763
        %v4191 = vand.u32 2147483647, %v3765
        %v4192 = vand.u32 2147483647, %v3767
        %v4193 = vand.u32 2147483647, %v3769
        %v4194 = vand.u32 2147483647, %v3771
        %v4195 = vand.u32 2147483647, %v3773
        %v4196 = vand.u32 2147483647, %v3775
        %v4197 = vand.u32 2147483647, %v3777
        %v4198 = vand.u32 2147483647, %v3779
        %v4199 = vand.u32 2147483647, %v3781
        %v4200 = vand.u32 2147483647, %v3783
        %v4201 = vand.u32 2147483647, %v3785
        %v4202 = vand.u32 2147483647, %v3787
        %v4203 = vand.u32 2147483647, %v3789
        %v4204 = vand.u32 2147483647, %v3791
        %v4205 = vand.u32 2147483647, %v3793
        %v4206 = vand.u32 2147483647, %v3795
        %v4207 = vand.u32 2147483647, %v3797
        %v4208 = vand.u32 2147483647, %v3799
        %v4209 = vand.u32 2147483647, %v3801
        %v4210 = vand.u32 2147483647, %v3803
        %v4211 = vand.u32 2147483647, %v3805
        %v4212 = vand.u32 2147483647, %v3807
        %v4213 = vand.u32 2147483647, %v3809
        %v4214 = vand.u32 2147483647, %v3811
        %v4215 = vand.u32 2147483647, %v3813
        %v4216 = vand.u32 2147483647, %v3815
        %v4217 = vand.u32 2147483647, %v3817
        %v4218 = vand.u32 2147483647, %v3819
        %v4219 = vand.u32 2147483647, %v3821
        %v4220 = vand.u32 2147483647, %v3823
        %v4221 = vand.u32 2147483647, %v3825
        %v4222 = vand.u32 2147483647, %v3827
        %v4223 = vand.u32 2147483647, %v3829
        %v4224 = vand.u32 2147483647, %v3831
        %v4225 = vand.u32 2147483647, %v3833
        %v4226 = vand.u32 2147483647, %v3835
        %v4227 = vand.u32 2147483647, %v3837
        %v4228 = vand.u32 2147483647, %v3839
        %v4229 = vand.u32 2147483647, %v3841
        %v4230 = vand.u32 2147483647, %v3843
        %v4231 = vand.u32 2147483647, %v3845
        %v4232 = vand.u32 2147483647, %v3847
        %v4233 = vand.u32 2147483647, %v3849
        %v4234 = vsub.f32 0.0, %v4170
        %v4235 = vsub.f32 0.0, %v4171
        %v4236 = vsub.f32 0.0, %v4172
        %v4237 = vsub.f32 0.0, %v4173
        %v4238 = vsub.f32 0.0, %v4174
        %v4239 = vsub.f32 0.0, %v4175
        %v4240 = vsub.f32 0.0, %v4176
        %v4241 = vsub.f32 0.0, %v4177
        %v4242 = vsub.f32 0.0, %v4178
        %v4243 = vsub.f32 0.0, %v4179
        %v4244 = vsub.f32 0.0, %v4180
        %v4245 = vsub.f32 0.0, %v4181
        %v4246 = vsub.f32 0.0, %v4182
        %v4247 = vsub.f32 0.0, %v4183
        %v4248 = vsub.f32 0.0, %v4184
        %v4249 = vsub.f32 0.0, %v4185
        %v4250 = vsub.f32 0.0, %v4186
        %v4251 = vsub.f32 0.0, %v4187
        %v4252 = vsub.f32 0.0, %v4188
        %v4253 = vsub.f32 0.0, %v4189
        %v4254 = vsub.f32 0.0, %v4190
        %v4255 = vsub.f32 0.0, %v4191
        %v4256 = vsub.f32 0.0, %v4192
        %v4257 = vsub.f32 0.0, %v4193
        %v4258 = vsub.f32 0.0, %v4194
        %v4259 = vsub.f32 0.0, %v4195
        %v4260 = vsub.f32 0.0, %v4196
        %v4261 = vsub.f32 0.0, %v4197
        %v4262 = vsub.f32 0.0, %v4198
        %v4263 = vsub.f32 0.0, %v4199
        %v4264 = vsub.f32 0.0, %v4200
        %v4265 = vsub.f32 0.0, %v4201
        %v4266 = vsub.f32 0.0, %v4202
        %v4267 = vsub.f32 0.0, %v4203
        %v4268 = vsub.f32 0.0, %v4204
        %v4269 = vsub.f32 0.0, %v4205
        %v4270 = vsub.f32 0.0, %v4206
        %v4271 = vsub.f32 0.0, %v4207
        %v4272 = vsub.f32 0.0, %v4208
        %v4273 = vsub.f32 0.0, %v4209
        %v4274 = vsub.f32 0.0, %v4210
        %v4275 = vsub.f32 0.0, %v4211
        %v4276 = vsub.f32 0.0, %v4212
        %v4277 = vsub.f32 0.0, %v4213
        %v4278 = vsub.f32 0.0, %v4214
        %v4279 = vsub.f32 0.0, %v4215
        %v4280 = vsub.f32 0.0, %v4216
        %v4281 = vsub.f32 0.0, %v4217
        %v4282 = vsub.f32 0.0, %v4218
        %v4283 = vsub.f32 0.0, %v4219
        %v4284 = vsub.f32 0.0, %v4220
        %v4285 = vsub.f32 0.0, %v4221
        %v4286 = vsub.f32 0.0, %v4222
        %v4287 = vsub.f32 0.0, %v4223
        %v4288 = vsub.f32 0.0, %v4224
        %v4289 = vsub.f32 0.0, %v4225
        %v4290 = vsub.f32 0.0, %v4226
        %v4291 = vsub.f32 0.0, %v4227
        %v4292 = vsub.f32 0.0, %v4228
        %v4293 = vsub.f32 0.0, %v4229
        %v4294 = vsub.f32 0.0, %v4230
        %v4295 = vsub.f32 0.0, %v4231
        %v4296 = vsub.f32 0.0, %v4232
        %v4297 = vsub.f32 0.0, %v4233
        %v4298 = vmul.f32 %v4234, 1.442695
        %v4299 = vpow.pop %v4298
        %v4300 = vmul.f32 %v4235, 1.442695
        %v4301 = vpow.pop %v4300
        %v4302 = vmul.f32 %v4236, 1.442695
        %v4303 = vpow.pop %v4302
        %v4304 = vmul.f32 %v4237, 1.442695
        %v4305 = vpow.pop %v4304
        %v4306 = vmul.f32 %v4238, 1.442695
        %v4307 = vpow.pop %v4306
        %v4308 = vmul.f32 %v4239, 1.442695
        %v4309 = vpow.pop %v4308
        %v4310 = vmul.f32 %v4240, 1.442695
        %v4311 = vpow.pop %v4310
        %v4312 = vmul.f32 %v4241, 1.442695
        %v4313 = vpow.pop %v4312
        %v4314 = vmul.f32 %v4242, 1.442695
        %v4315 = vpow.pop %v4314
        %v4316 = vmul.f32 %v4243, 1.442695
        %v4317 = vpow.pop %v4316
        %v4318 = vmul.f32 %v4244, 1.442695
        %v4319 = vpow.pop %v4318
        %v4320 = vmul.f32 %v4245, 1.442695
        %v4321 = vpow.pop %v4320
        %v4322 = vmul.f32 %v4246, 1.442695
        %v4323 = vpow.pop %v4322
        %v4324 = vmul.f32 %v4247, 1.442695
        %v4325 = vpow.pop %v4324
        %v4326 = vmul.f32 %v4248, 1.442695
        %v4327 = vpow.pop %v4326
        %v4328 = vmul.f32 %v4249, 1.442695
        %v4329 = vpow.pop %v4328
        %v4330 = vmul.f32 %v4250, 1.442695
        %v4331 = vpow.pop %v4330
        %v4332 = vmul.f32 %v4251, 1.442695
        %v4333 = vpow.pop %v4332
        %v4334 = vmul.f32 %v4252, 1.442695
        %v4335 = vpow.pop %v4334
        %v4336 = vmul.f32 %v4253, 1.442695
        %v4337 = vpow.pop %v4336
        %v4338 = vmul.f32 %v4254, 1.442695
        %v4339 = vpow.pop %v4338
        %v4340 = vmul.f32 %v4255, 1.442695
        %v4341 = vpow.pop %v4340
        %v4342 = vmul.f32 %v4256, 1.442695
        %v4343 = vpow.pop %v4342
        %v4344 = vmul.f32 %v4257, 1.442695
        %v4345 = vpow.pop %v4344
        %v4346 = vmul.f32 %v4258, 1.442695
        %v4347 = vpow.pop %v4346
        %v4348 = vmul.f32 %v4259, 1.442695
        %v4349 = vpow.pop %v4348
        %v4350 = vmul.f32 %v4260, 1.442695
        %v4351 = vpow.pop %v4350
        %v4352 = vmul.f32 %v4261, 1.442695
        %v4353 = vpow.pop %v4352
        %v4354 = vmul.f32 %v4262, 1.442695
        %v4355 = vpow.pop %v4354
        %v4356 = vmul.f32 %v4263, 1.442695
        %v4357 = vpow.pop %v4356
        %v4358 = vmul.f32 %v4264, 1.442695
        %v4359 = vpow.pop %v4358
        %v4360 = vmul.f32 %v4265, 1.442695
        %v4361 = vpow.pop %v4360
        %v4362 = vmul.f32 %v4266, 1.442695
        %v4363 = vpow.pop %v4362
        %v4364 = vmul.f32 %v4267, 1.442695
        %v4365 = vpow.pop %v4364
        %v4366 = vmul.f32 %v4268, 1.442695
        %v4367 = vpow.pop %v4366
        %v4368 = vmul.f32 %v4269, 1.442695
        %v4369 = vpow.pop %v4368
        %v4370 = vmul.f32 %v4270, 1.442695
        %v4371 = vpow.pop %v4370
        %v4372 = vmul.f32 %v4271, 1.442695
        %v4373 = vpow.pop %v4372
        %v4374 = vmul.f32 %v4272, 1.442695
        %v4375 = vpow.pop %v4374
        %v4376 = vmul.f32 %v4273, 1.442695
        %v4377 = vpow.pop %v4376
        %v4378 = vmul.f32 %v4274, 1.442695
        %v4379 = vpow.pop %v4378
        %v4380 = vmul.f32 %v4275, 1.442695
        %v4381 = vpow.pop %v4380
        %v4382 = vmul.f32 %v4276, 1.442695
        %v4383 = vpow.pop %v4382
        %v4384 = vmul.f32 %v4277, 1.442695
        %v4385 = vpow.pop %v4384
        %v4386 = vmul.f32 %v4278, 1.442695
        %v4387 = vpow.pop %v4386
        %v4388 = vmul.f32 %v4279, 1.442695
        %v4389 = vpow.pop %v4388
        %v4390 = vmul.f32 %v4280, 1.442695
        %v4391 = vpow.pop %v4390
        %v4392 = vmul.f32 %v4281, 1.442695
        %v4393 = vpow.pop %v4392
        %v4394 = vmul.f32 %v4282, 1.442695
        %v4395 = vpow.pop %v4394
        %v4396 = vmul.f32 %v4283, 1.442695
        %v4397 = vpow.pop %v4396
        %v4398 = vmul.f32 %v4284, 1.442695
        %v4399 = vpow.pop %v4398
        %v4400 = vmul.f32 %v4285, 1.442695
        %v4401 = vpow.pop %v4400
        %v4402 = vmul.f32 %v4286, 1.442695
        %v4403 = vpow.pop %v4402
        %v4404 = vmul.f32 %v4287, 1.442695
        %v4405 = vpow.pop %v4404
        %v4406 = vmul.f32 %v4288, 1.442695
        %v4407 = vpow.pop %v4406
        %v4408 = vmul.f32 %v4289, 1.442695
        %v4409 = vpow.pop %v4408
        %v4410 = vmul.f32 %v4290, 1.442695
        %v4411 = vpow.pop %v4410
        %v4412 = vmul.f32 %v4291, 1.442695
        %v4413 = vpow.pop %v4412
        %v4414 = vmul.f32 %v4292, 1.442695
        %v4415 = vpow.pop %v4414
        %v4416 = vmul.f32 %v4293, 1.442695
        %v4417 = vpow.pop %v4416
        %v4418 = vmul.f32 %v4294, 1.442695
        %v4419 = vpow.pop %v4418
        %v4420 = vmul.f32 %v4295, 1.442695
        %v4421 = vpow.pop %v4420
        %v4422 = vmul.f32 %v4296, 1.442695
        %v4423 = vpow.pop %v4422
        %v4424 = vmul.f32 %v4297, 1.442695
        %v4425 = vpow.pop %v4424
        %v4426 = vadd.f32 %v4299, 1.0
        %v4427 = vlog2.pop %v4426
        %v4428 = vmul.f32 %v4427, 0.6931472
        %v4429 = vmul.f32 -0.5, %v4299
        %v4430 = vadd.f32 %v4429, 1.0
        %v4431 = vmul.f32 %v4430, %v4299
        %v4432 = vand.u32 2147483647, %v4299
        %vm4433 = vcmp.lt.f32.partialorder %v4432, 0.0004427343
        %v4434 = vsel %vm4433, %v4431, %v4428
        %v4435 = vadd.f32 %v4301, 1.0
        %v4436 = vlog2.pop %v4435
        %v4437 = vmul.f32 %v4436, 0.6931472
        %v4438 = vmul.f32 -0.5, %v4301
        %v4439 = vadd.f32 %v4438, 1.0
        %v4440 = vmul.f32 %v4439, %v4301
        %v4441 = vand.u32 2147483647, %v4301
        %vm4442 = vcmp.lt.f32.partialorder %v4441, 0.0004427343
        %v4443 = vsel %vm4442, %v4440, %v4437
        %v4444 = vadd.f32 %v4303, 1.0
        %v4445 = vlog2.pop %v4444
        %v4446 = vmul.f32 %v4445, 0.6931472
        %v4447 = vmul.f32 -0.5, %v4303
        %v4448 = vadd.f32 %v4447, 1.0
        %v4449 = vmul.f32 %v4448, %v4303
        %v4450 = vand.u32 2147483647, %v4303
        %vm4451 = vcmp.lt.f32.partialorder %v4450, 0.0004427343
        %v4452 = vsel %vm4451, %v4449, %v4446
        %v4453 = vadd.f32 %v4305, 1.0
        %v4454 = vlog2.pop %v4453
        %v4455 = vmul.f32 %v4454, 0.6931472
        %v4456 = vmul.f32 -0.5, %v4305
        %v4457 = vadd.f32 %v4456, 1.0
        %v4458 = vmul.f32 %v4457, %v4305
        %v4459 = vand.u32 2147483647, %v4305
        %vm4460 = vcmp.lt.f32.partialorder %v4459, 0.0004427343
        %v4461 = vsel %vm4460, %v4458, %v4455
        %v4462 = vadd.f32 %v4307, 1.0
        %v4463 = vlog2.pop %v4462
        %v4464 = vmul.f32 %v4463, 0.6931472
        %v4465 = vmul.f32 -0.5, %v4307
        %v4466 = vadd.f32 %v4465, 1.0
        %v4467 = vmul.f32 %v4466, %v4307
        %v4468 = vand.u32 2147483647, %v4307
        %vm4469 = vcmp.lt.f32.partialorder %v4468, 0.0004427343
        %v4470 = vsel %vm4469, %v4467, %v4464
        %v4471 = vadd.f32 %v4309, 1.0
        %v4472 = vlog2.pop %v4471
        %v4473 = vmul.f32 %v4472, 0.6931472
        %v4474 = vmul.f32 -0.5, %v4309
        %v4475 = vadd.f32 %v4474, 1.0
        %v4476 = vmul.f32 %v4475, %v4309
        %v4477 = vand.u32 2147483647, %v4309
        %vm4478 = vcmp.lt.f32.partialorder %v4477, 0.0004427343
        %v4479 = vsel %vm4478, %v4476, %v4473
        %v4480 = vadd.f32 %v4311, 1.0
        %v4481 = vlog2.pop %v4480
        %v4482 = vmul.f32 %v4481, 0.6931472
        %v4483 = vmul.f32 -0.5, %v4311
        %v4484 = vadd.f32 %v4483, 1.0
        %v4485 = vmul.f32 %v4484, %v4311
        %v4486 = vand.u32 2147483647, %v4311
        %vm4487 = vcmp.lt.f32.partialorder %v4486, 0.0004427343
        %v4488 = vsel %vm4487, %v4485, %v4482
        %v4489 = vadd.f32 %v4313, 1.0
        %v4490 = vlog2.pop %v4489
        %v4491 = vmul.f32 %v4490, 0.6931472
        %v4492 = vmul.f32 -0.5, %v4313
        %v4493 = vadd.f32 %v4492, 1.0
        %v4494 = vmul.f32 %v4493, %v4313
        %v4495 = vand.u32 2147483647, %v4313
        %vm4496 = vcmp.lt.f32.partialorder %v4495, 0.0004427343
        %v4497 = vsel %vm4496, %v4494, %v4491
        %v4498 = vadd.f32 %v4315, 1.0
        %v4499 = vlog2.pop %v4498
        %v4500 = vmul.f32 %v4499, 0.6931472
        %v4501 = vmul.f32 -0.5, %v4315
        %v4502 = vadd.f32 %v4501, 1.0
        %v4503 = vmul.f32 %v4502, %v4315
        %v4504 = vand.u32 2147483647, %v4315
        %vm4505 = vcmp.lt.f32.partialorder %v4504, 0.0004427343
        %v4506 = vsel %vm4505, %v4503, %v4500
        %v4507 = vadd.f32 %v4317, 1.0
        %v4508 = vlog2.pop %v4507
        %v4509 = vmul.f32 %v4508, 0.6931472
        %v4510 = vmul.f32 -0.5, %v4317
        %v4511 = vadd.f32 %v4510, 1.0
        %v4512 = vmul.f32 %v4511, %v4317
        %v4513 = vand.u32 2147483647, %v4317
        %vm4514 = vcmp.lt.f32.partialorder %v4513, 0.0004427343
        %v4515 = vsel %vm4514, %v4512, %v4509
        %v4516 = vadd.f32 %v4319, 1.0
        %v4517 = vlog2.pop %v4516
        %v4518 = vmul.f32 %v4517, 0.6931472
        %v4519 = vmul.f32 -0.5, %v4319
        %v4520 = vadd.f32 %v4519, 1.0
        %v4521 = vmul.f32 %v4520, %v4319
        %v4522 = vand.u32 2147483647, %v4319
        %vm4523 = vcmp.lt.f32.partialorder %v4522, 0.0004427343
        %v4524 = vsel %vm4523, %v4521, %v4518
        %v4525 = vadd.f32 %v4321, 1.0
        %v4526 = vlog2.pop %v4525
        %v4527 = vmul.f32 %v4526, 0.6931472
        %v4528 = vmul.f32 -0.5, %v4321
        %v4529 = vadd.f32 %v4528, 1.0
        %v4530 = vmul.f32 %v4529, %v4321
        %v4531 = vand.u32 2147483647, %v4321
        %vm4532 = vcmp.lt.f32.partialorder %v4531, 0.0004427343
        %v4533 = vsel %vm4532, %v4530, %v4527
        %v4534 = vadd.f32 %v4323, 1.0
        %v4535 = vlog2.pop %v4534
        %v4536 = vmul.f32 %v4535, 0.6931472
        %v4537 = vmul.f32 -0.5, %v4323
        %v4538 = vadd.f32 %v4537, 1.0
        %v4539 = vmul.f32 %v4538, %v4323
        %v4540 = vand.u32 2147483647, %v4323
        %vm4541 = vcmp.lt.f32.partialorder %v4540, 0.0004427343
        %v4542 = vsel %vm4541, %v4539, %v4536
        %v4543 = vadd.f32 %v4325, 1.0
        %v4544 = vlog2.pop %v4543
        %v4545 = vmul.f32 %v4544, 0.6931472
        %v4546 = vmul.f32 -0.5, %v4325
        %v4547 = vadd.f32 %v4546, 1.0
        %v4548 = vmul.f32 %v4547, %v4325
        %v4549 = vand.u32 2147483647, %v4325
        %vm4550 = vcmp.lt.f32.partialorder %v4549, 0.0004427343
        %v4551 = vsel %vm4550, %v4548, %v4545
        %v4552 = vadd.f32 %v4327, 1.0
        %v4553 = vlog2.pop %v4552
        %v4554 = vmul.f32 %v4553, 0.6931472
        %v4555 = vmul.f32 -0.5, %v4327
        %v4556 = vadd.f32 %v4555, 1.0
        %v4557 = vmul.f32 %v4556, %v4327
        %v4558 = vand.u32 2147483647, %v4327
        %vm4559 = vcmp.lt.f32.partialorder %v4558, 0.0004427343
        %v4560 = vsel %vm4559, %v4557, %v4554
        %v4561 = vadd.f32 %v4329, 1.0
        %v4562 = vlog2.pop %v4561
        %v4563 = vmul.f32 %v4562, 0.6931472
        %v4564 = vmul.f32 -0.5, %v4329
        %v4565 = vadd.f32 %v4564, 1.0
        %v4566 = vmul.f32 %v4565, %v4329
        %v4567 = vand.u32 2147483647, %v4329
        %vm4568 = vcmp.lt.f32.partialorder %v4567, 0.0004427343
        %v4569 = vsel %vm4568, %v4566, %v4563
        %v4570 = vadd.f32 %v4331, 1.0
        %v4571 = vlog2.pop %v4570
        %v4572 = vmul.f32 %v4571, 0.6931472
        %v4573 = vmul.f32 -0.5, %v4331
        %v4574 = vadd.f32 %v4573, 1.0
        %v4575 = vmul.f32 %v4574, %v4331
        %v4576 = vand.u32 2147483647, %v4331
        %vm4577 = vcmp.lt.f32.partialorder %v4576, 0.0004427343
        %v4578 = vsel %vm4577, %v4575, %v4572
        %v4579 = vadd.f32 %v4333, 1.0
        %v4580 = vlog2.pop %v4579
        %v4581 = vmul.f32 %v4580, 0.6931472
        %v4582 = vmul.f32 -0.5, %v4333
        %v4583 = vadd.f32 %v4582, 1.0
        %v4584 = vmul.f32 %v4583, %v4333
        %v4585 = vand.u32 2147483647, %v4333
        %vm4586 = vcmp.lt.f32.partialorder %v4585, 0.0004427343
        %v4587 = vsel %vm4586, %v4584, %v4581
        %v4588 = vadd.f32 %v4335, 1.0
        %v4589 = vlog2.pop %v4588
        %v4590 = vmul.f32 %v4589, 0.6931472
        %v4591 = vmul.f32 -0.5, %v4335
        %v4592 = vadd.f32 %v4591, 1.0
        %v4593 = vmul.f32 %v4592, %v4335
        %v4594 = vand.u32 2147483647, %v4335
        %vm4595 = vcmp.lt.f32.partialorder %v4594, 0.0004427343
        %v4596 = vsel %vm4595, %v4593, %v4590
        %v4597 = vadd.f32 %v4337, 1.0
        %v4598 = vlog2.pop %v4597
        %v4599 = vmul.f32 %v4598, 0.6931472
        %v4600 = vmul.f32 -0.5, %v4337
        %v4601 = vadd.f32 %v4600, 1.0
        %v4602 = vmul.f32 %v4601, %v4337
        %v4603 = vand.u32 2147483647, %v4337
        %vm4604 = vcmp.lt.f32.partialorder %v4603, 0.0004427343
        %v4605 = vsel %vm4604, %v4602, %v4599
        %v4606 = vadd.f32 %v4339, 1.0
        %v4607 = vlog2.pop %v4606
        %v4608 = vmul.f32 %v4607, 0.6931472
        %v4609 = vmul.f32 -0.5, %v4339
        %v4610 = vadd.f32 %v4609, 1.0
        %v4611 = vmul.f32 %v4610, %v4339
        %v4612 = vand.u32 2147483647, %v4339
        %vm4613 = vcmp.lt.f32.partialorder %v4612, 0.0004427343
        %v4614 = vsel %vm4613, %v4611, %v4608
        %v4615 = vadd.f32 %v4341, 1.0
        %v4616 = vlog2.pop %v4615
        %v4617 = vmul.f32 %v4616, 0.6931472
        %v4618 = vmul.f32 -0.5, %v4341
        %v4619 = vadd.f32 %v4618, 1.0
        %v4620 = vmul.f32 %v4619, %v4341
        %v4621 = vand.u32 2147483647, %v4341
        %vm4622 = vcmp.lt.f32.partialorder %v4621, 0.0004427343
        %v4623 = vsel %vm4622, %v4620, %v4617
        %v4624 = vadd.f32 %v4343, 1.0
        %v4625 = vlog2.pop %v4624
        %v4626 = vmul.f32 %v4625, 0.6931472
        %v4627 = vmul.f32 -0.5, %v4343
        %v4628 = vadd.f32 %v4627, 1.0
        %v4629 = vmul.f32 %v4628, %v4343
        %v4630 = vand.u32 2147483647, %v4343
        %vm4631 = vcmp.lt.f32.partialorder %v4630, 0.0004427343
        %v4632 = vsel %vm4631, %v4629, %v4626
        %v4633 = vadd.f32 %v4345, 1.0
        %v4634 = vlog2.pop %v4633
        %v4635 = vmul.f32 %v4634, 0.6931472
        %v4636 = vmul.f32 -0.5, %v4345
        %v4637 = vadd.f32 %v4636, 1.0
        %v4638 = vmul.f32 %v4637, %v4345
        %v4639 = vand.u32 2147483647, %v4345
        %vm4640 = vcmp.lt.f32.partialorder %v4639, 0.0004427343
        %v4641 = vsel %vm4640, %v4638, %v4635
        %v4642 = vadd.f32 %v4347, 1.0
        %v4643 = vlog2.pop %v4642
        %v4644 = vmul.f32 %v4643, 0.6931472
        %v4645 = vmul.f32 -0.5, %v4347
        %v4646 = vadd.f32 %v4645, 1.0
        %v4647 = vmul.f32 %v4646, %v4347
        %v4648 = vand.u32 2147483647, %v4347
        %vm4649 = vcmp.lt.f32.partialorder %v4648, 0.0004427343
        %v4650 = vsel %vm4649, %v4647, %v4644
        %v4651 = vadd.f32 %v4349, 1.0
        %v4652 = vlog2.pop %v4651
        %v4653 = vmul.f32 %v4652, 0.6931472
        %v4654 = vmul.f32 -0.5, %v4349
        %v4655 = vadd.f32 %v4654, 1.0
        %v4656 = vmul.f32 %v4655, %v4349
        %v4657 = vand.u32 2147483647, %v4349
        %vm4658 = vcmp.lt.f32.partialorder %v4657, 0.0004427343
        %v4659 = vsel %vm4658, %v4656, %v4653
        %v4660 = vadd.f32 %v4351, 1.0
        %v4661 = vlog2.pop %v4660
        %v4662 = vmul.f32 %v4661, 0.6931472
        %v4663 = vmul.f32 -0.5, %v4351
        %v4664 = vadd.f32 %v4663, 1.0
        %v4665 = vmul.f32 %v4664, %v4351
        %v4666 = vand.u32 2147483647, %v4351
        %vm4667 = vcmp.lt.f32.partialorder %v4666, 0.0004427343
        %v4668 = vsel %vm4667, %v4665, %v4662
        %v4669 = vadd.f32 %v4353, 1.0
        %v4670 = vlog2.pop %v4669
        %v4671 = vmul.f32 %v4670, 0.6931472
        %v4672 = vmul.f32 -0.5, %v4353
        %v4673 = vadd.f32 %v4672, 1.0
        %v4674 = vmul.f32 %v4673, %v4353
        %v4675 = vand.u32 2147483647, %v4353
        %vm4676 = vcmp.lt.f32.partialorder %v4675, 0.0004427343
        %v4677 = vsel %vm4676, %v4674, %v4671
        %v4678 = vadd.f32 %v4355, 1.0
        %v4679 = vlog2.pop %v4678
        %v4680 = vmul.f32 %v4679, 0.6931472
        %v4681 = vmul.f32 -0.5, %v4355
        %v4682 = vadd.f32 %v4681, 1.0
        %v4683 = vmul.f32 %v4682, %v4355
        %v4684 = vand.u32 2147483647, %v4355
        %vm4685 = vcmp.lt.f32.partialorder %v4684, 0.0004427343
        %v4686 = vsel %vm4685, %v4683, %v4680
        %v4687 = vadd.f32 %v4357, 1.0
        %v4688 = vlog2.pop %v4687
        %v4689 = vmul.f32 %v4688, 0.6931472
        %v4690 = vmul.f32 -0.5, %v4357
        %v4691 = vadd.f32 %v4690, 1.0
        %v4692 = vmul.f32 %v4691, %v4357
        %v4693 = vand.u32 2147483647, %v4357
        %vm4694 = vcmp.lt.f32.partialorder %v4693, 0.0004427343
        %v4695 = vsel %vm4694, %v4692, %v4689
        %v4696 = vadd.f32 %v4359, 1.0
        %v4697 = vlog2.pop %v4696
        %v4698 = vmul.f32 %v4697, 0.6931472
        %v4699 = vmul.f32 -0.5, %v4359
        %v4700 = vadd.f32 %v4699, 1.0
        %v4701 = vmul.f32 %v4700, %v4359
        %v4702 = vand.u32 2147483647, %v4359
        %vm4703 = vcmp.lt.f32.partialorder %v4702, 0.0004427343
        %v4704 = vsel %vm4703, %v4701, %v4698
        %v4705 = vadd.f32 %v4361, 1.0
        %v4706 = vlog2.pop %v4705
        %v4707 = vmul.f32 %v4706, 0.6931472
        %v4708 = vmul.f32 -0.5, %v4361
        %v4709 = vadd.f32 %v4708, 1.0
        %v4710 = vmul.f32 %v4709, %v4361
        %v4711 = vand.u32 2147483647, %v4361
        %vm4712 = vcmp.lt.f32.partialorder %v4711, 0.0004427343
        %v4713 = vsel %vm4712, %v4710, %v4707
        %v4714 = vadd.f32 %v4363, 1.0
        %v4715 = vlog2.pop %v4714
        %v4716 = vmul.f32 %v4715, 0.6931472
        %v4717 = vmul.f32 -0.5, %v4363
        %v4718 = vadd.f32 %v4717, 1.0
        %v4719 = vmul.f32 %v4718, %v4363
        %v4720 = vand.u32 2147483647, %v4363
        %vm4721 = vcmp.lt.f32.partialorder %v4720, 0.0004427343
        %v4722 = vsel %vm4721, %v4719, %v4716
        %v4723 = vadd.f32 %v4365, 1.0
        %v4724 = vlog2.pop %v4723
        %v4725 = vmul.f32 %v4724, 0.6931472
        %v4726 = vmul.f32 -0.5, %v4365
        %v4727 = vadd.f32 %v4726, 1.0
        %v4728 = vmul.f32 %v4727, %v4365
        %v4729 = vand.u32 2147483647, %v4365
        %vm4730 = vcmp.lt.f32.partialorder %v4729, 0.0004427343
        %v4731 = vsel %vm4730, %v4728, %v4725
        %v4732 = vadd.f32 %v4367, 1.0
        %v4733 = vlog2.pop %v4732
        %v4734 = vmul.f32 %v4733, 0.6931472
        %v4735 = vmul.f32 -0.5, %v4367
        %v4736 = vadd.f32 %v4735, 1.0
        %v4737 = vmul.f32 %v4736, %v4367
        %v4738 = vand.u32 2147483647, %v4367
        %vm4739 = vcmp.lt.f32.partialorder %v4738, 0.0004427343
        %v4740 = vsel %vm4739, %v4737, %v4734
        %v4741 = vadd.f32 %v4369, 1.0
        %v4742 = vlog2.pop %v4741
        %v4743 = vmul.f32 %v4742, 0.6931472
        %v4744 = vmul.f32 -0.5, %v4369
        %v4745 = vadd.f32 %v4744, 1.0
        %v4746 = vmul.f32 %v4745, %v4369
        %v4747 = vand.u32 2147483647, %v4369
        %vm4748 = vcmp.lt.f32.partialorder %v4747, 0.0004427343
        %v4749 = vsel %vm4748, %v4746, %v4743
        %v4750 = vadd.f32 %v4371, 1.0
        %v4751 = vlog2.pop %v4750
        %v4752 = vmul.f32 %v4751, 0.6931472
        %v4753 = vmul.f32 -0.5, %v4371
        %v4754 = vadd.f32 %v4753, 1.0
        %v4755 = vmul.f32 %v4754, %v4371
        %v4756 = vand.u32 2147483647, %v4371
        %vm4757 = vcmp.lt.f32.partialorder %v4756, 0.0004427343
        %v4758 = vsel %vm4757, %v4755, %v4752
        %v4759 = vadd.f32 %v4373, 1.0
        %v4760 = vlog2.pop %v4759
        %v4761 = vmul.f32 %v4760, 0.6931472
        %v4762 = vmul.f32 -0.5, %v4373
        %v4763 = vadd.f32 %v4762, 1.0
        %v4764 = vmul.f32 %v4763, %v4373
        %v4765 = vand.u32 2147483647, %v4373
        %vm4766 = vcmp.lt.f32.partialorder %v4765, 0.0004427343
        %v4767 = vsel %vm4766, %v4764, %v4761
        %v4768 = vadd.f32 %v4375, 1.0
        %v4769 = vlog2.pop %v4768
        %v4770 = vmul.f32 %v4769, 0.6931472
        %v4771 = vmul.f32 -0.5, %v4375
        %v4772 = vadd.f32 %v4771, 1.0
        %v4773 = vmul.f32 %v4772, %v4375
        %v4774 = vand.u32 2147483647, %v4375
        %vm4775 = vcmp.lt.f32.partialorder %v4774, 0.0004427343
        %v4776 = vsel %vm4775, %v4773, %v4770
        %v4777 = vadd.f32 %v4377, 1.0
        %v4778 = vlog2.pop %v4777
        %v4779 = vmul.f32 %v4778, 0.6931472
        %v4780 = vmul.f32 -0.5, %v4377
        %v4781 = vadd.f32 %v4780, 1.0
        %v4782 = vmul.f32 %v4781, %v4377
        %v4783 = vand.u32 2147483647, %v4377
        %vm4784 = vcmp.lt.f32.partialorder %v4783, 0.0004427343
        %v4785 = vsel %vm4784, %v4782, %v4779
        %v4786 = vadd.f32 %v4379, 1.0
        %v4787 = vlog2.pop %v4786
        %v4788 = vmul.f32 %v4787, 0.6931472
        %v4789 = vmul.f32 -0.5, %v4379
        %v4790 = vadd.f32 %v4789, 1.0
        %v4791 = vmul.f32 %v4790, %v4379
        %v4792 = vand.u32 2147483647, %v4379
        %vm4793 = vcmp.lt.f32.partialorder %v4792, 0.0004427343
        %v4794 = vsel %vm4793, %v4791, %v4788
        %v4795 = vadd.f32 %v4381, 1.0
        %v4796 = vlog2.pop %v4795
        %v4797 = vmul.f32 %v4796, 0.6931472
        %v4798 = vmul.f32 -0.5, %v4381
        %v4799 = vadd.f32 %v4798, 1.0
        %v4800 = vmul.f32 %v4799, %v4381
        %v4801 = vand.u32 2147483647, %v4381
        %vm4802 = vcmp.lt.f32.partialorder %v4801, 0.0004427343
        %v4803 = vsel %vm4802, %v4800, %v4797
        %v4804 = vadd.f32 %v4383, 1.0
        %v4805 = vlog2.pop %v4804
        %v4806 = vmul.f32 %v4805, 0.6931472
        %v4807 = vmul.f32 -0.5, %v4383
        %v4808 = vadd.f32 %v4807, 1.0
        %v4809 = vmul.f32 %v4808, %v4383
        %v4810 = vand.u32 2147483647, %v4383
        %vm4811 = vcmp.lt.f32.partialorder %v4810, 0.0004427343
        %v4812 = vsel %vm4811, %v4809, %v4806
        %v4813 = vadd.f32 %v4385, 1.0
        %v4814 = vlog2.pop %v4813
        %v4815 = vmul.f32 %v4814, 0.6931472
        %v4816 = vmul.f32 -0.5, %v4385
        %v4817 = vadd.f32 %v4816, 1.0
        %v4818 = vmul.f32 %v4817, %v4385
        %v4819 = vand.u32 2147483647, %v4385
        %vm4820 = vcmp.lt.f32.partialorder %v4819, 0.0004427343
        %v4821 = vsel %vm4820, %v4818, %v4815
        %v4822 = vadd.f32 %v4387, 1.0
        %v4823 = vlog2.pop %v4822
        %v4824 = vmul.f32 %v4823, 0.6931472
        %v4825 = vmul.f32 -0.5, %v4387
        %v4826 = vadd.f32 %v4825, 1.0
        %v4827 = vmul.f32 %v4826, %v4387
        %v4828 = vand.u32 2147483647, %v4387
        %vm4829 = vcmp.lt.f32.partialorder %v4828, 0.0004427343
        %v4830 = vsel %vm4829, %v4827, %v4824
        %v4831 = vadd.f32 %v4389, 1.0
        %v4832 = vlog2.pop %v4831
        %v4833 = vmul.f32 %v4832, 0.6931472
        %v4834 = vmul.f32 -0.5, %v4389
        %v4835 = vadd.f32 %v4834, 1.0
        %v4836 = vmul.f32 %v4835, %v4389
        %v4837 = vand.u32 2147483647, %v4389
        %vm4838 = vcmp.lt.f32.partialorder %v4837, 0.0004427343
        %v4839 = vsel %vm4838, %v4836, %v4833
        %v4840 = vadd.f32 %v4391, 1.0
        %v4841 = vlog2.pop %v4840
        %v4842 = vmul.f32 %v4841, 0.6931472
        %v4843 = vmul.f32 -0.5, %v4391
        %v4844 = vadd.f32 %v4843, 1.0
        %v4845 = vmul.f32 %v4844, %v4391
        %v4846 = vand.u32 2147483647, %v4391
        %vm4847 = vcmp.lt.f32.partialorder %v4846, 0.0004427343
        %v4848 = vsel %vm4847, %v4845, %v4842
        %v4849 = vadd.f32 %v4393, 1.0
        %v4850 = vlog2.pop %v4849
        %v4851 = vmul.f32 %v4850, 0.6931472
        %v4852 = vmul.f32 -0.5, %v4393
        %v4853 = vadd.f32 %v4852, 1.0
        %v4854 = vmul.f32 %v4853, %v4393
        %v4855 = vand.u32 2147483647, %v4393
        %vm4856 = vcmp.lt.f32.partialorder %v4855, 0.0004427343
        %v4857 = vsel %vm4856, %v4854, %v4851
        %v4858 = vadd.f32 %v4395, 1.0
        %v4859 = vlog2.pop %v4858
        %v4860 = vmul.f32 %v4859, 0.6931472
        %v4861 = vmul.f32 -0.5, %v4395
        %v4862 = vadd.f32 %v4861, 1.0
        %v4863 = vmul.f32 %v4862, %v4395
        %v4864 = vand.u32 2147483647, %v4395
        %vm4865 = vcmp.lt.f32.partialorder %v4864, 0.0004427343
        %v4866 = vsel %vm4865, %v4863, %v4860
        %v4867 = vadd.f32 %v4397, 1.0
        %v4868 = vlog2.pop %v4867
        %v4869 = vmul.f32 %v4868, 0.6931472
        %v4870 = vmul.f32 -0.5, %v4397
        %v4871 = vadd.f32 %v4870, 1.0
        %v4872 = vmul.f32 %v4871, %v4397
        %v4873 = vand.u32 2147483647, %v4397
        %vm4874 = vcmp.lt.f32.partialorder %v4873, 0.0004427343
        %v4875 = vsel %vm4874, %v4872, %v4869
        %v4876 = vadd.f32 %v4399, 1.0
        %v4877 = vlog2.pop %v4876
        %v4878 = vmul.f32 %v4877, 0.6931472
        %v4879 = vmul.f32 -0.5, %v4399
        %v4880 = vadd.f32 %v4879, 1.0
        %v4881 = vmul.f32 %v4880, %v4399
        %v4882 = vand.u32 2147483647, %v4399
        %vm4883 = vcmp.lt.f32.partialorder %v4882, 0.0004427343
        %v4884 = vsel %vm4883, %v4881, %v4878
        %v4885 = vadd.f32 %v4401, 1.0
        %v4886 = vlog2.pop %v4885
        %v4887 = vmul.f32 %v4886, 0.6931472
        %v4888 = vmul.f32 -0.5, %v4401
        %v4889 = vadd.f32 %v4888, 1.0
        %v4890 = vmul.f32 %v4889, %v4401
        %v4891 = vand.u32 2147483647, %v4401
        %vm4892 = vcmp.lt.f32.partialorder %v4891, 0.0004427343
        %v4893 = vsel %vm4892, %v4890, %v4887
        %v4894 = vadd.f32 %v4403, 1.0
        %v4895 = vlog2.pop %v4894
        %v4896 = vmul.f32 %v4895, 0.6931472
        %v4897 = vmul.f32 -0.5, %v4403
        %v4898 = vadd.f32 %v4897, 1.0
        %v4899 = vmul.f32 %v4898, %v4403
        %v4900 = vand.u32 2147483647, %v4403
        %vm4901 = vcmp.lt.f32.partialorder %v4900, 0.0004427343
        %v4902 = vsel %vm4901, %v4899, %v4896
        %v4903 = vadd.f32 %v4405, 1.0
        %v4904 = vlog2.pop %v4903
        %v4905 = vmul.f32 %v4904, 0.6931472
        %v4906 = vmul.f32 -0.5, %v4405
        %v4907 = vadd.f32 %v4906, 1.0
        %v4908 = vmul.f32 %v4907, %v4405
        %v4909 = vand.u32 2147483647, %v4405
        %vm4910 = vcmp.lt.f32.partialorder %v4909, 0.0004427343
        %v4911 = vsel %vm4910, %v4908, %v4905
        %v4912 = vadd.f32 %v4407, 1.0
        %v4913 = vlog2.pop %v4912
        %v4914 = vmul.f32 %v4913, 0.6931472
        %v4915 = vmul.f32 -0.5, %v4407
        %v4916 = vadd.f32 %v4915, 1.0
        %v4917 = vmul.f32 %v4916, %v4407
        %v4918 = vand.u32 2147483647, %v4407
        %vm4919 = vcmp.lt.f32.partialorder %v4918, 0.0004427343
        %v4920 = vsel %vm4919, %v4917, %v4914
        %v4921 = vadd.f32 %v4409, 1.0
        %v4922 = vlog2.pop %v4921
        %v4923 = vmul.f32 %v4922, 0.6931472
        %v4924 = vmul.f32 -0.5, %v4409
        %v4925 = vadd.f32 %v4924, 1.0
        %v4926 = vmul.f32 %v4925, %v4409
        %v4927 = vand.u32 2147483647, %v4409
        %vm4928 = vcmp.lt.f32.partialorder %v4927, 0.0004427343
        %v4929 = vsel %vm4928, %v4926, %v4923
        %v4930 = vadd.f32 %v4411, 1.0
        %v4931 = vlog2.pop %v4930
        %v4932 = vmul.f32 %v4931, 0.6931472
        %v4933 = vmul.f32 -0.5, %v4411
        %v4934 = vadd.f32 %v4933, 1.0
        %v4935 = vmul.f32 %v4934, %v4411
        %v4936 = vand.u32 2147483647, %v4411
        %vm4937 = vcmp.lt.f32.partialorder %v4936, 0.0004427343
        %v4938 = vsel %vm4937, %v4935, %v4932
        %v4939 = vadd.f32 %v4413, 1.0
        %v4940 = vlog2.pop %v4939
        %v4941 = vmul.f32 %v4940, 0.6931472
        %v4942 = vmul.f32 -0.5, %v4413
        %v4943 = vadd.f32 %v4942, 1.0
        %v4944 = vmul.f32 %v4943, %v4413
        %v4945 = vand.u32 2147483647, %v4413
        %vm4946 = vcmp.lt.f32.partialorder %v4945, 0.0004427343
        %v4947 = vsel %vm4946, %v4944, %v4941
        %v4948 = vadd.f32 %v4415, 1.0
        %v4949 = vlog2.pop %v4948
        %v4950 = vmul.f32 %v4949, 0.6931472
        %v4951 = vmul.f32 -0.5, %v4415
        %v4952 = vadd.f32 %v4951, 1.0
        %v4953 = vmul.f32 %v4952, %v4415
        %v4954 = vand.u32 2147483647, %v4415
        %vm4955 = vcmp.lt.f32.partialorder %v4954, 0.0004427343
        %v4956 = vsel %vm4955, %v4953, %v4950
        %v4957 = vadd.f32 %v4417, 1.0
        %v4958 = vlog2.pop %v4957
        %v4959 = vmul.f32 %v4958, 0.6931472
        %v4960 = vmul.f32 -0.5, %v4417
        %v4961 = vadd.f32 %v4960, 1.0
        %v4962 = vmul.f32 %v4961, %v4417
        %v4963 = vand.u32 2147483647, %v4417
        %vm4964 = vcmp.lt.f32.partialorder %v4963, 0.0004427343
        %v4965 = vsel %vm4964, %v4962, %v4959
        %v4966 = vadd.f32 %v4419, 1.0
        %v4967 = vlog2.pop %v4966
        %v4968 = vmul.f32 %v4967, 0.6931472
        %v4969 = vmul.f32 -0.5, %v4419
        %v4970 = vadd.f32 %v4969, 1.0
        %v4971 = vmul.f32 %v4970, %v4419
        %v4972 = vand.u32 2147483647, %v4419
        %vm4973 = vcmp.lt.f32.partialorder %v4972, 0.0004427343
        %v4974 = vsel %vm4973, %v4971, %v4968
        %v4975 = vadd.f32 %v4421, 1.0
        %v4976 = vlog2.pop %v4975
        %v4977 = vmul.f32 %v4976, 0.6931472
        %v4978 = vmul.f32 -0.5, %v4421
        %v4979 = vadd.f32 %v4978, 1.0
        %v4980 = vmul.f32 %v4979, %v4421
        %v4981 = vand.u32 2147483647, %v4421
        %vm4982 = vcmp.lt.f32.partialorder %v4981, 0.0004427343
        %v4983 = vsel %vm4982, %v4980, %v4977
        %v4984 = vadd.f32 %v4423, 1.0
        %v4985 = vlog2.pop %v4984
        %v4986 = vmul.f32 %v4985, 0.6931472
        %v4987 = vmul.f32 -0.5, %v4423
        %v4988 = vadd.f32 %v4987, 1.0
        %v4989 = vmul.f32 %v4988, %v4423
        %v4990 = vand.u32 2147483647, %v4423
        %vm4991 = vcmp.lt.f32.partialorder %v4990, 0.0004427343
        %v4992 = vsel %vm4991, %v4989, %v4986
        %v4993 = vadd.f32 %v4425, 1.0
        %v4994 = vlog2.pop %v4993
        %v4995 = vmul.f32 %v4994, 0.6931472
        %v4996 = vmul.f32 -0.5, %v4425
        %v4997 = vadd.f32 %v4996, 1.0
        %v4998 = vmul.f32 %v4997, %v4425
        %v4999 = vand.u32 2147483647, %v4425
        %vm5000 = vcmp.lt.f32.partialorder %v4999, 0.0004427343
        %v5001 = vsel %vm5000, %v4998, %v4995
        %v5002 = vadd.f32 %v4106, %v4434
        %v5003 = vadd.f32 %v4107, %v4443
        %v5004 = vadd.f32 %v4108, %v4452
        %v5005 = vadd.f32 %v4109, %v4461
        %v5006 = vadd.f32 %v4110, %v4470
        %v5007 = vadd.f32 %v4111, %v4479
        %v5008 = vadd.f32 %v4112, %v4488
        %v5009 = vadd.f32 %v4113, %v4497
        %v5010 = vadd.f32 %v4114, %v4506
        %v5011 = vadd.f32 %v4115, %v4515
        %v5012 = vadd.f32 %v4116, %v4524
        %v5013 = vadd.f32 %v4117, %v4533
        %v5014 = vadd.f32 %v4118, %v4542
        %v5015 = vadd.f32 %v4119, %v4551
        %v5016 = vadd.f32 %v4120, %v4560
        %v5017 = vadd.f32 %v4121, %v4569
        %v5018 = vadd.f32 %v4122, %v4578
        %v5019 = vadd.f32 %v4123, %v4587
        %v5020 = vadd.f32 %v4124, %v4596
        %v5021 = vadd.f32 %v4125, %v4605
        %v5022 = vadd.f32 %v4126, %v4614
        %v5023 = vadd.f32 %v4127, %v4623
        %v5024 = vadd.f32 %v4128, %v4632
        %v5025 = vadd.f32 %v4129, %v4641
        %v5026 = vadd.f32 %v4130, %v4650
        %v5027 = vadd.f32 %v4131, %v4659
        %v5028 = vadd.f32 %v4132, %v4668
        %v5029 = vadd.f32 %v4133, %v4677
        %v5030 = vadd.f32 %v4134, %v4686
        %v5031 = vadd.f32 %v4135, %v4695
        %v5032 = vadd.f32 %v4136, %v4704
        %v5033 = vadd.f32 %v4137, %v4713
        %v5034 = vadd.f32 %v4138, %v4722
        %v5035 = vadd.f32 %v4139, %v4731
        %v5036 = vadd.f32 %v4140, %v4740
        %v5037 = vadd.f32 %v4141, %v4749
        %v5038 = vadd.f32 %v4142, %v4758
        %v5039 = vadd.f32 %v4143, %v4767
        %v5040 = vadd.f32 %v4144, %v4776
        %v5041 = vadd.f32 %v4145, %v4785
        %v5042 = vadd.f32 %v4146, %v4794
        %v5043 = vadd.f32 %v4147, %v4803
        %v5044 = vadd.f32 %v4148, %v4812
        %v5045 = vadd.f32 %v4149, %v4821
        %v5046 = vadd.f32 %v4150, %v4830
        %v5047 = vadd.f32 %v4151, %v4839
        %v5048 = vadd.f32 %v4152, %v4848
        %v5049 = vadd.f32 %v4153, %v4857
        %v5050 = vadd.f32 %v4154, %v4866
        %v5051 = vadd.f32 %v4155, %v4875
        %v5052 = vadd.f32 %v4156, %v4884
        %v5053 = vadd.f32 %v4157, %v4893
        %v5054 = vadd.f32 %v4158, %v4902
        %v5055 = vadd.f32 %v4159, %v4911
        %v5056 = vadd.f32 %v4160, %v4920
        %v5057 = vadd.f32 %v4161, %v4929
        %v5058 = vadd.f32 %v4162, %v4938
        %v5059 = vadd.f32 %v4163, %v4947
        %v5060 = vadd.f32 %v4164, %v4956
        %v5061 = vadd.f32 %v4165, %v4965
        %v5062 = vadd.f32 %v4166, %v4974
        %v5063 = vadd.f32 %v4167, %v4983
        %v5064 = vadd.f32 %v4168, %v4992
        %v5065 = vadd.f32 %v4169, %v5001
        %v5066 = vmul.f32 %v4042, %v5002
        %v5067 = vmul.f32 %v4043, %v5003
        %v5068 = vmul.f32 %v4044, %v5004
        %v5069 = vmul.f32 %v4045, %v5005
        %v5070 = vmul.f32 %v4046, %v5006
        %v5071 = vmul.f32 %v4047, %v5007
        %v5072 = vmul.f32 %v4048, %v5008
        %v5073 = vmul.f32 %v4049, %v5009
        %v5074 = vmul.f32 %v4050, %v5010
        %v5075 = vmul.f32 %v4051, %v5011
        %v5076 = vmul.f32 %v4052, %v5012
        %v5077 = vmul.f32 %v4053, %v5013
        %v5078 = vmul.f32 %v4054, %v5014
        %v5079 = vmul.f32 %v4055, %v5015
        %v5080 = vmul.f32 %v4056, %v5016
        %v5081 = vmul.f32 %v4057, %v5017
        %v5082 = vmul.f32 %v4058, %v5018
        %v5083 = vmul.f32 %v4059, %v5019
        %v5084 = vmul.f32 %v4060, %v5020
        %v5085 = vmul.f32 %v4061, %v5021
        %v5086 = vmul.f32 %v4062, %v5022
        %v5087 = vmul.f32 %v4063, %v5023
        %v5088 = vmul.f32 %v4064, %v5024
        %v5089 = vmul.f32 %v4065, %v5025
        %v5090 = vmul.f32 %v4066, %v5026
        %v5091 = vmul.f32 %v4067, %v5027
        %v5092 = vmul.f32 %v4068, %v5028
        %v5093 = vmul.f32 %v4069, %v5029
        %v5094 = vmul.f32 %v4070, %v5030
        %v5095 = vmul.f32 %v4071, %v5031
        %v5096 = vmul.f32 %v4072, %v5032
        %v5097 = vmul.f32 %v4073, %v5033
        %v5098 = vmul.f32 %v4074, %v5034
        %v5099 = vmul.f32 %v4075, %v5035
        %v5100 = vmul.f32 %v4076, %v5036
        %v5101 = vmul.f32 %v4077, %v5037
        %v5102 = vmul.f32 %v4078, %v5038
        %v5103 = vmul.f32 %v4079, %v5039
        %v5104 = vmul.f32 %v4080, %v5040
        %v5105 = vmul.f32 %v4081, %v5041
        %v5106 = vmul.f32 %v4082, %v5042
        %v5107 = vmul.f32 %v4083, %v5043
        %v5108 = vmul.f32 %v4084, %v5044
        %v5109 = vmul.f32 %v4085, %v5045
        %v5110 = vmul.f32 %v4086, %v5046
        %v5111 = vmul.f32 %v4087, %v5047
        %v5112 = vmul.f32 %v4088, %v5048
        %v5113 = vmul.f32 %v4089, %v5049
        %v5114 = vmul.f32 %v4090, %v5050
        %v5115 = vmul.f32 %v4091, %v5051
        %v5116 = vmul.f32 %v4092, %v5052
        %v5117 = vmul.f32 %v4093, %v5053
        %v5118 = vmul.f32 %v4094, %v5054
        %v5119 = vmul.f32 %v4095, %v5055
        %v5120 = vmul.f32 %v4096, %v5056
        %v5121 = vmul.f32 %v4097, %v5057
        %v5122 = vmul.f32 %v4098, %v5058
        %v5123 = vmul.f32 %v4099, %v5059
        %v5124 = vmul.f32 %v4100, %v5060
        %v5125 = vmul.f32 %v4101, %v5061
        %v5126 = vmul.f32 %v4102, %v5062
        %v5127 = vmul.f32 %v4103, %v5063
        %v5128 = vmul.f32 %v4104, %v5064
        %v5129 = vmul.f32 %v4105, %v5065
        %v5130 = vpack.c.bf16 %v5067, %v5066
        %v5131 = vpack.c.bf16 %v5069, %v5068
        %v5132 = vpack.c.bf16 %v5071, %v5070
        %v5133 = vpack.c.bf16 %v5073, %v5072
        %v5134 = vpack.c.bf16 %v5075, %v5074
        %v5135 = vpack.c.bf16 %v5077, %v5076
        %v5136 = vpack.c.bf16 %v5079, %v5078
        %v5137 = vpack.c.bf16 %v5081, %v5080
        %v5138 = vpack.c.bf16 %v5083, %v5082
        %v5139 = vpack.c.bf16 %v5085, %v5084
        %v5140 = vpack.c.bf16 %v5087, %v5086
        %v5141 = vpack.c.bf16 %v5089, %v5088
        %v5142 = vpack.c.bf16 %v5091, %v5090
        %v5143 = vpack.c.bf16 %v5093, %v5092
        %v5144 = vpack.c.bf16 %v5095, %v5094
        %v5145 = vpack.c.bf16 %v5097, %v5096
        %v5146 = vpack.c.bf16 %v5099, %v5098
        %v5147 = vpack.c.bf16 %v5101, %v5100
        %v5148 = vpack.c.bf16 %v5103, %v5102
        %v5149 = vpack.c.bf16 %v5105, %v5104
        %v5150 = vpack.c.bf16 %v5107, %v5106
        %v5151 = vpack.c.bf16 %v5109, %v5108
        %v5152 = vpack.c.bf16 %v5111, %v5110
        %v5153 = vpack.c.bf16 %v5113, %v5112
        %v5154 = vpack.c.bf16 %v5115, %v5114
        %v5155 = vpack.c.bf16 %v5117, %v5116
        %v5156 = vpack.c.bf16 %v5119, %v5118
        %v5157 = vpack.c.bf16 %v5121, %v5120
        %v5158 = vpack.c.bf16 %v5123, %v5122
        %v5159 = vpack.c.bf16 %v5125, %v5124
        %v5160 = vpack.c.bf16 %v5127, %v5126
        %v5161 = vpack.c.bf16 %v5129, %v5128
        %v5162 = vld [vmem:[#allocation2] sm:$0xff]
        %v5163 = vld [vmem:[#allocation2 + $0x8] sm:$0xff]
        %v5164 = vld [vmem:[#allocation2 + $0x10] sm:$0xff]
        %v5165 = vld [vmem:[#allocation2 + $0x18] sm:$0xff]
        %5166 = vmatpush.bf16.msra.mxu0 %v5137
        %5167 = vmatpush.bf16.msra.mxu0 %v5136
        %5168 = vmatpush.bf16.msra.mxu0 %v5135
        %5169 = vmatpush.bf16.msra.mxu0 %v5134
        %5170 = vmatpush.bf16.msra.mxu0 %v5133
        %5171 = vmatpush.bf16.msra.mxu0 %v5132
        %5172 = vmatpush.bf16.msra.mxu0 %v5131
        %5173 = vmatpush.bf16.msra.mxu0 %v5130
        %5174 = vmatmul.bf16.gmra.mxu0 %v1973
        %v5175 = vpop.f32.mrf.mxu0
        %v5176 = vadd.f32 0.0, %v5175
        %v5177 = vpop.f32.mrf.mxu0
        %v5178 = vadd.f32 0.0, %v5177
        %5179 = vmatmul.bf16.gmra.mxu0 %v1977
        %v5180 = vpop.f32.mrf.mxu0
        %v5181 = vadd.f32 0.0, %v5180
        %v5182 = vpop.f32.mrf.mxu0
        %v5183 = vadd.f32 0.0, %v5182
        %5184 = vdwg.mxu0
        %5185 = vmatpush.bf16.msra.mxu0 %v5145
        %5186 = vmatpush.bf16.msra.mxu0 %v5144
        %5187 = vmatpush.bf16.msra.mxu0 %v5143
        %5188 = vmatpush.bf16.msra.mxu0 %v5142
        %5189 = vmatpush.bf16.msra.mxu0 %v5141
        %5190 = vmatpush.bf16.msra.mxu0 %v5140
        %5191 = vmatpush.bf16.msra.mxu0 %v5139
        %5192 = vmatpush.bf16.msra.mxu0 %v5138
        %5193 = vmatmul.bf16.gmra.mxu0 %v1974
        %v5194 = vpop.f32.mrf.mxu0
        %v5195 = vadd.f32 %v5176, %v5194
        %v5196 = vpop.f32.mrf.mxu0
        %v5197 = vadd.f32 %v5178, %v5196
        %5198 = vmatmul.bf16.gmra.mxu0 %v1978
        %v5199 = vpop.f32.mrf.mxu0
        %v5200 = vadd.f32 %v5181, %v5199
        %v5201 = vpop.f32.mrf.mxu0
        %v5202 = vadd.f32 %v5183, %v5201
        %5203 = vdwg.mxu0
        %5204 = vmatpush.bf16.msra.mxu0 %v5153
        %5205 = vmatpush.bf16.msra.mxu0 %v5152
        %5206 = vmatpush.bf16.msra.mxu0 %v5151
        %5207 = vmatpush.bf16.msra.mxu0 %v5150
        %5208 = vmatpush.bf16.msra.mxu0 %v5149
        %5209 = vmatpush.bf16.msra.mxu0 %v5148
        %5210 = vmatpush.bf16.msra.mxu0 %v5147
        %5211 = vmatpush.bf16.msra.mxu0 %v5146
        %5212 = vmatmul.bf16.gmra.mxu0 %v1975
        %v5213 = vpop.f32.mrf.mxu0
        %v5214 = vadd.f32 %v5195, %v5213
        %v5215 = vpop.f32.mrf.mxu0
        %v5216 = vadd.f32 %v5197, %v5215
        %5217 = vmatmul.bf16.gmra.mxu0 %v1979
        %v5218 = vpop.f32.mrf.mxu0
        %v5219 = vadd.f32 %v5200, %v5218
        %v5220 = vpop.f32.mrf.mxu0
        %v5221 = vadd.f32 %v5202, %v5220
        %5222 = vdwg.mxu0
        %5223 = vmatpush.bf16.msra.mxu0 %v5161
        %5224 = vmatpush.bf16.msra.mxu0 %v5160
        %5225 = vmatpush.bf16.msra.mxu0 %v5159
        %5226 = vmatpush.bf16.msra.mxu0 %v5158
        %5227 = vmatpush.bf16.msra.mxu0 %v5157
        %5228 = vmatpush.bf16.msra.mxu0 %v5156
        %5229 = vmatpush.bf16.msra.mxu0 %v5155
        %5230 = vmatpush.bf16.msra.mxu0 %v5154
        %5231 = vmatmul.bf16.gmra.mxu0 %v1976
        %v5232 = vpop.f32.mrf.mxu0
        %v5233 = vadd.f32 %v5214, %v5232
        %v5234 = vpop.f32.mrf.mxu0
        %v5235 = vadd.f32 %v5216, %v5234
        %5236 = vmatmul.bf16.gmra.mxu0 %v1980
        %v5237 = vpop.f32.mrf.mxu0
        %v5238 = vadd.f32 %v5219, %v5237
        %v5239 = vpop.f32.mrf.mxu0
        %v5240 = vadd.f32 %v5221, %v5239
        %5241 = vdwg.mxu0
        %v5242 = vadd.f32 %v5162, %v5233
        %v5243 = vadd.f32 %v5163, %v5235
        %v5244 = vadd.f32 %v5164, %v5238
        %v5245 = vadd.f32 %v5165, %v5240
        %5246 = vst [vmem:[#allocation2] sm:$0xff] %v5242
        %5247 = vst [vmem:[#allocation2 + $0x8] sm:$0xff] %v5243
        %5248 = vst [vmem:[#allocation2 + $0x10] sm:$0xff] %v5244
        %5249 = vst [vmem:[#allocation2 + $0x18] sm:$0xff] %v5245
        %p5250 = scmp.eq.s32.totalorder %s31, 2
        // Predicated region
        $region101: #{tpu_custom_call.1} parent=95 // pred_check
          %p5251 = pneg %p5250
        $region102: #{tpu_custom_call.1} parent=95 // pred_check_branch
          %5253 = sbr.rel (%p5251) target = $region104
        $region103: #{tpu_custom_call.1} parent=95 // pred_region
          %v5254 = vld [vmem:[%s6] sm:$0xff]
          %v5255 = vld [vmem:[%s6 + $0x8] sm:$0xff]
          %v5256 = vld [vmem:[%s6 + $0x10] sm:$0xff]
          %v5257 = vld [vmem:[%s6 + $0x18] sm:$0xff]
          %v5258 = vld [vmem:[#allocation2] sm:$0xff]
          %v5259 = vld [vmem:[#allocation2 + $0x8] sm:$0xff]
          %v5260 = vld [vmem:[#allocation2 + $0x10] sm:$0xff]
          %v5261 = vld [vmem:[#allocation2 + $0x18] sm:$0xff]
          %v5262 = vld [vmem:[%s11] sm:$0x1]
          %v5264 = vperm.slane %v5262, 0
          %v5266 = vmul.f32 %v5258, %v5264
          %v5267 = vmul.f32 %v5259, %v5264
          %v5268 = vmul.f32 %v5260, %v5264
          %v5269 = vmul.f32 %v5261, %v5264
          %v5270 = vadd.f32 %v5254, %v5266
          %v5271 = vadd.f32 %v5255, %v5267
          %v5272 = vadd.f32 %v5256, %v5268
          %v5273 = vadd.f32 %v5257, %v5269
          %v5274 = vld [vmem:[%s12] sm:$0x1]
          %v5276 = vperm.slane %v5274, 0
          %v5278 = vadd.f32 %v5270, %v5276
          %v5279 = vadd.f32 %v5271, %v5276
          %v5280 = vadd.f32 %v5272, %v5276
          %v5281 = vadd.f32 %v5273, %v5276
          %v5282 = vld [vmem:[%s4] sm:$0x1]
          %v5283 = vperm.slane %v5282, 0
          %vm5284 = vcmp.eq.s32.totalorder %v1916, %v5283
          %v5285 = vsel %vm5284, 1, 0
          %v5286 = vcvt.s32.f32 %v5285
          %v5288 = vsel %vm2009, %v5286, 0
          %5290 = vmatpush.msra.mxu0 0.0
          %5291 = vmatpush.msra.mxu0 0.0
          %5292 = vmatpush.msra.mxu0 0.0
          %5293 = vmatpush.msra.mxu0 0.0
          %5294 = vmatpush.msra.mxu0 0.0
          %5295 = vmatpush.msra.mxu0 0.0
          %5296 = vmatpush.msra.mxu0 0.0
          %5297 = vmatpush.msra.mxu0 0.0
          %5298 = vmatpush.msra.mxu0 0.0
          %5299 = vmatpush.msra.mxu0 0.0
          %5300 = vmatpush.msra.mxu0 0.0
          %5301 = vmatpush.msra.mxu0 0.0
          %5302 = vmatpush.msra.mxu0 %v5281
          %5303 = vmatpush.msra.mxu0 %v5280
          %5304 = vmatpush.msra.mxu0 %v5279
          %5305 = vmatpush.msra.mxu0 %v5278
          %5306 = vmatmul.f32.gmra.mxu0 %v5288
          %v5307 = vpop.f32.mrf.mxu0
          %v5308 = vadd.f32 0.0, %v5307
          %5309 = vdwg.mxu0
          %vm5310 = vcmask 256000
          %v5311 = vsel %vm5310, %v5286, 0.0
          %5312 = vadd.xlane.f32.xlu0 %v5311
          %v5313 = vpop.xlane.xlu0 %5312
          %v5314 = vmax.f32 %v5313, 1.0
          %v5315 = vrcp.pop %v5314
          %v5316 = vmul.f32 %v5314, %v5315
          %v5317 = vsub.f32 1.0, %v5316
          %v5318 = vmul.f32 %v5315, %v5317
          %v5319 = vadd.f32 %v5315, %v5318
          %vm5320 = vweird.f32 %v5314
          %vm5321 = vweird.f32 %v5315
          %vm5322 = vmor %vm5320, %vm5321
          %v5323 = vsel %vm5322, %v5315, %v5319
          %v5324 = vand.u32 2147483647, %v5314
          %vm5325 = vcmp.eq.f32.partialorder %v5324, 8.507059e+37
          %v5326 = vand.u32 %v5314, 2147483648
          %v5327 = vor.u32 1.1754944e-38, %v5326
          %v5328 = vsel %vm5325, %v5327, %v5323
          %v5329 = vmul.f32 %v5308, %v5328
          %v5330 = vld [vmem:[%s5] sm:$0xff]
          %v5331 = vld [vmem:[%s5 + $0x8] sm:$0xff]
          %v5332 = vld [vmem:[%s5 + $0x10] sm:$0xff]
          %v5333 = vld [vmem:[%s5 + $0x18] sm:$0xff]
          %vm5334 = vcmp.eq.s32.totalorder %v5330, 0
          %vm5335 = vcmp.eq.s32.totalorder %v5331, 0
          %vm5336 = vcmp.eq.s32.totalorder %v5332, 0
          %vm5337 = vcmp.eq.s32.totalorder %v5333, 0
          %v5338 = vsel %vm5334, 1, 0
          %v5339 = vsel %vm5335, 1, 0
          %v5340 = vsel %vm5336, 1, 0
          %v5341 = vsel %vm5337, 1, 0
          %5342 = vset.pattern.permute.xlu0 0
          %5343 = vperm.xlu0 %5342, %v5338
          %v5344 = vpop.permute.xlu0 %5343
          %5345 = vset.pattern.permute.xlu0 0
          %5346 = vperm.xlu0 %5345, %v5339
          %v5347 = vpop.permute.xlu0 %5346
          %5348 = vset.pattern.permute.xlu0 0
          %5349 = vperm.xlu0 %5348, %v5340
          %v5350 = vpop.permute.xlu0 %5349
          %5351 = vset.pattern.permute.xlu0 0
          %5352 = vperm.xlu0 %5351, %v5341
          %v5353 = vpop.permute.xlu0 %5352
          %vm5354 = vcmp.eq.s32.totalorder %v5344, 1
          %vm5355 = vcmp.eq.s32.totalorder %v5347, 1
          %vm5356 = vcmp.eq.s32.totalorder %v5350, 1
          %vm5357 = vcmp.eq.s32.totalorder %v5353, 1
          %v5358 = vsel %vm5354, %v5278, -1e+30
          %v5359 = vsel %vm5355, %v5279, -1e+30
          %v5360 = vsel %vm5356, %v5280, -1e+30
          %v5361 = vsel %vm5357, %v5281, -1e+30
          %v5362 = vmax.f32 %v5358, %v5359
          %v5363 = vmax.f32 %v5360, %v5361
          %v5364 = vmax.f32 %v5362, %v5363
          %v5365 = vrot.slane %v5364, 4
          %v5366 = vmax.f32 %v5364, %v5365
          %v5367 = vrot.slane %v5366, 2
          %v5368 = vmax.f32 %v5366, %v5367
          %v5369 = vrot.slane %v5368, 1
          %v5370 = vmax.f32 %v5368, %v5369
          %vm5371 = vcmp.eq.s32.totalorder %v5330, 1
          %vm5372 = vcmp.eq.s32.totalorder %v5331, 1
          %vm5373 = vcmp.eq.s32.totalorder %v5332, 1
          %vm5374 = vcmp.eq.s32.totalorder %v5333, 1
          %v5375 = vsel %vm5371, 1, 0
          %v5376 = vsel %vm5372, 1, 0
          %v5377 = vsel %vm5373, 1, 0
          %v5378 = vsel %vm5374, 1, 0
          %5379 = vset.pattern.permute.xlu0 0
          %5380 = vperm.xlu0 %5379, %v5375
          %v5381 = vpop.permute.xlu0 %5380
          %5382 = vset.pattern.permute.xlu0 0
          %5383 = vperm.xlu0 %5382, %v5376
          %v5384 = vpop.permute.xlu0 %5383
          %5385 = vset.pattern.permute.xlu0 0
          %5386 = vperm.xlu0 %5385, %v5377
          %v5387 = vpop.permute.xlu0 %5386
          %5388 = vset.pattern.permute.xlu0 0
          %5389 = vperm.xlu0 %5388, %v5378
          %v5390 = vpop.permute.xlu0 %5389
          %vm5391 = vcmp.eq.s32.totalorder %v5381, 1
          %vm5392 = vcmp.eq.s32.totalorder %v5384, 1
          %vm5393 = vcmp.eq.s32.totalorder %v5387, 1
          %vm5394 = vcmp.eq.s32.totalorder %v5390, 1
          %v5395 = vsel %vm5391, %v5278, -1e+30
          %v5396 = vsel %vm5392, %v5279, -1e+30
          %v5397 = vsel %vm5393, %v5280, -1e+30
          %v5398 = vsel %vm5394, %v5281, -1e+30
          %v5399 = vmax.f32 %v5395, %v5396
          %v5400 = vmax.f32 %v5397, %v5398
          %v5401 = vmax.f32 %v5399, %v5400
          %v5402 = vrot.slane %v5401, 4
          %v5403 = vmax.f32 %v5401, %v5402
          %v5404 = vrot.slane %v5403, 2
          %v5405 = vmax.f32 %v5403, %v5404
          %v5406 = vrot.slane %v5405, 1
          %v5407 = vmax.f32 %v5405, %v5406
          %vm5408 = vcmp.eq.s32.totalorder %v5330, 2
          %vm5409 = vcmp.eq.s32.totalorder %v5331, 2
          %vm5410 = vcmp.eq.s32.totalorder %v5332, 2
          %vm5411 = vcmp.eq.s32.totalorder %v5333, 2
          %v5412 = vsel %vm5408, 1, 0
          %v5413 = vsel %vm5409, 1, 0
          %v5414 = vsel %vm5410, 1, 0
          %v5415 = vsel %vm5411, 1, 0
          %5416 = vset.pattern.permute.xlu0 0
          %5417 = vperm.xlu0 %5416, %v5412
          %v5418 = vpop.permute.xlu0 %5417
          %5419 = vset.pattern.permute.xlu0 0
          %5420 = vperm.xlu0 %5419, %v5413
          %v5421 = vpop.permute.xlu0 %5420
          %5422 = vset.pattern.permute.xlu0 0
          %5423 = vperm.xlu0 %5422, %v5414
          %v5424 = vpop.permute.xlu0 %5423
          %5425 = vset.pattern.permute.xlu0 0
          %5426 = vperm.xlu0 %5425, %v5415
          %v5427 = vpop.permute.xlu0 %5426
          %vm5428 = vcmp.eq.s32.totalorder %v5418, 1
          %vm5429 = vcmp.eq.s32.totalorder %v5421, 1
          %vm5430 = vcmp.eq.s32.totalorder %v5424, 1
          %vm5431 = vcmp.eq.s32.totalorder %v5427, 1
          %v5432 = vsel %vm5428, %v5278, -1e+30
          %v5433 = vsel %vm5429, %v5279, -1e+30
          %v5434 = vsel %vm5430, %v5280, -1e+30
          %v5435 = vsel %vm5431, %v5281, -1e+30
          %v5436 = vmax.f32 %v5432, %v5433
          %v5437 = vmax.f32 %v5434, %v5435
          %v5438 = vmax.f32 %v5436, %v5437
          %v5439 = vrot.slane %v5438, 4
          %v5440 = vmax.f32 %v5438, %v5439
          %v5441 = vrot.slane %v5440, 2
          %v5442 = vmax.f32 %v5440, %v5441
          %v5443 = vrot.slane %v5442, 1
          %v5444 = vmax.f32 %v5442, %v5443
          %vm5445 = vcmask 1040384
          %v5446 = vsel %vm5445, %v5370, %v5407
          %vm5447 = vcmask 1041408
          %v5448 = vsel %vm5447, %v5446, %v5444
          %v5449 = vld [vmem:[%s13] sm:$0xff]
          %v5450 = vld [vmem:[%s13 + $0x8] sm:$0xff]
          %v5451 = vld [vmem:[%s13 + $0x10] sm:$0xff]
          %v5452 = vld [vmem:[%s13 + $0x18] sm:$0xff]
          %v5453 = vld [vmem:[%s13 + $0x20] sm:$0xff]
          %v5454 = vld [vmem:[%s13 + $0x28] sm:$0xff]
          %v5455 = vld [vmem:[%s13 + $0x30] sm:$0xff]
          %v5456 = vld [vmem:[%s13 + $0x38] sm:$0xff]
          %v5457 = vld [vmem:[%s13 + $0x40] sm:$0xff]
          %v5458 = vld [vmem:[%s13 + $0x48] sm:$0xff]
          %v5459 = vld [vmem:[%s13 + $0x50] sm:$0xff]
          %v5460 = vld [vmem:[%s13 + $0x58] sm:$0xff]
          %v5461 = vld [vmem:[%s13 + $0x60] sm:$0xff]
          %v5462 = vld [vmem:[%s13 + $0x68] sm:$0xff]
          %v5463 = vld [vmem:[%s13 + $0x70] sm:$0xff]
          %v5464 = vld [vmem:[%s13 + $0x78] sm:$0xff]
          %v5465 = vld [vmem:[%s13 + $0x80] sm:$0xff]
          %v5466 = vld [vmem:[%s13 + $0x88] sm:$0xff]
          %v5467 = vld [vmem:[%s13 + $0x90] sm:$0xff]
          %v5468 = vld [vmem:[%s13 + $0x98] sm:$0xff]
          %v5469 = vld [vmem:[%s13 + $0xa0] sm:$0xff]
          %v5470 = vld [vmem:[%s13 + $0xa8] sm:$0xff]
          %v5471 = vld [vmem:[%s13 + $0xb0] sm:$0xff]
          %v5472 = vld [vmem:[%s13 + $0xb8] sm:$0xff]
          %v5473 = vld [vmem:[%s13 + $0xc0] sm:$0xff]
          %v5474 = vld [vmem:[%s13 + $0xc8] sm:$0xff]
          %v5475 = vld [vmem:[%s13 + $0xd0] sm:$0xff]
          %v5476 = vld [vmem:[%s13 + $0xd8] sm:$0xff]
          %v5477 = vld [vmem:[%s13 + $0xe0] sm:$0xff]
          %v5478 = vld [vmem:[%s13 + $0xe8] sm:$0xff]
          %v5479 = vld [vmem:[%s13 + $0xf0] sm:$0xff]
          %v5480 = vld [vmem:[%s13 + $0xf8] sm:$0xff]
          %v5481 = vld [vmem:[%s13 + $0x100] sm:$0xff]
          %v5482 = vld [vmem:[%s13 + $0x108] sm:$0xff]
          %v5483 = vld [vmem:[%s13 + $0x110] sm:$0xff]
          %v5484 = vld [vmem:[%s13 + $0x118] sm:$0xff]
          %v5485 = vld [vmem:[%s13 + $0x120] sm:$0xff]
          %v5486 = vld [vmem:[%s13 + $0x128] sm:$0xff]
          %v5487 = vld [vmem:[%s13 + $0x130] sm:$0xff]
          %v5488 = vld [vmem:[%s13 + $0x138] sm:$0xff]
          %v5489 = vld [vmem:[%s13 + $0x140] sm:$0xff]
          %v5490 = vld [vmem:[%s13 + $0x148] sm:$0xff]
          %v5491 = vld [vmem:[%s13 + $0x150] sm:$0xff]
          %v5492 = vld [vmem:[%s13 + $0x158] sm:$0xff]
          %v5493 = vld [vmem:[%s13 + $0x160] sm:$0xff]
          %v5494 = vld [vmem:[%s13 + $0x168] sm:$0xff]
          %v5495 = vld [vmem:[%s13 + $0x170] sm:$0xff]
          %v5496 = vld [vmem:[%s13 + $0x178] sm:$0xff]
          %v5497 = vld [vmem:[%s14] sm:$0x1]
          %v5499 = vperm.slane %v5497, 0
          %5501 = vmatpush.msra.mxu0 %v5464
          %5502 = vmatpush.msra.mxu0 %v5463
          %5503 = vmatpush.msra.mxu0 %v5462
          %5504 = vmatpush.msra.mxu0 %v5461
          %5505 = vmatpush.msra.mxu0 %v5460
          %5506 = vmatpush.msra.mxu0 %v5459
          %5507 = vmatpush.msra.mxu0 %v5458
          %5508 = vmatpush.msra.mxu0 %v5457
          %5509 = vmatpush.msra.mxu0 %v5456
          %5510 = vmatpush.msra.mxu0 %v5455
          %5511 = vmatpush.msra.mxu0 %v5454
          %5512 = vmatpush.msra.mxu0 %v5453
          %5513 = vmatpush.msra.mxu0 %v5452
          %5514 = vmatpush.msra.mxu0 %v5451
          %5515 = vmatpush.msra.mxu0 %v5450
          %5516 = vmatpush.msra.mxu0 %v5449
          %5517 = vmatmul.f32.gmra.mxu0 %v5329
          %v5518 = vpop.f32.mrf.mxu0
          %v5519 = vadd.f32 %v5499, %v5518
          %5520 = vdwg.mxu0
          %5521 = vmatpush.msra.mxu0 %v5480
          %5522 = vmatpush.msra.mxu0 %v5479
          %5523 = vmatpush.msra.mxu0 %v5478
          %5524 = vmatpush.msra.mxu0 %v5477
          %5525 = vmatpush.msra.mxu0 %v5476
          %5526 = vmatpush.msra.mxu0 %v5475
          %5527 = vmatpush.msra.mxu0 %v5474
          %5528 = vmatpush.msra.mxu0 %v5473
          %5529 = vmatpush.msra.mxu0 %v5472
          %5530 = vmatpush.msra.mxu0 %v5471
          %5531 = vmatpush.msra.mxu0 %v5470
          %5532 = vmatpush.msra.mxu0 %v5469
          %5533 = vmatpush.msra.mxu0 %v5468
          %5534 = vmatpush.msra.mxu0 %v5467
          %5535 = vmatpush.msra.mxu0 %v5466
          %5536 = vmatpush.msra.mxu0 %v5465
          %5537 = vmatmul.f32.gmra.mxu0 %v5308
          %v5538 = vpop.f32.mrf.mxu0
          %v5539 = vadd.f32 %v5519, %v5538
          %5540 = vdwg.mxu0
          %5541 = vmatpush.msra.mxu0 %v5496
          %5542 = vmatpush.msra.mxu0 %v5495
          %5543 = vmatpush.msra.mxu0 %v5494
          %5544 = vmatpush.msra.mxu0 %v5493
          %5545 = vmatpush.msra.mxu0 %v5492
          %5546 = vmatpush.msra.mxu0 %v5491
          %5547 = vmatpush.msra.mxu0 %v5490
          %5548 = vmatpush.msra.mxu0 %v5489
          %5549 = vmatpush.msra.mxu0 %v5488
          %5550 = vmatpush.msra.mxu0 %v5487
          %5551 = vmatpush.msra.mxu0 %v5486
          %5552 = vmatpush.msra.mxu0 %v5485
          %5553 = vmatpush.msra.mxu0 %v5484
          %5554 = vmatpush.msra.mxu0 %v5483
          %5555 = vmatpush.msra.mxu0 %v5482
          %5556 = vmatpush.msra.mxu0 %v5481
          %5557 = vmatmul.f32.gmra.mxu0 %v5448
          %v5558 = vpop.f32.mrf.mxu0
          %v5559 = vadd.f32 %v5539, %v5558
          %5560 = vdwg.mxu0
          %v5561 = vmax.f32 %v5559, 0.0
          %v5562 = vld [vmem:[%s15] sm:$0xff]
          %v5563 = vld [vmem:[%s15 + $0x8] sm:$0xff]
          %v5564 = vld [vmem:[%s15 + $0x10] sm:$0xff]
          %v5565 = vld [vmem:[%s15 + $0x18] sm:$0xff]
          %v5566 = vld [vmem:[%s16] sm:$0x1]
          %v5568 = vperm.slane %v5566, 0
          %v5571 = vsel %vm2009, %v5561, 0
          %5573 = vmatpush.msra.mxu0 0.0
          %5574 = vmatpush.msra.mxu0 0.0
          %5575 = vmatpush.msra.mxu0 0.0
          %5576 = vmatpush.msra.mxu0 0.0
          %5577 = vmatpush.msra.mxu0 0.0
          %5578 = vmatpush.msra.mxu0 0.0
          %5579 = vmatpush.msra.mxu0 0.0
          %5580 = vmatpush.msra.mxu0 0.0
          %5581 = vmatpush.msra.mxu0 0.0
          %5582 = vmatpush.msra.mxu0 0.0
          %5583 = vmatpush.msra.mxu0 0.0
          %5584 = vmatpush.msra.mxu0 0.0
          %5585 = vmatpush.msra.mxu0 %v5565
          %5586 = vmatpush.msra.mxu0 %v5564
          %5587 = vmatpush.msra.mxu0 %v5563
          %5588 = vmatpush.msra.mxu0 %v5562
          %5589 = vmatmul.f32.gmra.mxu0 %v5571
          %v5590 = vpop.f32.mrf.mxu0
          %v5591 = vadd.f32 %v5568, %v5590
          %5592 = vdwg.mxu0
          %v5593 = vmax.f32 %v5591, 0.0
          %v5594 = vld [vmem:[%s17] sm:$0xff]
          %v5595 = vld [vmem:[%s17 + $0x8] sm:$0xff]
          %v5596 = vld [vmem:[%s18] sm:$0x1]
          %v5598 = vperm.slane %v5596, 0
          %vm5600 = vcmask 130048
          %v5602 = vsel %vm5600, %v5593, 0
          %5604 = vmatpush.msra.mxu0 0.0
          %5605 = vmatpush.msra.mxu0 0.0
          %5606 = vmatpush.msra.mxu0 0.0
          %5607 = vmatpush.msra.mxu0 0.0
          %5608 = vmatpush.msra.mxu0 0.0
          %5609 = vmatpush.msra.mxu0 0.0
          %5610 = vmatpush.msra.mxu0 0.0
          %5611 = vmatpush.msra.mxu0 0.0
          %5612 = vmatpush.msra.mxu0 0.0
          %5613 = vmatpush.msra.mxu0 0.0
          %5614 = vmatpush.msra.mxu0 0.0
          %5615 = vmatpush.msra.mxu0 0.0
          %5616 = vmatpush.msra.mxu0 0.0
          %5617 = vmatpush.msra.mxu0 0.0
          %5618 = vmatpush.msra.mxu0 %v5595
          %5619 = vmatpush.msra.mxu0 %v5594
          %5620 = vmatmul.f32.gmra.mxu0 %v5602
          %v5621 = vpop.f32.mrf.mxu0
          %v5622 = vadd.f32 %v5598, %v5621
          %5623 = vdwg.mxu0
          %5624 = vst [vmem:[#allocation5] sm:$0x7] %v5622
        $region104: #{tpu_custom_call.1} parent=95 // pred_fallthru
          _
        // Predicated region
        $region105: #{tpu_custom_call.1} parent=95 // pred_check
          %p5625 = pneg %p463
        $region106: #{tpu_custom_call.1} parent=95 // pred_check_branch
          %5627 = sbr.rel (%p5625) target = $region108
        $region107: #{tpu_custom_call.1} parent=95 // pred_region
          %5629 = vsyncadd [#allocation6], 0
          %s5631 = sshll.u32 [#allocation5], 4
          %s5632 = int_to_ptr.vmem [resolvable:$true] %s5631
          %s5633 = sshll.u32 %s19, 4
          %s5634 = int_to_ptr.hbm [resolvable:$true] %s5633
          %5636 = dma.vmem_to_hbm [thread:$0]  %s5632, 64, %s5634, [#allocation6]
        $region108: #{tpu_custom_call.1} parent=95 // pred_fallthru
          _
        // Predicated region
        $region109: #{tpu_custom_call.1} parent=95 // pred_check
          %p5637 = pneg %p463
        $region110: #{tpu_custom_call.1} parent=95 // pred_check_branch
          %5639 = sbr.rel (%p5637) target = $region112
        $region111: #{tpu_custom_call.1} parent=95 // pred_region
          %5641 = dma.done [#allocation6], 64
        $region112: #{tpu_custom_call.1} parent=95 // pred_fallthru
          _
      $region96: #{tpu_custom_call.1} parent=5 // pred_fallthru
        _
      %p5642 = scmp.le.s32.totalorder 2, %s26
      // Predicated region
      $region113: #{tpu_custom_call.1} parent=5 // pred_check
        %p5643 = pneg %p5642
      $region114: #{tpu_custom_call.1} parent=5 // pred_check_branch
        %5645 = sbr.rel (%p5643) target = $region116
      $region115: #{tpu_custom_call.1} parent=5 // pred_region
        %s5646 = ssub.s32 %s26, 2
      $region116: #{tpu_custom_call.1} parent=5 // pred_fallthru
        _
    $region6: #{tpu_custom_call.1} parent=1 // loop_footer
      %s30 = sadd.s32 1, %s26
    $region7: #{tpu_custom_call.1} parent=1 // loop_footer_branch
      %25 = sbr.rel target = $region3
    $region8: #{tpu_custom_call.1} parent=1 // loop_exit
      _
    %5647 = vsyncpa [#allocation6], 1
    %s5648 = scalar_lea.sflag [#allocation6], 1
    %5649 = vsyncpa %s5648, 1

</llo_original>
